<compile_context>
chip_gen: v7x
topology: tpu7x:2x2x1
jax: 0.10.0
libtpu: 0.0.40
codegen_flags: <defaults>
</compile_context>

<pallas_src>
import math
from functools import partial

import numpy as np
import jax
import jax.numpy as jnp
from jax import lax
from jax.experimental import pallas as pl
from jax.experimental.pallas import tpu as pltpu

# BiasedActivation (per R3GAN): leaky_relu(x + bias, 0.2); class Gain = sqrt(2)
# is only used by the MSR init of the following conv, not in forward.
LEAKY_SLOPE = 0.2
BIASED_ACT_GAIN = math.sqrt(2.0)


def _leaky(v):
    return jnp.where(v >= 0, v, LEAKY_SLOPE * v)


# ----------------------------- Pallas kernel -------------------------------

def _stage_kernel(x_ref, masks_ref, w1_ref, b1_ref, w2_ref, b2_ref, w3_ref,
                  wd_ref, wl_ref, o_ref, x_acc, y_pad, *,
                  n_blocks, tap_shifts, groups, imgs_per_tile, hw, max_shift):
    """One (row_tile, block) grid step of the DiscriminatorStage.

    Per-step views:
      x:(Nt,C)  masks:(Nt,T)  w1:(1,C,E)  b1:(1,1,E)  w2:(1,T*G,Eg,Eg)
      b2:(1,1,E)  w3:(1,E,C)  wd:(HW,C)  wl:(C,O)  o:(m,O)
    Scratch:
      x_acc:(Nt,C) f32 carried activation; y_pad:(Nt+2*max_shift,E) f32 taps.
    """
    blk = pl.program_id(1)
    n_tile, c = x_acc.shape
    e = y_pad.shape[1]
    eg = e // groups
    mm_dtype = w1_ref.dtype          # bf16 for production, f32 for strict check

    @pl.when(blk == 0)
    def _init():
        x_acc[...] = x_ref[...]
        zeros = jnp.zeros((max_shift, e), jnp.float32)
        y_pad[pl.ds(0, max_shift), :] = zeros                      # top halo
        y_pad[pl.ds(max_shift + n_tile, max_shift), :] = zeros     # bottom halo

    x = x_acc[...]
    masks = masks_ref[...]

    # --- LinearLayer1 (1x1 conv) + NonLinearity1 ---------------------------
    y = jnp.dot(x.astype(mm_dtype), w1_ref[0],
                preferred_element_type=jnp.float32)
    y = _leaky(y + b1_ref[0])

    # --- LinearLayer2 (grouped KxK 'same' conv) -----------------------------
    # Shifted-slice taps from a zero-padded buffer (no pltpu.roll: keeps the
    # vector-extended slot for MXU pushes); masks zero out-of-image taps.
    # Per-tap, per-group accumulation: no (N, T*E) live tensor, no structural
    # block-diagonal zeros in the weight.
    y_pad[pl.ds(max_shift, n_tile), :] = y
    acc = [jnp.zeros((n_tile, eg), jnp.float32) for _ in range(groups)]
    for t, s in enumerate(tap_shifts):          # T*G small matmuls, unrolled
        yt = y_pad[pl.ds(max_shift + s, n_tile), :] * masks[:, t:t + 1]
        yt = yt.astype(mm_dtype)
        for g in range(groups):
            acc[g] = acc[g] + jnp.dot(yt[:, g * eg:(g + 1) * eg],
                                      w2_ref[0, t * groups + g],
                                      preferred_element_type=jnp.float32)
    y = acc[0] if groups == 1 else jnp.concatenate(acc, axis=1)

    # --- NonLinearity2 + LinearLayer3 (1x1 conv) + residual ------------------
    z = _leaky(y + b2_ref[0])
    x_acc[...] = x + jnp.dot(z.astype(mm_dtype), w3_ref[0],
                             preferred_element_type=jnp.float32)

    # --- DiscriminativeBasis transition (last block only) --------------------
    # Depthwise 4x4 'valid' conv on a 4x4 map == per-channel weighted sum over
    # the full map: reshape + reduce, then the Linear as a matmul.
    @pl.when(blk == n_blocks - 1)
    def _finalize():
        xf = x_acc[...]
        xw = xf.reshape(imgs_per_tile, hw, c) * wd_ref[...][None, :, :]
        basis = jnp.sum(xw, axis=1)                                  # (m, C)
        o_ref[...] = jnp.dot(basis.astype(mm_dtype), wl_ref[...],
                             preferred_element_type=jnp.float32
                             ).astype(o_ref.dtype)


# ----------------------------- wrapper --------------------------------------

def _derive_vmem_limit(*, n_tile, C, E, T, G, HW, O, m, max_shift, param_bytes):
    """VMEM budget derived from the per-step footprint + queried chip capacity."""
    f32 = 4
    eg = E // G
    blk_w = (C * E + T * G * eg * eg + E * C) * param_bytes + 2 * E * f32
    tile_in = (n_tile * C + n_tile * T) * f32            # x tile + masks tile
    fixed = HW * C * f32 + C * O * param_bytes           # wd + wl
    out = m * O * f32
    scratch = (n_tile * C + (n_tile + 2 * max_shift) * E) * f32
    need = 2 * (blk_w + tile_in + fixed + out) + scratch + (8 << 20)
    try:
        cap = int(pltpu.get_tpu_info().vmem_capacity_bytes)
    except Exception:
        cap = 64 << 20                                    # v7x per-TC floor
    return int(min(max(need, 32 << 20), (cap * 3) // 4))


def discriminator_stage(x_nchw, kp, *, imgs_per_tile=None):
    B, C, H, W = x_nchw.shape
    HW = H * W
    N = B * HW
    x = jnp.transpose(x_nchw, (0, 2, 3, 1)).reshape(N, C).astype(jnp.float32)

    nb, _, E = kp["w1"].shape
    G = kp["groups"]
    tap_shifts = kp["tap_shifts"]
    T = len(tap_shifts)
    Eg = E // G
    O = kp["wl"].shape[1]

    if imgs_per_tile is None:
        imgs_per_tile = B
    # Row tiles must be whole images (so grouped-conv taps never cross tiles)
    # and the (m, O) output block must respect the 8-sublane tiling rule.
    assert B % imgs_per_tile == 0
    assert imgs_per_tile == B or imgs_per_tile % 8 == 0
    R = B // imgs_per_tile
    n_tile = imgs_per_tile * HW
    max_shift = max(abs(s) for s in tap_shifts)

    kernel = partial(_stage_kernel, n_blocks=nb, tap_shifts=tap_shifts,
                     groups=G, imgs_per_tile=imgs_per_tile, hw=HW,
                     max_shift=max_shift)

    in_specs = [
        pl.BlockSpec((n_tile, C), lambda r, i: (r, 0)),               # x
        pl.BlockSpec((n_tile, T), lambda r, i: (r, 0)),               # masks
        pl.BlockSpec((1, C, E), lambda r, i: (i, 0, 0)),              # w1
        pl.BlockSpec((1, 1, E), lambda r, i: (i, 0, 0)),              # b1
        pl.BlockSpec((1, T * G, Eg, Eg), lambda r, i: (i, 0, 0, 0)),  # w2
        pl.BlockSpec((1, 1, E), lambda r, i: (i, 0, 0)),              # b2
        pl.BlockSpec((1, E, C), lambda r, i: (i, 0, 0)),              # w3
        pl.BlockSpec((HW, C), lambda r, i: (0, 0)),                   # wd
        pl.BlockSpec((C, O), lambda r, i: (0, 0)),                    # wl
    ]
    out_specs = pl.BlockSpec((imgs_per_tile, O), lambda r, i: (r, 0))
    scratch = [
        pltpu.VMEM((n_tile, C), jnp.float32),                  # carried activation
        pltpu.VMEM((n_tile + 2 * max_shift, E), jnp.float32),  # padded tap buffer
    ]

    vmem_limit = _derive_vmem_limit(
        n_tile=n_tile, C=C, E=E, T=T, G=G, HW=HW, O=O, m=imgs_per_tile,
        max_shift=max_shift, param_bytes=jnp.dtype(kp["w1"].dtype).itemsize)

    return pl.pallas_call(
        kernel,
        out_shape=jax.ShapeDtypeStruct((B, O), jnp.float32),
        grid_spec=pltpu.PrefetchScalarGridSpec(
            num_scalar_prefetch=0,
            grid=(R, nb),
            in_specs=in_specs,
            out_specs=out_specs,
            scratch_shapes=scratch),
        compiler_params=pltpu.CompilerParams(
            dimension_semantics=("parallel", "arbitrary"),
            vmem_limit_bytes=vmem_limit),
    )(x, kp["masks"], kp["w1"], kp["b1"], kp["w2"], kp["b2"], kp["w3"],
      kp["wd"], kp["wl"])


# --------------------- parameter construction (glue) ------------------------

def make_tap_aux(B, H, W, K):
    """Per-tap flat-row shift + validity masks for 'same' zero padding.

    shifts[t] = dy*W + dx.  masks[n, t] = 1 iff the tap stays inside the same
    HxW map (also prevents cross-image / cross-tile contamination).
    """
    pad = (K - 1) // 2
    HW, N = H * W, B * H * W
    shifts = []
    masks = np.zeros((N, K * K), np.float32)
    for ky in range(K):
        for kx in range(K):
            t = ky * K + kx
            dy, dx = ky - pad, kx - pad
            shifts.append(dy * W + dx)
            for b in range(B):
                for h in range(H):
                    for w in range(W):
                        if 0 <= h + dy < H and 0 <= w + dx < W:
                            masks[b * HW + h * W + w, t] = 1.0
    return tuple(shifts), masks


def grouped_taps(w2_raw, groups):
    """Grouped conv weight (E, E//G, K, K) OIHW -> (K*K, G, Eg, Eg) per-group
    per-tap matmul weights (no structural block-diagonal zeros)."""
    E, Eg, K, _ = w2_raw.shape
    w = np.asarray(w2_raw)
    out = np.zeros((K * K, groups, Eg, Eg), np.float32)
    for o in range(E):
        g, ol = divmod(o, E // groups)
        for il in range(Eg):
            for ky in range(K):
                for kx in range(K):
                    out[ky * K + kx, g, il, ol] = w[o, il, ky, kx]
    return out


def init_params(key, C, O, G, n_blocks, expansion, K, vsp):
    """MSR-style init; shapes match the PyTorch module's __init__."""
    E = C * expansion
    act_gain = BIASED_ACT_GAIN * vsp ** (-1.0 / (2 * 3 - 2))
    raw_blocks = []
    for _ in range(n_blocks):
        k1, k2, k3, k4, k5, key = jax.random.split(key, 6)
        w1 = jax.random.normal(k1, (E, C, 1, 1), jnp.float32) * (act_gain / math.sqrt(C))
        w2 = jax.random.normal(k2, (E, E // G, K, K), jnp.float32) * (
            act_gain / math.sqrt((E // G) * K * K))
        # NOTE: PyTorch zero-initializes LinearLayer3 (ActivationGain=0) and the
        # BiasedActivation biases; small non-zero values are used here so the
        # kernel's hot path is actually exercised (forward semantics unchanged).
        w3 = jax.random.normal(k3, (C, E, 1, 1), jnp.float32) * 0.02
        b1 = jax.random.normal(k4, (E,), jnp.float32) * 0.1
        b2 = jax.random.normal(k5, (E,), jnp.float32) * 0.1
        raw_blocks.append(dict(w1=w1, w2=w2, w3=w3, b1=b1, b2=b2))
    kd, kl, key = jax.random.split(key, 3)
    wd = jax.random.normal(kd, (C, 1, 4, 4), jnp.float32) * (1.0 / math.sqrt(16.0))
    wl = jax.random.normal(kl, (O, C), jnp.float32) * (1.0 / math.sqrt(C))
    return raw_blocks, dict(wd=wd, wl=wl)


def to_kernel_params(raw_blocks, raw_basis, G, B, H, W, K,
                     param_dtype=jnp.bfloat16):
    """Stack per-block weights along a leading n_blocks axis (selected per grid
    step via BlockSpec); build tap shifts/masks and the small basis weights.
    Matmul weights are stored in `param_dtype` (bf16 for production)."""
    assert H == 4 and W == 4, "DiscriminativeBasis requires 4x4 spatial maps"
    HW, T = H * W, K * K
    w1s, b1s, w2s, b2s, w3s = [], [], [], [], []
    for p in raw_blocks:
        E = p["w1"].shape[0]
        Eg = E // G
        w1s.append(np.transpose(np.asarray(p["w1"])[:, :, 0, 0]))      # (C, E)
        b1s.append(np.asarray(p["b1"]).reshape(1, -1))                 # (1, E)
        w2s.append(grouped_taps(p["w2"], G).reshape(T * G, Eg, Eg))    # (T*G, Eg, Eg)
        b2s.append(np.asarray(p["b2"]).reshape(1, -1))                 # (1, E)
        w3s.append(np.transpose(np.asarray(p["w3"])[:, :, 0, 0]))      # (E, C)
    C = raw_basis["wd"].shape[0]
    wd = np.transpose(np.asarray(raw_basis["wd"])[:, 0].reshape(C, HW))  # (HW, C)
    wl = np.transpose(np.asarray(raw_basis["wl"]))                       # (C, O)
    tap_shifts, masks = make_tap_aux(B, H, W, K)
    return dict(
        w1=jnp.asarray(np.stack(w1s), dtype=param_dtype),
        b1=jnp.asarray(np.stack(b1s), dtype=jnp.float32),
        w2=jnp.asarray(np.stack(w2s), dtype=param_dtype),
        b2=jnp.asarray(np.stack(b2s), dtype=jnp.float32),
        w3=jnp.asarray(np.stack(w3s), dtype=param_dtype),
        wd=jnp.asarray(wd, dtype=jnp.float32),        # elementwise -> keep f32
        wl=jnp.asarray(wl, dtype=param_dtype),
        masks=jnp.asarray(masks, dtype=jnp.float32),  # (N, T)
        tap_shifts=tap_shifts,                        # static
        groups=G,                                     # static
    )


# ------------------------- pure-JAX reference --------------------------------

def ref_forward(x_nchw, raw_blocks, raw_basis, G):
    dn = ("NCHW", "OIHW", "NCHW")
    x = x_nchw.astype(jnp.float32)
    for p in raw_blocks:
        y = lax.conv_general_dilated(x, p["w1"], (1, 1), [(0, 0), (0, 0)],
                                     dimension_numbers=dn)
        y = _leaky(y + p["b1"][None, :, None, None])
        pad = (p["w2"].shape[-1] - 1) // 2
        y = lax.conv_general_dilated(y, p["w2"], (1, 1), [(pad, pad), (pad, pad)],
                                     dimension_numbers=dn, feature_group_count=G)
        y = _leaky(y + p["b2"][None, :, None, None])
        y = lax.conv_general_dilated(y, p["w3"], (1, 1), [(0, 0), (0, 0)],
                                     dimension_numbers=dn)
        x = x + y
    C = x.shape[1]
    b = lax.conv_general_dilated(x, raw_basis["wd"], (1, 1), [(0, 0), (0, 0)],
                                 dimension_numbers=dn, feature_group_count=C)
    b = b.reshape(x.shape[0], -1)
    return b @ raw_basis["wl"].T


# --------------------------------- main ---------------------------------------

if __name__ == "__main__":
    # Small but structurally faithful shapes.  H = W = 4 is required by the
    # DiscriminativeBasis transition; B = 16 gives two whole-image row tiles of
    # 8 images each, exercising the "parallel" megacore axis and the 8-sublane
    # output-block constraint.
    B, C, O = 16, 16, 32         # batch, InputChannels, OutputChannels (OutputDimension)
    H = W = 4
    G = 2                        # Cardinality
    n_blocks = 2                 # NumberOfBlocks
    expansion = 2                # ExpansionFactor (E = 32)
    K = 3                        # KernelSize
    vsp = n_blocks               # VarianceScalingParameter

    key = jax.random.PRNGKey(0)
    kx, kp_key = jax.random.split(key)
    x = jax.random.normal(kx, (B, C, H, W), jnp.float32)   # NCHW, like the PyTorch module

    raw_blocks, raw_basis = init_params(kp_key, C, O, G, n_blocks, expansion, K, vsp)
    ref = ref_forward(x, raw_blocks, raw_basis, G)
    ref = jax.block_until_ready(ref)

    # Strict f32 check, then the production bf16-matmul path with looser tolerance.
    for dtype, tol in ((jnp.float32, 1e-4), (jnp.bfloat16, 5e-2)):
        kparams = to_kernel_params(raw_blocks, raw_basis, G, B, H, W, K,
                                   param_dtype=dtype)
        out = discriminator_stage(x, kparams, imgs_per_tile=8)  # 2 parallel row tiles
        out = jax.block_until_ready(out)
        np.testing.assert_allclose(np.asarray(out), np.asarray(ref),
                                   rtol=tol, atol=tol)

    print("KERNEL_OK")
</pallas_src>

<mosaic_0001>
module attributes {stable_mosaic.version = 11 : i64} {
  func.func @_stage_kernel(%arg0: i32, %arg1: i32, %arg2: memref<128x16xf32, #tpu.memory_space<vmem>>, %arg3: memref<128x9xf32, #tpu.memory_space<vmem>>, %arg4: memref<1x16x32xf32, #tpu.memory_space<vmem>>, %arg5: memref<1x1x32xf32, #tpu.memory_space<vmem>>, %arg6: memref<1x18x16x16xf32, #tpu.memory_space<vmem>>, %arg7: memref<1x1x32xf32, #tpu.memory_space<vmem>>, %arg8: memref<1x32x16xf32, #tpu.memory_space<vmem>>, %arg9: memref<16x16xf32, #tpu.memory_space<vmem>>, %arg10: memref<16x32xf32, #tpu.memory_space<vmem>>, %arg11: memref<8x32xf32, #tpu.memory_space<vmem>>, %arg12: memref<128x16xf32, #tpu.memory_space<vmem>>, %arg13: memref<138x32xf32, #tpu.memory_space<vmem>>) attributes {dimension_semantics = [#tpu.dimension_semantics<parallel>, #tpu.dimension_semantics<arbitrary>], iteration_bounds = array<i64: 2, 2>, scalar_prefetch = 0 : i64, scratch_operands = 2 : i64, tpu.core_type = #tpu.core_type<tc>, window_params = [{transform_indices = @transform_0, window_bounds = array<i64: 128, 16>}, {transform_indices = @transform_1, window_bounds = array<i64: 128, 9>}, {transform_indices = @transform_2, window_bounds = array<i64: 1, 16, 32>}, {transform_indices = @transform_3, window_bounds = array<i64: 1, 1, 32>}, {transform_indices = @transform_4, window_bounds = array<i64: 1, 18, 16, 16>}, {transform_indices = @transform_5, window_bounds = array<i64: 1, 1, 32>}, {transform_indices = @transform_6, window_bounds = array<i64: 1, 32, 16>}, {pipeline_mode = #tpu.pipeline_mode<synchronous>, transform_indices = @transform_7, window_bounds = array<i64: 16, 16>}, {pipeline_mode = #tpu.pipeline_mode<synchronous>, transform_indices = @transform_8, window_bounds = array<i64: 16, 32>}, {transform_indices = @transform_9, window_bounds = array<i64: 8, 32>}]} {
    %c0_i32 = arith.constant 0 : i32
    %0 = arith.cmpi eq, %arg1, %c0_i32 : i32
    %1 = arith.extui %0 : i1 to i32
    %c0_i32_0 = arith.constant 0 : i32
    %2 = arith.cmpi ne, %1, %c0_i32_0 : i32
    scf.if %2 {
      %c0_119 = arith.constant 0 : index
      %c0_120 = arith.constant 0 : index
      %164 = vector.load %arg2[%c0_119, %c0_120] : memref<128x16xf32, #tpu.memory_space<vmem>>, vector<128x16xf32>
      %c0_121 = arith.constant 0 : index
      %c0_122 = arith.constant 0 : index
      %165 = vector.load %arg12[%c0_121, %c0_122] : memref<128x16xf32, #tpu.memory_space<vmem>>, vector<128x16xf32>
      tpu.vector_store %arg12[%c0_121, %c0_122], %164 {strides = array<i32>} : memref<128x16xf32, #tpu.memory_space<vmem>>, vector<128x16xf32>,
      %cst_123 = arith.constant 0.000000e+00 : f32
      %166 = vector.broadcast %cst_123 : f32 to vector<5x32xf32>
      %c0_124 = arith.constant 0 : index
      %c0_125 = arith.constant 0 : index
      %167 = vector.load %arg13[%c0_124, %c0_125] : memref<138x32xf32, #tpu.memory_space<vmem>>, vector<5x32xf32>
      tpu.vector_store %arg13[%c0_124, %c0_125], %166 {strides = array<i32>} : memref<138x32xf32, #tpu.memory_space<vmem>>, vector<5x32xf32>,
      %c133 = arith.constant 133 : index
      %c0_126 = arith.constant 0 : index
      %168 = vector.load %arg13[%c133, %c0_126] : memref<138x32xf32, #tpu.memory_space<vmem>>, vector<5x32xf32>
      tpu.vector_store %arg13[%c133, %c0_126], %166 {strides = array<i32>} : memref<138x32xf32, #tpu.memory_space<vmem>>, vector<5x32xf32>,
    } else {
    }
    %c0 = arith.constant 0 : index
    %c0_1 = arith.constant 0 : index
    %3 = vector.load %arg12[%c0, %c0_1] : memref<128x16xf32, #tpu.memory_space<vmem>>, vector<128x16xf32>
    %c0_2 = arith.constant 0 : index
    %c0_3 = arith.constant 0 : index
    %4 = vector.load %arg3[%c0_2, %c0_3] : memref<128x9xf32, #tpu.memory_space<vmem>>, vector<128x9xf32>
    %c0_4 = arith.constant 0 : index
    %c0_5 = arith.constant 0 : index
    %c0_6 = arith.constant 0 : index
    %5 = vector.load %arg4[%c0_4, %c0_5, %c0_6] : memref<1x16x32xf32, #tpu.memory_space<vmem>>, vector<1x16x32xf32>
    %6 = vector.shape_cast %5 : vector<1x16x32xf32> to vector<16x32xf32>
    %cst = arith.constant dense<0.000000e+00> : vector<128x32xf32>
    %7 = tpu.matmul %3, %6, %cst {dimension_numbers = #tpu.dot_dimension_numbers<[1], [0], [0], [1], [0, 0, 1, 1], [], []>} : vector<128x16xf32>, vector<16x32xf32>, vector<128x32xf32> -> vector<128x32xf32>
    %c0_7 = arith.constant 0 : index
    %c0_8 = arith.constant 0 : index
    %c0_9 = arith.constant 0 : index
    %8 = vector.load %arg5[%c0_7, %c0_8, %c0_9] : memref<1x1x32xf32, #tpu.memory_space<vmem>>, vector<1x1x32xf32>
    %9 = vector.shape_cast %8 : vector<1x1x32xf32> to vector<1x32xf32>
    %10 = vector.broadcast %9 : vector<1x32xf32> to vector<128x32xf32>
    %11 = arith.addf %7, %10 : vector<128x32xf32>
    %cst_10 = arith.constant 0.000000e+00 : f32
    %12 = vector.broadcast %cst_10 : f32 to vector<128x32xf32>
    %13 = arith.cmpf oge, %11, %12 : vector<128x32xf32>
    %cst_11 = arith.constant 2.000000e-01 : f32
    %14 = vector.broadcast %cst_11 : f32 to vector<128x32xf32>
    %15 = arith.mulf %14, %11 : vector<128x32xf32>
    %16 = arith.select %13, %11, %15 : vector<128x32xi1>, vector<128x32xf32>
    %c5 = arith.constant 5 : index
    %c0_12 = arith.constant 0 : index
    %17 = vector.load %arg13[%c5, %c0_12] : memref<138x32xf32, #tpu.memory_space<vmem>>, vector<128x32xf32>
    tpu.vector_store %arg13[%c5, %c0_12], %16 {strides = array<i32>} : memref<138x32xf32, #tpu.memory_space<vmem>>, vector<128x32xf32>,
    %cst_13 = arith.constant 0.000000e+00 : f32
    %18 = vector.broadcast %cst_13 : f32 to vector<128x16xf32>
    %cst_14 = arith.constant 0.000000e+00 : f32
    %19 = vector.broadcast %cst_14 : f32 to vector<128x16xf32>
    %c0_15 = arith.constant 0 : index
    %c0_16 = arith.constant 0 : index
    %20 = vector.load %arg13[%c0_15, %c0_16] : memref<138x32xf32, #tpu.memory_space<vmem>>, vector<128x32xf32>
    %21 = vector.extract_strided_slice %4 {offsets = [0, 0], sizes = [128, 1], strides = [1, 1]} : vector<128x9xf32> to vector<128x1xf32>
    %22 = vector.broadcast %21 : vector<128x1xf32> to vector<128x32xf32>
    %23 = arith.mulf %20, %22 : vector<128x32xf32>
    %24 = vector.extract_strided_slice %23 {offsets = [0, 0], sizes = [128, 16], strides = [1, 1]} : vector<128x32xf32> to vector<128x16xf32>
    %c0_17 = arith.constant 0 : index
    %c0_18 = arith.constant 0 : index
    %c0_19 = arith.constant 0 : index
    %c0_20 = arith.constant 0 : index
    %25 = vector.load %arg6[%c0_17, %c0_18, %c0_19, %c0_20] : memref<1x18x16x16xf32, #tpu.memory_space<vmem>>, vector<1x1x16x16xf32>
    %26 = vector.shape_cast %25 : vector<1x1x16x16xf32> to vector<16x16xf32>
    %cst_21 = arith.constant dense<0.000000e+00> : vector<128x16xf32>
    %27 = tpu.matmul %24, %26, %cst_21 {dimension_numbers = #tpu.dot_dimension_numbers<[1], [0], [0], [1], [0, 0, 1, 1], [], []>} : vector<128x16xf32>, vector<16x16xf32>, vector<128x16xf32> -> vector<128x16xf32>
    %28 = arith.addf %18, %27 : vector<128x16xf32>
    %29 = vector.extract_strided_slice %23 {offsets = [0, 16], sizes = [128, 16], strides = [1, 1]} : vector<128x32xf32> to vector<128x16xf32>
    %c0_22 = arith.constant 0 : index
    %c1 = arith.constant 1 : index
    %c0_23 = arith.constant 0 : index
    %c0_24 = arith.constant 0 : index
    %30 = vector.load %arg6[%c0_22, %c1, %c0_23, %c0_24] : memref<1x18x16x16xf32, #tpu.memory_space<vmem>>, vector<1x1x16x16xf32>
    %31 = vector.shape_cast %30 : vector<1x1x16x16xf32> to vector<16x16xf32>
    %cst_25 = arith.constant dense<0.000000e+00> : vector<128x16xf32>
    %32 = tpu.matmul %29, %31, %cst_25 {dimension_numbers = #tpu.dot_dimension_numbers<[1], [0], [0], [1], [0, 0, 1, 1], [], []>} : vector<128x16xf32>, vector<16x16xf32>, vector<128x16xf32> -> vector<128x16xf32>
    %33 = arith.addf %19, %32 : vector<128x16xf32>
    %c1_26 = arith.constant 1 : index
    %c0_27 = arith.constant 0 : index
    %34 = vector.load %arg13[%c1_26, %c0_27] : memref<138x32xf32, #tpu.memory_space<vmem>>, vector<128x32xf32>
    %35 = vector.extract_strided_slice %4 {offsets = [0, 1], sizes = [128, 1], strides = [1, 1]} : vector<128x9xf32> to vector<128x1xf32>
    %36 = vector.broadcast %35 : vector<128x1xf32> to vector<128x32xf32>
    %37 = arith.mulf %34, %36 : vector<128x32xf32>
    %38 = vector.extract_strided_slice %37 {offsets = [0, 0], sizes = [128, 16], strides = [1, 1]} : vector<128x32xf32> to vector<128x16xf32>
    %c0_28 = arith.constant 0 : index
    %c2 = arith.constant 2 : index
    %c0_29 = arith.constant 0 : index
    %c0_30 = arith.constant 0 : index
    %39 = vector.load %arg6[%c0_28, %c2, %c0_29, %c0_30] : memref<1x18x16x16xf32, #tpu.memory_space<vmem>>, vector<1x1x16x16xf32>
    %40 = vector.shape_cast %39 : vector<1x1x16x16xf32> to vector<16x16xf32>
    %cst_31 = arith.constant dense<0.000000e+00> : vector<128x16xf32>
    %41 = tpu.matmul %38, %40, %cst_31 {dimension_numbers = #tpu.dot_dimension_numbers<[1], [0], [0], [1], [0, 0, 1, 1], [], []>} : vector<128x16xf32>, vector<16x16xf32>, vector<128x16xf32> -> vector<128x16xf32>
    %42 = arith.addf %28, %41 : vector<128x16xf32>
    %43 = vector.extract_strided_slice %37 {offsets = [0, 16], sizes = [128, 16], strides = [1, 1]} : vector<128x32xf32> to vector<128x16xf32>
    %c0_32 = arith.constant 0 : index
    %c3 = arith.constant 3 : index
    %c0_33 = arith.constant 0 : index
    %c0_34 = arith.constant 0 : index
    %44 = vector.load %arg6[%c0_32, %c3, %c0_33, %c0_34] : memref<1x18x16x16xf32, #tpu.memory_space<vmem>>, vector<1x1x16x16xf32>
    %45 = vector.shape_cast %44 : vector<1x1x16x16xf32> to vector<16x16xf32>
    %cst_35 = arith.constant dense<0.000000e+00> : vector<128x16xf32>
    %46 = tpu.matmul %43, %45, %cst_35 {dimension_numbers = #tpu.dot_dimension_numbers<[1], [0], [0], [1], [0, 0, 1, 1], [], []>} : vector<128x16xf32>, vector<16x16xf32>, vector<128x16xf32> -> vector<128x16xf32>
    %47 = arith.addf %33, %46 : vector<128x16xf32>
    %c2_36 = arith.constant 2 : index
    %c0_37 = arith.constant 0 : index
    %48 = vector.load %arg13[%c2_36, %c0_37] : memref<138x32xf32, #tpu.memory_space<vmem>>, vector<128x32xf32>
    %49 = vector.extract_strided_slice %4 {offsets = [0, 2], sizes = [128, 1], strides = [1, 1]} : vector<128x9xf32> to vector<128x1xf32>
    %50 = vector.broadcast %49 : vector<128x1xf32> to vector<128x32xf32>
    %51 = arith.mulf %48, %50 : vector<128x32xf32>
    %52 = vector.extract_strided_slice %51 {offsets = [0, 0], sizes = [128, 16], strides = [1, 1]} : vector<128x32xf32> to vector<128x16xf32>
    %c0_38 = arith.constant 0 : index
    %c4 = arith.constant 4 : index
    %c0_39 = arith.constant 0 : index
    %c0_40 = arith.constant 0 : index
    %53 = vector.load %arg6[%c0_38, %c4, %c0_39, %c0_40] : memref<1x18x16x16xf32, #tpu.memory_space<vmem>>, vector<1x1x16x16xf32>
    %54 = vector.shape_cast %53 : vector<1x1x16x16xf32> to vector<16x16xf32>
    %cst_41 = arith.constant dense<0.000000e+00> : vector<128x16xf32>
    %55 = tpu.matmul %52, %54, %cst_41 {dimension_numbers = #tpu.dot_dimension_numbers<[1], [0], [0], [1], [0, 0, 1, 1], [], []>} : vector<128x16xf32>, vector<16x16xf32>, vector<128x16xf32> -> vector<128x16xf32>
    %56 = arith.addf %42, %55 : vector<128x16xf32>
    %57 = vector.extract_strided_slice %51 {offsets = [0, 16], sizes = [128, 16], strides = [1, 1]} : vector<128x32xf32> to vector<128x16xf32>
    %c0_42 = arith.constant 0 : index
    %c5_43 = arith.constant 5 : index
    %c0_44 = arith.constant 0 : index
    %c0_45 = arith.constant 0 : index
    %58 = vector.load %arg6[%c0_42, %c5_43, %c0_44, %c0_45] : memref<1x18x16x16xf32, #tpu.memory_space<vmem>>, vector<1x1x16x16xf32>
    %59 = vector.shape_cast %58 : vector<1x1x16x16xf32> to vector<16x16xf32>
    %cst_46 = arith.constant dense<0.000000e+00> : vector<128x16xf32>
    %60 = tpu.matmul %57, %59, %cst_46 {dimension_numbers = #tpu.dot_dimension_numbers<[1], [0], [0], [1], [0, 0, 1, 1], [], []>} : vector<128x16xf32>, vector<16x16xf32>, vector<128x16xf32> -> vector<128x16xf32>
    %61 = arith.addf %47, %60 : vector<128x16xf32>
    %c4_47 = arith.constant 4 : index
    %c0_48 = arith.constant 0 : index
    %62 = vector.load %arg13[%c4_47, %c0_48] : memref<138x32xf32, #tpu.memory_space<vmem>>, vector<128x32xf32>
    %63 = vector.extract_strided_slice %4 {offsets = [0, 3], sizes = [128, 1], strides = [1, 1]} : vector<128x9xf32> to vector<128x1xf32>
    %64 = vector.broadcast %63 : vector<128x1xf32> to vector<128x32xf32>
    %65 = arith.mulf %62, %64 : vector<128x32xf32>
    %66 = vector.extract_strided_slice %65 {offsets = [0, 0], sizes = [128, 16], strides = [1, 1]} : vector<128x32xf32> to vector<128x16xf32>
    %c0_49 = arith.constant 0 : index
    %c6 = arith.constant 6 : index
    %c0_50 = arith.constant 0 : index
    %c0_51 = arith.constant 0 : index
    %67 = vector.load %arg6[%c0_49, %c6, %c0_50, %c0_51] : memref<1x18x16x16xf32, #tpu.memory_space<vmem>>, vector<1x1x16x16xf32>
    %68 = vector.shape_cast %67 : vector<1x1x16x16xf32> to vector<16x16xf32>
    %cst_52 = arith.constant dense<0.000000e+00> : vector<128x16xf32>
    %69 = tpu.matmul %66, %68, %cst_52 {dimension_numbers = #tpu.dot_dimension_numbers<[1], [0], [0], [1], [0, 0, 1, 1], [], []>} : vector<128x16xf32>, vector<16x16xf32>, vector<128x16xf32> -> vector<128x16xf32>
    %70 = arith.addf %56, %69 : vector<128x16xf32>
    %71 = vector.extract_strided_slice %65 {offsets = [0, 16], sizes = [128, 16], strides = [1, 1]} : vector<128x32xf32> to vector<128x16xf32>
    %c0_53 = arith.constant 0 : index
    %c7 = arith.constant 7 : index
    %c0_54 = arith.constant 0 : index
    %c0_55 = arith.constant 0 : index
    %72 = vector.load %arg6[%c0_53, %c7, %c0_54, %c0_55] : memref<1x18x16x16xf32, #tpu.memory_space<vmem>>, vector<1x1x16x16xf32>
    %73 = vector.shape_cast %72 : vector<1x1x16x16xf32> to vector<16x16xf32>
    %cst_56 = arith.constant dense<0.000000e+00> : vector<128x16xf32>
    %74 = tpu.matmul %71, %73, %cst_56 {dimension_numbers = #tpu.dot_dimension_numbers<[1], [0], [0], [1], [0, 0, 1, 1], [], []>} : vector<128x16xf32>, vector<16x16xf32>, vector<128x16xf32> -> vector<128x16xf32>
    %75 = arith.addf %61, %74 : vector<128x16xf32>
    %c5_57 = arith.constant 5 : index
    %c0_58 = arith.constant 0 : index
    %76 = vector.load %arg13[%c5_57, %c0_58] : memref<138x32xf32, #tpu.memory_space<vmem>>, vector<128x32xf32>
    %77 = vector.extract_strided_slice %4 {offsets = [0, 4], sizes = [128, 1], strides = [1, 1]} : vector<128x9xf32> to vector<128x1xf32>
    %78 = vector.broadcast %77 : vector<128x1xf32> to vector<128x32xf32>
    %79 = arith.mulf %76, %78 : vector<128x32xf32>
    %80 = vector.extract_strided_slice %79 {offsets = [0, 0], sizes = [128, 16], strides = [1, 1]} : vector<128x32xf32> to vector<128x16xf32>
    %c0_59 = arith.constant 0 : index
    %c8 = arith.constant 8 : index
    %c0_60 = arith.constant 0 : index
    %c0_61 = arith.constant 0 : index
    %81 = vector.load %arg6[%c0_59, %c8, %c0_60, %c0_61] : memref<1x18x16x16xf32, #tpu.memory_space<vmem>>, vector<1x1x16x16xf32>
    %82 = vector.shape_cast %81 : vector<1x1x16x16xf32> to vector<16x16xf32>
    %cst_62 = arith.constant dense<0.000000e+00> : vector<128x16xf32>
    %83 = tpu.matmul %80, %82, %cst_62 {dimension_numbers = #tpu.dot_dimension_numbers<[1], [0], [0], [1], [0, 0, 1, 1], [], []>} : vector<128x16xf32>, vector<16x16xf32>, vector<128x16xf32> -> vector<128x16xf32>
    %84 = arith.addf %70, %83 : vector<128x16xf32>
    %85 = vector.extract_strided_slice %79 {offsets = [0, 16], sizes = [128, 16], strides = [1, 1]} : vector<128x32xf32> to vector<128x16xf32>
    %c0_63 = arith.constant 0 : index
    %c9 = arith.constant 9 : index
    %c0_64 = arith.constant 0 : index
    %c0_65 = arith.constant 0 : index
    %86 = vector.load %arg6[%c0_63, %c9, %c0_64, %c0_65] : memref<1x18x16x16xf32, #tpu.memory_space<vmem>>, vector<1x1x16x16xf32>
    %87 = vector.shape_cast %86 : vector<1x1x16x16xf32> to vector<16x16xf32>
    %cst_66 = arith.constant dense<0.000000e+00> : vector<128x16xf32>
    %88 = tpu.matmul %85, %87, %cst_66 {dimension_numbers = #tpu.dot_dimension_numbers<[1], [0], [0], [1], [0, 0, 1, 1], [], []>} : vector<128x16xf32>, vector<16x16xf32>, vector<128x16xf32> -> vector<128x16xf32>
    %89 = arith.addf %75, %88 : vector<128x16xf32>
    %c6_67 = arith.constant 6 : index
    %c0_68 = arith.constant 0 : index
    %90 = vector.load %arg13[%c6_67, %c0_68] : memref<138x32xf32, #tpu.memory_space<vmem>>, vector<128x32xf32>
    %91 = vector.extract_strided_slice %4 {offsets = [0, 5], sizes = [128, 1], strides = [1, 1]} : vector<128x9xf32> to vector<128x1xf32>
    %92 = vector.broadcast %91 : vector<128x1xf32> to vector<128x32xf32>
    %93 = arith.mulf %90, %92 : vector<128x32xf32>
    %94 = vector.extract_strided_slice %93 {offsets = [0, 0], sizes = [128, 16], strides = [1, 1]} : vector<128x32xf32> to vector<128x16xf32>
    %c0_69 = arith.constant 0 : index
    %c10 = arith.constant 10 : index
    %c0_70 = arith.constant 0 : index
    %c0_71 = arith.constant 0 : index
    %95 = vector.load %arg6[%c0_69, %c10, %c0_70, %c0_71] : memref<1x18x16x16xf32, #tpu.memory_space<vmem>>, vector<1x1x16x16xf32>
    %96 = vector.shape_cast %95 : vector<1x1x16x16xf32> to vector<16x16xf32>
    %cst_72 = arith.constant dense<0.000000e+00> : vector<128x16xf32>
    %97 = tpu.matmul %94, %96, %cst_72 {dimension_numbers = #tpu.dot_dimension_numbers<[1], [0], [0], [1], [0, 0, 1, 1], [], []>} : vector<128x16xf32>, vector<16x16xf32>, vector<128x16xf32> -> vector<128x16xf32>
    %98 = arith.addf %84, %97 : vector<128x16xf32>
    %99 = vector.extract_strided_slice %93 {offsets = [0, 16], sizes = [128, 16], strides = [1, 1]} : vector<128x32xf32> to vector<128x16xf32>
    %c0_73 = arith.constant 0 : index
    %c11 = arith.constant 11 : index
    %c0_74 = arith.constant 0 : index
    %c0_75 = arith.constant 0 : index
    %100 = vector.load %arg6[%c0_73, %c11, %c0_74, %c0_75] : memref<1x18x16x16xf32, #tpu.memory_space<vmem>>, vector<1x1x16x16xf32>
    %101 = vector.shape_cast %100 : vector<1x1x16x16xf32> to vector<16x16xf32>
    %cst_76 = arith.constant dense<0.000000e+00> : vector<128x16xf32>
    %102 = tpu.matmul %99, %101, %cst_76 {dimension_numbers = #tpu.dot_dimension_numbers<[1], [0], [0], [1], [0, 0, 1, 1], [], []>} : vector<128x16xf32>, vector<16x16xf32>, vector<128x16xf32> -> vector<128x16xf32>
    %103 = arith.addf %89, %102 : vector<128x16xf32>
    %c8_77 = arith.constant 8 : index
    %c0_78 = arith.constant 0 : index
    %104 = vector.load %arg13[%c8_77, %c0_78] : memref<138x32xf32, #tpu.memory_space<vmem>>, vector<128x32xf32>
    %105 = vector.extract_strided_slice %4 {offsets = [0, 6], sizes = [128, 1], strides = [1, 1]} : vector<128x9xf32> to vector<128x1xf32>
    %106 = vector.broadcast %105 : vector<128x1xf32> to vector<128x32xf32>
    %107 = arith.mulf %104, %106 : vector<128x32xf32>
    %108 = vector.extract_strided_slice %107 {offsets = [0, 0], sizes = [128, 16], strides = [1, 1]} : vector<128x32xf32> to vector<128x16xf32>
    %c0_79 = arith.constant 0 : index
    %c12 = arith.constant 12 : index
    %c0_80 = arith.constant 0 : index
    %c0_81 = arith.constant 0 : index
    %109 = vector.load %arg6[%c0_79, %c12, %c0_80, %c0_81] : memref<1x18x16x16xf32, #tpu.memory_space<vmem>>, vector<1x1x16x16xf32>
    %110 = vector.shape_cast %109 : vector<1x1x16x16xf32> to vector<16x16xf32>
    %cst_82 = arith.constant dense<0.000000e+00> : vector<128x16xf32>
    %111 = tpu.matmul %108, %110, %cst_82 {dimension_numbers = #tpu.dot_dimension_numbers<[1], [0], [0], [1], [0, 0, 1, 1], [], []>} : vector<128x16xf32>, vector<16x16xf32>, vector<128x16xf32> -> vector<128x16xf32>
    %112 = arith.addf %98, %111 : vector<128x16xf32>
    %113 = vector.extract_strided_slice %107 {offsets = [0, 16], sizes = [128, 16], strides = [1, 1]} : vector<128x32xf32> to vector<128x16xf32>
    %c0_83 = arith.constant 0 : index
    %c13 = arith.constant 13 : index
    %c0_84 = arith.constant 0 : index
    %c0_85 = arith.constant 0 : index
    %114 = vector.load %arg6[%c0_83, %c13, %c0_84, %c0_85] : memref<1x18x16x16xf32, #tpu.memory_space<vmem>>, vector<1x1x16x16xf32>
    %115 = vector.shape_cast %114 : vector<1x1x16x16xf32> to vector<16x16xf32>
    %cst_86 = arith.constant dense<0.000000e+00> : vector<128x16xf32>
    %116 = tpu.matmul %113, %115, %cst_86 {dimension_numbers = #tpu.dot_dimension_numbers<[1], [0], [0], [1], [0, 0, 1, 1], [], []>} : vector<128x16xf32>, vector<16x16xf32>, vector<128x16xf32> -> vector<128x16xf32>
    %117 = arith.addf %103, %116 : vector<128x16xf32>
    %c9_87 = arith.constant 9 : index
    %c0_88 = arith.constant 0 : index
    %118 = vector.load %arg13[%c9_87, %c0_88] : memref<138x32xf32, #tpu.memory_space<vmem>>, vector<128x32xf32>
    %119 = vector.extract_strided_slice %4 {offsets = [0, 7], sizes = [128, 1], strides = [1, 1]} : vector<128x9xf32> to vector<128x1xf32>
    %120 = vector.broadcast %119 : vector<128x1xf32> to vector<128x32xf32>
    %121 = arith.mulf %118, %120 : vector<128x32xf32>
    %122 = vector.extract_strided_slice %121 {offsets = [0, 0], sizes = [128, 16], strides = [1, 1]} : vector<128x32xf32> to vector<128x16xf32>
    %c0_89 = arith.constant 0 : index
    %c14 = arith.constant 14 : index
    %c0_90 = arith.constant 0 : index
    %c0_91 = arith.constant 0 : index
    %123 = vector.load %arg6[%c0_89, %c14, %c0_90, %c0_91] : memref<1x18x16x16xf32, #tpu.memory_space<vmem>>, vector<1x1x16x16xf32>
    %124 = vector.shape_cast %123 : vector<1x1x16x16xf32> to vector<16x16xf32>
    %cst_92 = arith.constant dense<0.000000e+00> : vector<128x16xf32>
    %125 = tpu.matmul %122, %124, %cst_92 {dimension_numbers = #tpu.dot_dimension_numbers<[1], [0], [0], [1], [0, 0, 1, 1], [], []>} : vector<128x16xf32>, vector<16x16xf32>, vector<128x16xf32> -> vector<128x16xf32>
    %126 = arith.addf %112, %125 : vector<128x16xf32>
    %127 = vector.extract_strided_slice %121 {offsets = [0, 16], sizes = [128, 16], strides = [1, 1]} : vector<128x32xf32> to vector<128x16xf32>
    %c0_93 = arith.constant 0 : index
    %c15 = arith.constant 15 : index
    %c0_94 = arith.constant 0 : index
    %c0_95 = arith.constant 0 : index
    %128 = vector.load %arg6[%c0_93, %c15, %c0_94, %c0_95] : memref<1x18x16x16xf32, #tpu.memory_space<vmem>>, vector<1x1x16x16xf32>
    %129 = vector.shape_cast %128 : vector<1x1x16x16xf32> to vector<16x16xf32>
    %cst_96 = arith.constant dense<0.000000e+00> : vector<128x16xf32>
    %130 = tpu.matmul %127, %129, %cst_96 {dimension_numbers = #tpu.dot_dimension_numbers<[1], [0], [0], [1], [0, 0, 1, 1], [], []>} : vector<128x16xf32>, vector<16x16xf32>, vector<128x16xf32> -> vector<128x16xf32>
    %131 = arith.addf %117, %130 : vector<128x16xf32>
    %c10_97 = arith.constant 10 : index
    %c0_98 = arith.constant 0 : index
    %132 = vector.load %arg13[%c10_97, %c0_98] : memref<138x32xf32, #tpu.memory_space<vmem>>, vector<128x32xf32>
    %133 = vector.extract_strided_slice %4 {offsets = [0, 8], sizes = [128, 1], strides = [1, 1]} : vector<128x9xf32> to vector<128x1xf32>
    %134 = vector.broadcast %133 : vector<128x1xf32> to vector<128x32xf32>
    %135 = arith.mulf %132, %134 : vector<128x32xf32>
    %136 = vector.extract_strided_slice %135 {offsets = [0, 0], sizes = [128, 16], strides = [1, 1]} : vector<128x32xf32> to vector<128x16xf32>
    %c0_99 = arith.constant 0 : index
    %c16 = arith.constant 16 : index
    %c0_100 = arith.constant 0 : index
    %c0_101 = arith.constant 0 : index
    %137 = vector.load %arg6[%c0_99, %c16, %c0_100, %c0_101] : memref<1x18x16x16xf32, #tpu.memory_space<vmem>>, vector<1x1x16x16xf32>
    %138 = vector.shape_cast %137 : vector<1x1x16x16xf32> to vector<16x16xf32>
    %cst_102 = arith.constant dense<0.000000e+00> : vector<128x16xf32>
    %139 = tpu.matmul %136, %138, %cst_102 {dimension_numbers = #tpu.dot_dimension_numbers<[1], [0], [0], [1], [0, 0, 1, 1], [], []>} : vector<128x16xf32>, vector<16x16xf32>, vector<128x16xf32> -> vector<128x16xf32>
    %140 = arith.addf %126, %139 : vector<128x16xf32>
    %141 = vector.extract_strided_slice %135 {offsets = [0, 16], sizes = [128, 16], strides = [1, 1]} : vector<128x32xf32> to vector<128x16xf32>
    %c0_103 = arith.constant 0 : index
    %c17 = arith.constant 17 : index
    %c0_104 = arith.constant 0 : index
    %c0_105 = arith.constant 0 : index
    %142 = vector.load %arg6[%c0_103, %c17, %c0_104, %c0_105] : memref<1x18x16x16xf32, #tpu.memory_space<vmem>>, vector<1x1x16x16xf32>
    %143 = vector.shape_cast %142 : vector<1x1x16x16xf32> to vector<16x16xf32>
    %cst_106 = arith.constant dense<0.000000e+00> : vector<128x16xf32>
    %144 = tpu.matmul %141, %143, %cst_106 {dimension_numbers = #tpu.dot_dimension_numbers<[1], [0], [0], [1], [0, 0, 1, 1], [], []>} : vector<128x16xf32>, vector<16x16xf32>, vector<128x16xf32> -> vector<128x16xf32>
    %145 = arith.addf %131, %144 : vector<128x16xf32>
    %146 = tpu.concatenate %140, %145 in 1 : vector<128x16xf32>, vector<128x16xf32> -> vector<128x32xf32>
    %c0_107 = arith.constant 0 : index
    %c0_108 = arith.constant 0 : index
    %c0_109 = arith.constant 0 : index
    %147 = vector.load %arg7[%c0_107, %c0_108, %c0_109] : memref<1x1x32xf32, #tpu.memory_space<vmem>>, vector<1x1x32xf32>
    %148 = vector.shape_cast %147 : vector<1x1x32xf32> to vector<1x32xf32>
    %149 = vector.broadcast %148 : vector<1x32xf32> to vector<128x32xf32>
    %150 = arith.addf %146, %149 : vector<128x32xf32>
    %cst_110 = arith.constant 0.000000e+00 : f32
    %151 = vector.broadcast %cst_110 : f32 to vector<128x32xf32>
    %152 = arith.cmpf oge, %150, %151 : vector<128x32xf32>
    %cst_111 = arith.constant 2.000000e-01 : f32
    %153 = vector.broadcast %cst_111 : f32 to vector<128x32xf32>
    %154 = arith.mulf %153, %150 : vector<128x32xf32>
    %155 = arith.select %152, %150, %154 : vector<128x32xi1>, vector<128x32xf32>
    %c0_112 = arith.constant 0 : index
    %c0_113 = arith.constant 0 : index
    %c0_114 = arith.constant 0 : index
    %156 = vector.load %arg8[%c0_112, %c0_113, %c0_114] : memref<1x32x16xf32, #tpu.memory_space<vmem>>, vector<1x32x16xf32>
    %157 = vector.shape_cast %156 : vector<1x32x16xf32> to vector<32x16xf32>
    %cst_115 = arith.constant dense<0.000000e+00> : vector<128x16xf32>
    %158 = tpu.matmul %155, %157, %cst_115 {dimension_numbers = #tpu.dot_dimension_numbers<[1], [0], [0], [1], [0, 0, 1, 1], [], []>} : vector<128x32xf32>, vector<32x16xf32>, vector<128x16xf32> -> vector<128x16xf32>
    %159 = arith.addf %3, %158 : vector<128x16xf32>
    %c0_116 = arith.constant 0 : index
    %c0_117 = arith.constant 0 : index
    %160 = vector.load %arg12[%c0_116, %c0_117] : memref<128x16xf32, #tpu.memory_space<vmem>>, vector<128x16xf32>
    tpu.vector_store %arg12[%c0_116, %c0_117], %159 {strides = array<i32>} : memref<128x16xf32, #tpu.memory_space<vmem>>, vector<128x16xf32>,
    %c1_i32 = arith.constant 1 : i32
    %161 = arith.cmpi eq, %arg1, %c1_i32 : i32
    %162 = arith.extui %161 : i1 to i32
    %c0_i32_118 = arith.constant 0 : i32
    %163 = arith.cmpi ne, %162, %c0_i32_118 : i32
    scf.if %163 {
      %c0_119 = arith.constant 0 : index
      %c0_120 = arith.constant 0 : index
      %164 = vector.load %arg12[%c0_119, %c0_120] : memref<128x16xf32, #tpu.memory_space<vmem>>, vector<128x16xf32>
      %165 = vector.shape_cast %164 : vector<128x16xf32> to vector<8x16x16xf32>
      %c0_121 = arith.constant 0 : index
      %c0_122 = arith.constant 0 : index
      %166 = vector.load %arg9[%c0_121, %c0_122] : memref<16x16xf32, #tpu.memory_space<vmem>>, vector<16x16xf32>
      %167 = vector.shape_cast %166 : vector<16x16xf32> to vector<1x16x16xf32>
      %168 = vector.broadcast %167 : vector<1x16x16xf32> to vector<8x16x16xf32>
      %169 = arith.mulf %165, %168 : vector<8x16x16xf32>
      %cst_123 = arith.constant dense<0.000000e+00> : vector<8x16xf32>
      %170 = vector.multi_reduction <add>, %169, %cst_123 [1] : vector<8x16x16xf32> to vector<8x16xf32>
      %c0_124 = arith.constant 0 : index
      %c0_125 = arith.constant 0 : index
      %171 = vector.load %arg10[%c0_124, %c0_125] : memref<16x32xf32, #tpu.memory_space<vmem>>, vector<16x32xf32>
      %cst_126 = arith.constant dense<0.000000e+00> : vector<8x32xf32>
      %172 = tpu.matmul %170, %171, %cst_126 {dimension_numbers = #tpu.dot_dimension_numbers<[1], [0], [0], [1], [0, 0, 1, 1], [], []>} : vector<8x16xf32>, vector<16x32xf32>, vector<8x32xf32> -> vector<8x32xf32>
      %c0_127 = arith.constant 0 : index
      %c0_128 = arith.constant 0 : index
      %173 = vector.load %arg11[%c0_127, %c0_128] : memref<8x32xf32, #tpu.memory_space<vmem>>, vector<8x32xf32>
      tpu.vector_store %arg11[%c0_127, %c0_128], %172 {strides = array<i32>} : memref<8x32xf32, #tpu.memory_space<vmem>>, vector<8x32xf32>,
    } else {
    }
    return
  }
  func.func @transform_0(%arg0: i32, %arg1: i32) -> (i32, i32) {
    %c0_i32 = arith.constant 0 : i32
    %c0_i32_0 = arith.constant 0 : i32
    return %arg0, %c0_i32 : i32, i32
  }
  func.func @transform_1(%arg0: i32, %arg1: i32) -> (i32, i32) {
    %c0_i32 = arith.constant 0 : i32
    %c0_i32_0 = arith.constant 0 : i32
    return %arg0, %c0_i32 : i32, i32
  }
  func.func @transform_2(%arg0: i32, %arg1: i32) -> (i32, i32, i32) {
    %c0_i32 = arith.constant 0 : i32
    %c0_i32_0 = arith.constant 0 : i32
    %c0_i32_1 = arith.constant 0 : i32
    return %arg1, %c0_i32, %c0_i32_0 : i32, i32, i32
  }
  func.func @transform_3(%arg0: i32, %arg1: i32) -> (i32, i32, i32) {
    %c0_i32 = arith.constant 0 : i32
    %c0_i32_0 = arith.constant 0 : i32
    %c0_i32_1 = arith.constant 0 : i32
    return %arg1, %c0_i32, %c0_i32_0 : i32, i32, i32
  }
  func.func @transform_4(%arg0: i32, %arg1: i32) -> (i32, i32, i32, i32) {
    %c0_i32 = arith.constant 0 : i32
    %c0_i32_0 = arith.constant 0 : i32
    %c0_i32_1 = arith.constant 0 : i32
    %c0_i32_2 = arith.constant 0 : i32
    return %arg1, %c0_i32, %c0_i32_0, %c0_i32_1 : i32, i32, i32, i32
  }
  func.func @transform_5(%arg0: i32, %arg1: i32) -> (i32, i32, i32) {
    %c0_i32 = arith.constant 0 : i32
    %c0_i32_0 = arith.constant 0 : i32
    %c0_i32_1 = arith.constant 0 : i32
    return %arg1, %c0_i32, %c0_i32_0 : i32, i32, i32
  }
  func.func @transform_6(%arg0: i32, %arg1: i32) -> (i32, i32, i32) {
    %c0_i32 = arith.constant 0 : i32
    %c0_i32_0 = arith.constant 0 : i32
    %c0_i32_1 = arith.constant 0 : i32
    return %arg1, %c0_i32, %c0_i32_0 : i32, i32, i32
  }
  func.func @transform_7(%arg0: i32, %arg1: i32) -> (i32, i32) {
    %c0_i32 = arith.constant 0 : i32
    %c0_i32_0 = arith.constant 0 : i32
    %c0_i32_1 = arith.constant 0 : i32
    return %c0_i32, %c0_i32_0 : i32, i32
  }
  func.func @transform_8(%arg0: i32, %arg1: i32) -> (i32, i32) {
    %c0_i32 = arith.constant 0 : i32
    %c0_i32_0 = arith.constant 0 : i32
    %c0_i32_1 = arith.constant 0 : i32
    return %c0_i32, %c0_i32_0 : i32, i32
  }
  func.func @transform_9(%arg0: i32, %arg1: i32) -> (i32, i32) {
    %c0_i32 = arith.constant 0 : i32
    %c0_i32_0 = arith.constant 0 : i32
    return %arg0, %c0_i32 : i32, i32
  }
}

</mosaic_0001>

<llo_original>
// kernel: tpu_custom_call.1
$region0: #{tpu_custom_call.1}
  #allocation0 [shape = 'u32[]', space=smem, size = 0x4, offset = 0x4, fixed_abs, tag = 'smem constant byte address 0x4 - core index']
  #allocation1 [shape = 'u32[144,128]{1,0:T(1,128)}', space=vmem, size = 0x12000, scoped, tag = 'internal scratch']
  #allocation2 [shape = 'f32[128,16]{1,0:T(8,128)}', space=vmem, size = 0x10000, scoped, tag = 'scratch operand']
  #allocation3 [shape = 'f32[138,32]{1,0:T(8,128)}', space=vmem, size = 0x12000, scoped, tag = 'scratch operand']
  %s0 = inlined_call_operand.vmem [shape: f32[256,16], index: 0, kind: input, shape index: {}]
  %s1 = inlined_call_operand.vmem [shape: f32[256,9], index: 1, kind: input, shape index: {}]
  %s2 = inlined_call_operand.vmem [shape: f32[2,16,32], index: 2, kind: input, shape index: {}]
  %s3 = inlined_call_operand.vmem [shape: f32[2,1,32], index: 3, kind: input, shape index: {}]
  %s4 = inlined_call_operand.vmem [shape: f32[2,18,16,16], index: 4, kind: input, shape index: {}]
  %s5 = inlined_call_operand.vmem [shape: f32[2,1,32], index: 5, kind: input, shape index: {}]
  %s6 = inlined_call_operand.vmem [shape: f32[2,32,16], index: 6, kind: input, shape index: {}]
  %s7 = inlined_call_operand.vmem [shape: f32[16,16], index: 7, kind: input, shape index: {}]
  %s8 = inlined_call_operand.vmem [shape: f32[16,32], index: 8, kind: input, shape index: {}]
  %s9 = inlined_call_operand.hbm [shape: f32[16,32], index: 9, kind: output, shape index: {}]
  %s10 = sld [smem:[#allocation0]]
  $region77: #{tpu_custom_call.1} parent=0
    _
  %s12 = ssub.s32 1, %s10
  %s13 = scalar_select 0, %s12, %s10
  $region1: #{tpu_custom_call.1} parent=0
    #allocation4 [shape = 'u8[8192]{0}', space=vmem, size = 0x2000, scoped, tag = 'output window, operand 0']
    #allocation5 [shape = 's32[2]{0}', space=sflag, size = 0x8, scoped, tag = 'scoped memory for tpu_custom_call.1']
    %14 = vsyncpa [#allocation5], 0
    %s15 = scalar_lea.sflag [#allocation5], 1
    %16 = vsyncpa %s15, 0
    loop: start=0, step=1, limit=6
    $region2: #{tpu_custom_call.1} parent=1 // loop_pre_header
      _
    $region3: #{tpu_custom_call.1} parent=1 // loop_header
      %s18 = sphi 0, %s22
      %p19 = scmp.ge.s32.totalorder %s18, 6
      %s25 = sphi 0, %s37
      %s26 = sphi 0, %s33
      %s27 = sphi 0, %s25
      %s28 = sphi 0, %s26
      %s29 = sphi 0, %s27
      %s30 = sphi 0, %s28
      %s40 = sphi 0, %s42
      %s43 = sphi 0, %s40
      %s44 = sphi 0, %s43
      %s60 = sphi 0, %s44
      %s66 = sphi 0, %s68
      %s69 = sphi 0, %s66
      %s70 = sphi 0, %s69
      %s86 = sphi 0, %s70
      %s92 = sphi 0, %s94
      %s95 = sphi 0, %s92
      %s96 = sphi 0, %s95
      %s112 = sphi 0, %s96
      %s118 = sphi 0, %s120
      %s121 = sphi 0, %s118
      %s122 = sphi 0, %s121
      %s138 = sphi 0, %s122
      %s144 = sphi 0, %s146
      %s147 = sphi 0, %s144
      %s148 = sphi 0, %s147
      %s164 = sphi 0, %s148
      %s170 = sphi 0, %s172
      %s173 = sphi 0, %s170
      %s174 = sphi 0, %s173
      %s190 = sphi 0, %s174
      %s196 = sphi 0, %s198
      %s199 = sphi 0, %s196
      %s200 = sphi 0, %s199
      %s216 = sphi 0, %s200
      %s220 = sphi 0, %s220
      %s222 = sphi 0, %s220
      %s223 = sphi 0, %s222
      %s237 = sphi 0, %s223
      %s241 = sphi 0, %s241
      %s243 = sphi 0, %s241
      %s244 = sphi 0, %s243
      %s258 = sphi 0, %s244
      %s264 = sphi 0, %s266
      %s267 = sphi 0, %s264
      %s268 = sphi 0, %s267
      %s284 = sphi 0, %s268
    $region4: #{tpu_custom_call.1} parent=1 // loop_header_branch
      %21 = sbr.rel (%p19) target = $region8
    $region5: #{tpu_custom_call.1} parent=1 // loop_body
      %s23 = ssub.s32 %s18, 1
      %s24 = ssub.s32 %s18, 2
      %s31 = sadd.s32 1, %s26
      %p32 = scmp.ge.s32.totalorder %s31, 2
      %s33 = scalar_select %p32, 0, %s31
      %s34 = sadd.s32 1, %s25
      %s35 = scalar_select %p32, %s34, %s25
      %p36 = scmp.ge.s32.totalorder %s35, 2
      %s37 = scalar_select %p36, 0, %s35
      %s38 = ssub.s32 %s25, %s37
      %p39 = scmp.eq.s32.totalorder %s38, 0
      %s41 = sadd.s32 %s40, 1
      %s42 = scalar_select %p39, %s40, %s41
      %p45 = pneg %p39
      %p46 = scmp.eq.s32.totalorder %s18, 3
      %p47 = por %p45, %p46
      %p48 = scmp.ne.s32.totalorder %s40, %s43
      %p49 = scmp.eq.s32.totalorder %s18, 0
      %p50 = por %p48, %p49
      %p51 = scmp.ne.s32.totalorder %s40, %s43
      %p52 = scmp.eq.s32.totalorder %s23, 3
      %p53 = por %p51, %p52
      %p54 = scmp.ne.s32.totalorder %s43, %s44
      %p55 = scmp.eq.s32.totalorder %s23, 0
      %p56 = por %p54, %p55
      %p57 = scmp.ne.s32.totalorder %s43, %s44
      %p58 = scmp.eq.s32.totalorder %s24, 3
      %p59 = por %p57, %p58
      %p61 = scmp.ne.s32.totalorder %s44, %s60
      %p62 = scmp.eq.s32.totalorder %s24, 0
      %p63 = por %p61, %p62
      %s64 = ssub.s32 %s25, %s37
      %p65 = scmp.eq.s32.totalorder %s64, 0
      %s67 = sadd.s32 %s66, 1
      %s68 = scalar_select %p65, %s66, %s67
      %p71 = pneg %p65
      %p72 = scmp.eq.s32.totalorder %s18, 3
      %p73 = por %p71, %p72
      %p74 = scmp.ne.s32.totalorder %s66, %s69
      %p75 = scmp.eq.s32.totalorder %s18, 0
      %p76 = por %p74, %p75
      %p77 = scmp.ne.s32.totalorder %s66, %s69
      %p78 = scmp.eq.s32.totalorder %s23, 3
      %p79 = por %p77, %p78
      %p80 = scmp.ne.s32.totalorder %s69, %s70
      %p81 = scmp.eq.s32.totalorder %s23, 0
      %p82 = por %p80, %p81
      %p83 = scmp.ne.s32.totalorder %s69, %s70
      %p84 = scmp.eq.s32.totalorder %s24, 3
      %p85 = por %p83, %p84
      %p87 = scmp.ne.s32.totalorder %s70, %s86
      %p88 = scmp.eq.s32.totalorder %s24, 0
      %p89 = por %p87, %p88
      %s90 = ssub.s32 %s26, %s33
      %p91 = scmp.eq.s32.totalorder %s90, 0
      %s93 = sadd.s32 %s92, 1
      %s94 = scalar_select %p91, %s92, %s93
      %p97 = pneg %p91
      %p98 = scmp.eq.s32.totalorder %s18, 3
      %p99 = por %p97, %p98
      %p100 = scmp.ne.s32.totalorder %s92, %s95
      %p101 = scmp.eq.s32.totalorder %s18, 0
      %p102 = por %p100, %p101
      %p103 = scmp.ne.s32.totalorder %s92, %s95
      %p104 = scmp.eq.s32.totalorder %s23, 3
      %p105 = por %p103, %p104
      %p106 = scmp.ne.s32.totalorder %s95, %s96
      %p107 = scmp.eq.s32.totalorder %s23, 0
      %p108 = por %p106, %p107
      %p109 = scmp.ne.s32.totalorder %s95, %s96
      %p110 = scmp.eq.s32.totalorder %s24, 3
      %p111 = por %p109, %p110
      %p113 = scmp.ne.s32.totalorder %s96, %s112
      %p114 = scmp.eq.s32.totalorder %s24, 0
      %p115 = por %p113, %p114
      %s116 = ssub.s32 %s26, %s33
      %p117 = scmp.eq.s32.totalorder %s116, 0
      %s119 = sadd.s32 %s118, 1
      %s120 = scalar_select %p117, %s118, %s119
      %p123 = pneg %p117
      %p124 = scmp.eq.s32.totalorder %s18, 3
      %p125 = por %p123, %p124
      %p126 = scmp.ne.s32.totalorder %s118, %s121
      %p127 = scmp.eq.s32.totalorder %s18, 0
      %p128 = por %p126, %p127
      %p129 = scmp.ne.s32.totalorder %s118, %s121
      %p130 = scmp.eq.s32.totalorder %s23, 3
      %p131 = por %p129, %p130
      %p132 = scmp.ne.s32.totalorder %s121, %s122
      %p133 = scmp.eq.s32.totalorder %s23, 0
      %p134 = por %p132, %p133
      %p135 = scmp.ne.s32.totalorder %s121, %s122
      %p136 = scmp.eq.s32.totalorder %s24, 3
      %p137 = por %p135, %p136
      %p139 = scmp.ne.s32.totalorder %s122, %s138
      %p140 = scmp.eq.s32.totalorder %s24, 0
      %p141 = por %p139, %p140
      %s142 = ssub.s32 %s26, %s33
      %p143 = scmp.eq.s32.totalorder %s142, 0
      %s145 = sadd.s32 %s144, 1
      %s146 = scalar_select %p143, %s144, %s145
      %p149 = pneg %p143
      %p150 = scmp.eq.s32.totalorder %s18, 3
      %p151 = por %p149, %p150
      %p152 = scmp.ne.s32.totalorder %s144, %s147
      %p153 = scmp.eq.s32.totalorder %s18, 0
      %p154 = por %p152, %p153
      %p155 = scmp.ne.s32.totalorder %s144, %s147
      %p156 = scmp.eq.s32.totalorder %s23, 3
      %p157 = por %p155, %p156
      %p158 = scmp.ne.s32.totalorder %s147, %s148
      %p159 = scmp.eq.s32.totalorder %s23, 0
      %p160 = por %p158, %p159
      %p161 = scmp.ne.s32.totalorder %s147, %s148
      %p162 = scmp.eq.s32.totalorder %s24, 3
      %p163 = por %p161, %p162
      %p165 = scmp.ne.s32.totalorder %s148, %s164
      %p166 = scmp.eq.s32.totalorder %s24, 0
      %p167 = por %p165, %p166
      %s168 = ssub.s32 %s26, %s33
      %p169 = scmp.eq.s32.totalorder %s168, 0
      %s171 = sadd.s32 %s170, 1
      %s172 = scalar_select %p169, %s170, %s171
      %p175 = pneg %p169
      %p176 = scmp.eq.s32.totalorder %s18, 3
      %p177 = por %p175, %p176
      %p178 = scmp.ne.s32.totalorder %s170, %s173
      %p179 = scmp.eq.s32.totalorder %s18, 0
      %p180 = por %p178, %p179
      %p181 = scmp.ne.s32.totalorder %s170, %s173
      %p182 = scmp.eq.s32.totalorder %s23, 3
      %p183 = por %p181, %p182
      %p184 = scmp.ne.s32.totalorder %s173, %s174
      %p185 = scmp.eq.s32.totalorder %s23, 0
      %p186 = por %p184, %p185
      %p187 = scmp.ne.s32.totalorder %s173, %s174
      %p188 = scmp.eq.s32.totalorder %s24, 3
      %p189 = por %p187, %p188
      %p191 = scmp.ne.s32.totalorder %s174, %s190
      %p192 = scmp.eq.s32.totalorder %s24, 0
      %p193 = por %p191, %p192
      %s194 = ssub.s32 %s26, %s33
      %p195 = scmp.eq.s32.totalorder %s194, 0
      %s197 = sadd.s32 %s196, 1
      %s198 = scalar_select %p195, %s196, %s197
      %p201 = pneg %p195
      %p202 = scmp.eq.s32.totalorder %s18, 3
      %p203 = por %p201, %p202
      %p204 = scmp.ne.s32.totalorder %s196, %s199
      %p205 = scmp.eq.s32.totalorder %s18, 0
      %p206 = por %p204, %p205
      %p207 = scmp.ne.s32.totalorder %s196, %s199
      %p208 = scmp.eq.s32.totalorder %s23, 3
      %p209 = por %p207, %p208
      %p210 = scmp.ne.s32.totalorder %s199, %s200
      %p211 = scmp.eq.s32.totalorder %s23, 0
      %p212 = por %p210, %p211
      %p213 = scmp.ne.s32.totalorder %s199, %s200
      %p214 = scmp.eq.s32.totalorder %s24, 3
      %p215 = por %p213, %p214
      %p217 = scmp.ne.s32.totalorder %s200, %s216
      %p218 = scmp.eq.s32.totalorder %s24, 0
      %p219 = por %p217, %p218
      %s221 = sadd.s32 %s220, 1
      %p224 = scmp.eq.s32.totalorder %s18, 3
      %p225 = scmp.ne.s32.totalorder %s220, %s222
      %p226 = scmp.eq.s32.totalorder %s18, 0
      %p227 = por %p225, %p226
      %p228 = scmp.ne.s32.totalorder %s220, %s222
      %p229 = scmp.eq.s32.totalorder %s23, 3
      %p230 = por %p228, %p229
      %p231 = scmp.ne.s32.totalorder %s222, %s223
      %p232 = scmp.eq.s32.totalorder %s23, 0
      %p233 = por %p231, %p232
      %p234 = scmp.ne.s32.totalorder %s222, %s223
      %p235 = scmp.eq.s32.totalorder %s24, 3
      %p236 = por %p234, %p235
      %p238 = scmp.ne.s32.totalorder %s223, %s237
      %p239 = scmp.eq.s32.totalorder %s24, 0
      %p240 = por %p238, %p239
      %s242 = sadd.s32 %s241, 1
      %p245 = scmp.eq.s32.totalorder %s18, 3
      %p246 = scmp.ne.s32.totalorder %s241, %s243
      %p247 = scmp.eq.s32.totalorder %s18, 0
      %p248 = por %p246, %p247
      %p249 = scmp.ne.s32.totalorder %s241, %s243
      %p250 = scmp.eq.s32.totalorder %s23, 3
      %p251 = por %p249, %p250
      %p252 = scmp.ne.s32.totalorder %s243, %s244
      %p253 = scmp.eq.s32.totalorder %s23, 0
      %p254 = por %p252, %p253
      %p255 = scmp.ne.s32.totalorder %s243, %s244
      %p256 = scmp.eq.s32.totalorder %s24, 3
      %p257 = por %p255, %p256
      %p259 = scmp.ne.s32.totalorder %s244, %s258
      %p260 = scmp.eq.s32.totalorder %s24, 0
      %p261 = por %p259, %p260
      %s262 = ssub.s32 %s25, %s37
      %p263 = scmp.eq.s32.totalorder %s262, 0
      %s265 = sadd.s32 %s264, 1
      %s266 = scalar_select %p263, %s264, %s265
      %p269 = pneg %p263
      %p270 = scmp.eq.s32.totalorder %s18, 3
      %p271 = por %p269, %p270
      %p272 = scmp.ne.s32.totalorder %s264, %s267
      %p273 = scmp.eq.s32.totalorder %s18, 0
      %p274 = por %p272, %p273
      %p275 = scmp.ne.s32.totalorder %s264, %s267
      %p276 = scmp.eq.s32.totalorder %s23, 3
      %p277 = por %p275, %p276
      %p278 = scmp.ne.s32.totalorder %s267, %s268
      %p279 = scmp.eq.s32.totalorder %s23, 0
      %p280 = por %p278, %p279
      %p281 = scmp.ne.s32.totalorder %s267, %s268
      %p282 = scmp.eq.s32.totalorder %s24, 3
      %p283 = por %p281, %p282
      %p285 = scmp.ne.s32.totalorder %s268, %s284
      %p286 = scmp.eq.s32.totalorder %s24, 0
      %p287 = por %p285, %p286
      %p288 = scmp.le.s32.totalorder 1, %s18
      %p289 = scmp.lt.s32.totalorder %s18, 5
      %p290 = pnand %p288, %p289
      %p291 = pneg %p290
      // Predicated region
      $region9: #{tpu_custom_call.1} parent=5 // pred_check
        _
      $region10: #{tpu_custom_call.1} parent=5 // pred_check_branch
        %293 = sbr.rel (%p290) target = $region12
      $region11: #{tpu_custom_call.1} parent=5 // pred_region
        %s294 = ssub.s32 %s18, 1
        // Predicated region
        $region13: #{tpu_custom_call.1} parent=11 // pred_check
          %p295 = pneg %p233
        $region14: #{tpu_custom_call.1} parent=11 // pred_check_branch
          %297 = sbr.rel (%p295) target = $region16
        $region15: #{tpu_custom_call.1} parent=11 // pred_region
          _
        $region16: #{tpu_custom_call.1} parent=11 // pred_fallthru
          _
        // Predicated region
        $region17: #{tpu_custom_call.1} parent=11 // pred_check
          %p298 = pneg %p254
        $region18: #{tpu_custom_call.1} parent=11 // pred_check_branch
          %300 = sbr.rel (%p298) target = $region20
        $region19: #{tpu_custom_call.1} parent=11 // pred_region
          _
        $region20: #{tpu_custom_call.1} parent=11 // pred_fallthru
          _
      $region12: #{tpu_custom_call.1} parent=5 // pred_fallthru
        _
      %p301 = scmp.lt.s32.totalorder %s18, 4
      // Predicated region
      $region21: #{tpu_custom_call.1} parent=5 // pred_check
        %p302 = pneg %p301
      $region22: #{tpu_custom_call.1} parent=5 // pred_check_branch
        %304 = sbr.rel (%p302) target = $region24
      $region23: #{tpu_custom_call.1} parent=5 // pred_region
        // Predicated region
        $region25: #{tpu_custom_call.1} parent=23 // pred_check
          %p305 = pneg %p50
        $region26: #{tpu_custom_call.1} parent=23 // pred_check_branch
          %307 = sbr.rel (%p305) target = $region28
        $region27: #{tpu_custom_call.1} parent=23 // pred_region
          %s308 = smul.u32 16, %s25
          %p309 = scmp.lt.s32.totalorder %s308, 31
          %s310 = scalar_select %p309, %s308, 31
          %s311 = smul.addr %s310, 8
          %s312 = scalar_lea.vmem %s0, %s311
          %s313 = smul.u32 16, %s25
        $region28: #{tpu_custom_call.1} parent=23 // pred_fallthru
          _
        // Predicated region
        $region29: #{tpu_custom_call.1} parent=23 // pred_check
          %p314 = pneg %p76
        $region30: #{tpu_custom_call.1} parent=23 // pred_check_branch
          %316 = sbr.rel (%p314) target = $region32
        $region31: #{tpu_custom_call.1} parent=23 // pred_region
          %s317 = smul.u32 16, %s25
          %p318 = scmp.lt.s32.totalorder %s317, 31
          %s319 = scalar_select %p318, %s317, 31
          %s320 = smul.addr %s319, 8
          %s321 = scalar_lea.vmem %s1, %s320
          %s322 = smul.u32 16, %s25
        $region32: #{tpu_custom_call.1} parent=23 // pred_fallthru
          _
        // Predicated region
        $region33: #{tpu_custom_call.1} parent=23 // pred_check
          %p323 = pneg %p102
        $region34: #{tpu_custom_call.1} parent=23 // pred_check_branch
          %325 = sbr.rel (%p323) target = $region36
        $region35: #{tpu_custom_call.1} parent=23 // pred_region
          %p326 = scmp.lt.s32.totalorder %s26, 1
          %s327 = scalar_select %p326, %s26, 1
          %s328 = smul.addr %s327, 2
          %s329 = smul.addr %s328, 8
          %s330 = scalar_lea.vmem %s2, %s329
        $region36: #{tpu_custom_call.1} parent=23 // pred_fallthru
          _
        // Predicated region
        $region37: #{tpu_custom_call.1} parent=23 // pred_check
          %p331 = pneg %p128
        $region38: #{tpu_custom_call.1} parent=23 // pred_check_branch
          %333 = sbr.rel (%p331) target = $region40
        $region39: #{tpu_custom_call.1} parent=23 // pred_region
          %p334 = scmp.lt.s32.totalorder %s26, 1
          %s335 = scalar_select %p334, %s26, 1
          %s336 = scalar_lea.vmem %s3, %s335
        $region40: #{tpu_custom_call.1} parent=23 // pred_fallthru
          _
        // Predicated region
        $region41: #{tpu_custom_call.1} parent=23 // pred_check
          %p337 = pneg %p154
        $region42: #{tpu_custom_call.1} parent=23 // pred_check_branch
          %339 = sbr.rel (%p337) target = $region44
        $region43: #{tpu_custom_call.1} parent=23 // pred_region
          %p340 = scmp.lt.s32.totalorder %s26, 1
          %s341 = scalar_select %p340, %s26, 1
          %s342 = smul.addr %s341, 36
          %s343 = smul.addr %s342, 8
          %s344 = scalar_lea.vmem %s4, %s343
        $region44: #{tpu_custom_call.1} parent=23 // pred_fallthru
          _
        // Predicated region
        $region45: #{tpu_custom_call.1} parent=23 // pred_check
          %p345 = pneg %p180
        $region46: #{tpu_custom_call.1} parent=23 // pred_check_branch
          %347 = sbr.rel (%p345) target = $region48
        $region47: #{tpu_custom_call.1} parent=23 // pred_region
          %p348 = scmp.lt.s32.totalorder %s26, 1
          %s349 = scalar_select %p348, %s26, 1
          %s350 = scalar_lea.vmem %s5, %s349
        $region48: #{tpu_custom_call.1} parent=23 // pred_fallthru
          _
        // Predicated region
        $region49: #{tpu_custom_call.1} parent=23 // pred_check
          %p351 = pneg %p206
        $region50: #{tpu_custom_call.1} parent=23 // pred_check_branch
          %353 = sbr.rel (%p351) target = $region52
        $region51: #{tpu_custom_call.1} parent=23 // pred_region
          %p354 = scmp.lt.s32.totalorder %s26, 1
          %s355 = scalar_select %p354, %s26, 1
          %s356 = smul.addr %s355, 4
          %s357 = smul.addr %s356, 8
          %s358 = scalar_lea.vmem %s6, %s357
        $region52: #{tpu_custom_call.1} parent=23 // pred_fallthru
          _
      $region24: #{tpu_custom_call.1} parent=5 // pred_fallthru
        _
      %p359 = scmp.le.s32.totalorder 1, %s18
      %p360 = scmp.lt.s32.totalorder %s18, 5
      %p361 = pnand %p359, %p360
      %p362 = pneg %p361
      // Predicated region
      $region53: #{tpu_custom_call.1} parent=5 // pred_check
        _
      $region54: #{tpu_custom_call.1} parent=5 // pred_check_branch
        %364 = sbr.rel (%p361) target = $region56
      $region55: #{tpu_custom_call.1} parent=5 // pred_region
        %s365 = ssub.s32 %s18, 1
        %s366 = smul.u32 16, %s27
        %p367 = scmp.lt.s32.totalorder %s366, 31
        %s368 = scalar_select %p367, %s366, 31
        %s369 = smul.addr %s368, 8
        %s370 = scalar_lea.vmem %s0, %s369
        %p371 = pneg %p56
        %p372 = pneg %p53
        %s373 = smul.u32 16, %s27
        %p374 = scmp.lt.s32.totalorder %s373, 31
        %s375 = scalar_select %p374, %s373, 31
        %s376 = smul.addr %s375, 8
        %s377 = scalar_lea.vmem %s1, %s376
        %p378 = pneg %p82
        %p379 = pneg %p79
        %p380 = scmp.lt.s32.totalorder %s28, 1
        %s381 = scalar_select %p380, %s28, 1
        %s382 = smul.addr %s381, 2
        %s383 = smul.addr %s382, 8
        %s384 = scalar_lea.vmem %s2, %s383
        %p385 = pneg %p108
        %p386 = pneg %p105
        %p387 = scmp.lt.s32.totalorder %s28, 1
        %s388 = scalar_select %p387, %s28, 1
        %s389 = scalar_lea.vmem %s3, %s388
        %p390 = pneg %p134
        %p391 = pneg %p131
        %p392 = scmp.lt.s32.totalorder %s28, 1
        %s393 = scalar_select %p392, %s28, 1
        %s394 = smul.addr %s393, 36
        %s395 = smul.addr %s394, 8
        %s396 = scalar_lea.vmem %s4, %s395
        %p397 = pneg %p160
        %p398 = pneg %p157
        %p399 = scmp.lt.s32.totalorder %s28, 1
        %s400 = scalar_select %p399, %s28, 1
        %s401 = scalar_lea.vmem %s5, %s400
        %p402 = pneg %p186
        %p403 = pneg %p183
        %p404 = scmp.lt.s32.totalorder %s28, 1
        %s405 = scalar_select %p404, %s28, 1
        %s406 = smul.addr %s405, 4
        %s407 = smul.addr %s406, 8
        %s408 = scalar_lea.vmem %s6, %s407
        %p409 = pneg %p212
        %p410 = pneg %p209
        %p411 = pneg %p233
        %p412 = pneg %p230
        %p413 = pneg %p254
        %p414 = pneg %p251
        %p415 = pneg %p280
        %p416 = pneg %p277
        %s417 = sand.u32 %s267, 1
        %s418 = scalar_lea.sflag [#allocation5], %s417
        %s419 = sand.u32 %s267, 1
        %s420 = smul.addr %s419, 8
        %s421 = scalar_lea.vmem [#allocation4], %s420
        %s422 = smul.u32 16, %s27
        %p423 = scmp.lt.s32.totalorder %s422, 31
        %s424 = scalar_select %p423, %s422, 31
        %s425 = smul.addr %s424, 8
        %s426 = scalar_lea.vmem %s0, %s425
        %s427 = smul.u32 16, %s27
        %s428 = smul.u32 16, %s27
        %p429 = scmp.lt.s32.totalorder %s428, 31
        %s430 = scalar_select %p429, %s428, 31
        %s431 = smul.addr %s430, 8
        %s432 = scalar_lea.vmem %s1, %s431
        %s433 = smul.u32 16, %s27
        %p434 = scmp.lt.s32.totalorder %s28, 1
        %s435 = scalar_select %p434, %s28, 1
        %s436 = smul.addr %s435, 2
        %s437 = smul.addr %s436, 8
        %s438 = scalar_lea.vmem %s2, %s437
        %p439 = scmp.lt.s32.totalorder %s28, 1
        %s440 = scalar_select %p439, %s28, 1
        %s441 = scalar_lea.vmem %s3, %s440
        %p442 = scmp.lt.s32.totalorder %s28, 1
        %s443 = scalar_select %p442, %s28, 1
        %s444 = smul.addr %s443, 36
        %s445 = smul.addr %s444, 8
        %s446 = scalar_lea.vmem %s4, %s445
        %p447 = scmp.lt.s32.totalorder %s28, 1
        %s448 = scalar_select %p447, %s28, 1
        %s449 = scalar_lea.vmem %s5, %s448
        %p450 = scmp.lt.s32.totalorder %s28, 1
        %s451 = scalar_select %p450, %s28, 1
        %s452 = smul.addr %s451, 4
        %s453 = smul.addr %s452, 8
        %s454 = scalar_lea.vmem %s6, %s453
        %p455 = scmp.eq.s32.totalorder %s28, 0
        // Predicated region
        $region57: #{tpu_custom_call.1} parent=55 // pred_check
          %p456 = pneg %p455
        $region58: #{tpu_custom_call.1} parent=55 // pred_check_branch
          %458 = sbr.rel (%p456) target = $region60
        $region59: #{tpu_custom_call.1} parent=55 // pred_region
          %v459 = vld [vmem:[%s426] sm:$0xff]
          %v460 = vld [vmem:[%s426 + $0x8] sm:$0xff]
          %v461 = vld [vmem:[%s426 + $0x10] sm:$0xff]
          %v462 = vld [vmem:[%s426 + $0x18] sm:$0xff]
          %v463 = vld [vmem:[%s426 + $0x20] sm:$0xff]
          %v464 = vld [vmem:[%s426 + $0x28] sm:$0xff]
          %v465 = vld [vmem:[%s426 + $0x30] sm:$0xff]
          %v466 = vld [vmem:[%s426 + $0x38] sm:$0xff]
          %v467 = vld [vmem:[%s426 + $0x40] sm:$0xff]
          %v468 = vld [vmem:[%s426 + $0x48] sm:$0xff]
          %v469 = vld [vmem:[%s426 + $0x50] sm:$0xff]
          %v470 = vld [vmem:[%s426 + $0x58] sm:$0xff]
          %v471 = vld [vmem:[%s426 + $0x60] sm:$0xff]
          %v472 = vld [vmem:[%s426 + $0x68] sm:$0xff]
          %v473 = vld [vmem:[%s426 + $0x70] sm:$0xff]
          %v474 = vld [vmem:[%s426 + $0x78] sm:$0xff]
          %vm475 = vcmask 130048
          %476 = vst.msk [vmem:[#allocation2] sm:$0xff] %vm475, %v459
          %477 = vst.msk [vmem:[#allocation2 + $0x8] sm:$0xff] %vm475, %v460
          %478 = vst.msk [vmem:[#allocation2 + $0x10] sm:$0xff] %vm475, %v461
          %479 = vst.msk [vmem:[#allocation2 + $0x18] sm:$0xff] %vm475, %v462
          %480 = vst.msk [vmem:[#allocation2 + $0x20] sm:$0xff] %vm475, %v463
          %481 = vst.msk [vmem:[#allocation2 + $0x28] sm:$0xff] %vm475, %v464
          %482 = vst.msk [vmem:[#allocation2 + $0x30] sm:$0xff] %vm475, %v465
          %483 = vst.msk [vmem:[#allocation2 + $0x38] sm:$0xff] %vm475, %v466
          %484 = vst.msk [vmem:[#allocation2 + $0x40] sm:$0xff] %vm475, %v467
          %485 = vst.msk [vmem:[#allocation2 + $0x48] sm:$0xff] %vm475, %v468
          %486 = vst.msk [vmem:[#allocation2 + $0x50] sm:$0xff] %vm475, %v469
          %487 = vst.msk [vmem:[#allocation2 + $0x58] sm:$0xff] %vm475, %v470
          %488 = vst.msk [vmem:[#allocation2 + $0x60] sm:$0xff] %vm475, %v471
          %489 = vst.msk [vmem:[#allocation2 + $0x68] sm:$0xff] %vm475, %v472
          %490 = vst.msk [vmem:[#allocation2 + $0x70] sm:$0xff] %vm475, %v473
          %491 = vst.msk [vmem:[#allocation2 + $0x78] sm:$0xff] %vm475, %v474
          %vm492 = vcmask 258048
          %493 = vst.msk [vmem:[#allocation3] sm:$0x1f] %vm492, 0.0
          %494 = vst.msk [vmem:[#allocation3 + $0x85] sm:$0x1f] %vm492, 0.0
        $region60: #{tpu_custom_call.1} parent=55 // pred_fallthru
          _
        %v495 = vld [vmem:[#allocation2] sm:$0xff]
        %v496 = vld [vmem:[#allocation2 + $0x8] sm:$0xff]
        %v497 = vld [vmem:[#allocation2 + $0x10] sm:$0xff]
        %v498 = vld [vmem:[#allocation2 + $0x18] sm:$0xff]
        %v499 = vld [vmem:[#allocation2 + $0x20] sm:$0xff]
        %v500 = vld [vmem:[#allocation2 + $0x28] sm:$0xff]
        %v501 = vld [vmem:[#allocation2 + $0x30] sm:$0xff]
        %v502 = vld [vmem:[#allocation2 + $0x38] sm:$0xff]
        %v503 = vld [vmem:[#allocation2 + $0x40] sm:$0xff]
        %v504 = vld [vmem:[#allocation2 + $0x48] sm:$0xff]
        %v505 = vld [vmem:[#allocation2 + $0x50] sm:$0xff]
        %v506 = vld [vmem:[#allocation2 + $0x58] sm:$0xff]
        %v507 = vld [vmem:[#allocation2 + $0x60] sm:$0xff]
        %v508 = vld [vmem:[#allocation2 + $0x68] sm:$0xff]
        %v509 = vld [vmem:[#allocation2 + $0x70] sm:$0xff]
        %v510 = vld [vmem:[#allocation2 + $0x78] sm:$0xff]
        %v511 = vld [vmem:[%s432] sm:$0xff]
        %v512 = vld [vmem:[%s432 + $0x8] sm:$0xff]
        %v513 = vld [vmem:[%s432 + $0x10] sm:$0xff]
        %v514 = vld [vmem:[%s432 + $0x18] sm:$0xff]
        %v515 = vld [vmem:[%s432 + $0x20] sm:$0xff]
        %v516 = vld [vmem:[%s432 + $0x28] sm:$0xff]
        %v517 = vld [vmem:[%s432 + $0x30] sm:$0xff]
        %v518 = vld [vmem:[%s432 + $0x38] sm:$0xff]
        %v519 = vld [vmem:[%s432 + $0x40] sm:$0xff]
        %v520 = vld [vmem:[%s432 + $0x48] sm:$0xff]
        %v521 = vld [vmem:[%s432 + $0x50] sm:$0xff]
        %v522 = vld [vmem:[%s432 + $0x58] sm:$0xff]
        %v523 = vld [vmem:[%s432 + $0x60] sm:$0xff]
        %v524 = vld [vmem:[%s432 + $0x68] sm:$0xff]
        %v525 = vld [vmem:[%s432 + $0x70] sm:$0xff]
        %v526 = vld [vmem:[%s432 + $0x78] sm:$0xff]
        %v527 = vld [vmem:[%s438] sm:$0xff]
        %v528 = vld [vmem:[%s438 + $0x8] sm:$0xff]
        %v529 = vld [vmem:[%s441] sm:$0x1]
        %v531 = vlaneseq
        %v532 = vshrl.u32 %v531, 7
        %v533 = vsub.s32 0, %v532
        %v534 = vrot.slane %v529, %v533
        %vm536 = vcmask 130048
        %v538 = vsel %vm536, %v495, 0
        %v541 = vsel %vm536, %v496, 0
        %v544 = vsel %vm536, %v497, 0
        %v547 = vsel %vm536, %v498, 0
        %v550 = vsel %vm536, %v499, 0
        %v553 = vsel %vm536, %v500, 0
        %v556 = vsel %vm536, %v501, 0
        %v559 = vsel %vm536, %v502, 0
        %v562 = vsel %vm536, %v503, 0
        %v565 = vsel %vm536, %v504, 0
        %v568 = vsel %vm536, %v505, 0
        %v571 = vsel %vm536, %v506, 0
        %v574 = vsel %vm536, %v507, 0
        %v577 = vsel %vm536, %v508, 0
        %v580 = vsel %vm536, %v509, 0
        %v583 = vsel %vm536, %v510, 0
        %585 = vmatprep.subr.mxu0 0.0
        %586 = vmatpush1.msra.mxu0 %v527
        %587 = vmatprep.subr.mxu0 0.0
        %588 = vmatpush1.msra.mxu0 %v528
        %589 = vmatprep.subr.mxu0 0.0
        %590 = vmatpush1.msra.mxu0 0.0
        %591 = vmatprep.subr.mxu0 0.0
        %592 = vmatpush1.msra.mxu0 0.0
        %593 = vmatprep.subr.mxu0 0.0
        %594 = vmatpush1.msra.mxu0 0.0
        %595 = vmatprep.subr.mxu0 0.0
        %596 = vmatpush1.msra.mxu0 0.0
        %597 = vmatprep.subr.mxu0 0.0
        %598 = vmatpush1.msra.mxu0 0.0
        %599 = vmatprep.subr.mxu0 0.0
        %600 = vmatpush1.msra.mxu0 0.0
        %601 = vmatprep.subr.mxu0 0.0
        %602 = vmatpush1.msra.mxu0 0.0
        %603 = vmatprep.subr.mxu0 0.0
        %604 = vmatpush1.msra.mxu0 0.0
        %605 = vmatprep.subr.mxu0 0.0
        %606 = vmatpush1.msra.mxu0 0.0
        %607 = vmatprep.subr.mxu0 0.0
        %608 = vmatpush1.msra.mxu0 0.0
        %609 = vmatprep.subr.mxu0 0.0
        %610 = vmatpush1.msra.mxu0 0.0
        %611 = vmatprep.subr.mxu0 0.0
        %612 = vmatpush1.msra.mxu0 0.0
        %613 = vmatprep.subr.mxu0 0.0
        %614 = vmatpush1.msra.mxu0 0.0
        %615 = vmatprep.subr.mxu0 0.0
        %616 = vmatpush1.msra.mxu0 0.0
        %617 = vmatprep.subr.mxu0 0.0
        %618 = vmatpush1.msra.mxu0 0.0
        %619 = vmatprep.subr.mxu0 0.0
        %620 = vmatpush1.msra.mxu0 0.0
        %621 = vmatprep.subr.mxu0 0.0
        %622 = vmatpush1.msra.mxu0 0.0
        %623 = vmatprep.subr.mxu0 0.0
        %624 = vmatpush1.msra.mxu0 0.0
        %625 = vmatprep.subr.mxu0 0.0
        %626 = vmatpush1.msra.mxu0 0.0
        %627 = vmatprep.subr.mxu0 0.0
        %628 = vmatpush1.msra.mxu0 0.0
        %629 = vmatprep.subr.mxu0 0.0
        %630 = vmatpush1.msra.mxu0 0.0
        %631 = vmatprep.subr.mxu0 0.0
        %632 = vmatpush1.msra.mxu0 0.0
        %633 = vmatprep.subr.mxu0 0.0
        %634 = vmatpush1.msra.mxu0 0.0
        %635 = vmatprep.subr.mxu0 0.0
        %636 = vmatpush1.msra.mxu0 0.0
        %637 = vmatprep.subr.mxu0 0.0
        %638 = vmatpush1.msra.mxu0 0.0
        %639 = vmatprep.subr.mxu0 0.0
        %640 = vmatpush1.msra.mxu0 0.0
        %641 = vmatprep.subr.mxu0 0.0
        %642 = vmatpush1.msra.mxu0 0.0
        %643 = vmatprep.subr.mxu0 0.0
        %644 = vmatpush1.msra.mxu0 0.0
        %645 = vmatprep.subr.mxu0 0.0
        %646 = vmatpush1.msra.mxu0 0.0
        %647 = vmatprep.subr.mxu0 0.0
        %648 = vmatpush1.msra.mxu0 0.0
        %649 = vmatprep.mubr.f32.mxu0 0.0
        %650 = vmatmul.mubr.f32.gmra.mrb[0].mxu0 %v538
        %v651 = vpop.f32.mrb[0].mxu0
        %v652 = vadd.f32 %v534, %v651
        %v653 = vpop.f32.mrb[0].mxu0
        %654 = vmatprep.mubr.f32.mxu0 0.0
        %655 = vmatmul.mubr.f32.gmra.mrb[0].mxu0 %v541
        %v656 = vpop.f32.mrb[0].mxu0
        %v657 = vadd.f32 %v534, %v656
        %v658 = vpop.f32.mrb[0].mxu0
        %659 = vmatprep.mubr.f32.mxu0 0.0
        %660 = vmatmul.mubr.f32.gmra.mrb[0].mxu0 %v544
        %v661 = vpop.f32.mrb[0].mxu0
        %v662 = vadd.f32 %v534, %v661
        %v663 = vpop.f32.mrb[0].mxu0
        %664 = vmatprep.mubr.f32.mxu0 0.0
        %665 = vmatmul.mubr.f32.gmra.mrb[0].mxu0 %v547
        %v666 = vpop.f32.mrb[0].mxu0
        %v667 = vadd.f32 %v534, %v666
        %v668 = vpop.f32.mrb[0].mxu0
        %669 = vmatprep.mubr.f32.mxu0 0.0
        %670 = vmatmul.mubr.f32.gmra.mrb[0].mxu0 %v550
        %v671 = vpop.f32.mrb[0].mxu0
        %v672 = vadd.f32 %v534, %v671
        %v673 = vpop.f32.mrb[0].mxu0
        %674 = vmatprep.mubr.f32.mxu0 0.0
        %675 = vmatmul.mubr.f32.gmra.mrb[0].mxu0 %v553
        %v676 = vpop.f32.mrb[0].mxu0
        %v677 = vadd.f32 %v534, %v676
        %v678 = vpop.f32.mrb[0].mxu0
        %679 = vmatprep.mubr.f32.mxu0 0.0
        %680 = vmatmul.mubr.f32.gmra.mrb[0].mxu0 %v556
        %v681 = vpop.f32.mrb[0].mxu0
        %v682 = vadd.f32 %v534, %v681
        %v683 = vpop.f32.mrb[0].mxu0
        %684 = vmatprep.mubr.f32.mxu0 0.0
        %685 = vmatmul.mubr.f32.gmra.mrb[0].mxu0 %v559
        %v686 = vpop.f32.mrb[0].mxu0
        %v687 = vadd.f32 %v534, %v686
        %v688 = vpop.f32.mrb[0].mxu0
        %689 = vmatprep.mubr.f32.mxu0 0.0
        %690 = vmatmul.mubr.f32.gmra.mrb[0].mxu0 %v562
        %v691 = vpop.f32.mrb[0].mxu0
        %v692 = vadd.f32 %v534, %v691
        %v693 = vpop.f32.mrb[0].mxu0
        %694 = vmatprep.mubr.f32.mxu0 0.0
        %695 = vmatmul.mubr.f32.gmra.mrb[0].mxu0 %v565
        %v696 = vpop.f32.mrb[0].mxu0
        %v697 = vadd.f32 %v534, %v696
        %v698 = vpop.f32.mrb[0].mxu0
        %699 = vmatprep.mubr.f32.mxu0 0.0
        %700 = vmatmul.mubr.f32.gmra.mrb[0].mxu0 %v568
        %v701 = vpop.f32.mrb[0].mxu0
        %v702 = vadd.f32 %v534, %v701
        %v703 = vpop.f32.mrb[0].mxu0
        %704 = vmatprep.mubr.f32.mxu0 0.0
        %705 = vmatmul.mubr.f32.gmra.mrb[0].mxu0 %v571
        %v706 = vpop.f32.mrb[0].mxu0
        %v707 = vadd.f32 %v534, %v706
        %v708 = vpop.f32.mrb[0].mxu0
        %709 = vmatprep.mubr.f32.mxu0 0.0
        %710 = vmatmul.mubr.f32.gmra.mrb[0].mxu0 %v574
        %v711 = vpop.f32.mrb[0].mxu0
        %v712 = vadd.f32 %v534, %v711
        %v713 = vpop.f32.mrb[0].mxu0
        %714 = vmatprep.mubr.f32.mxu0 0.0
        %715 = vmatmul.mubr.f32.gmra.mrb[0].mxu0 %v577
        %v716 = vpop.f32.mrb[0].mxu0
        %v717 = vadd.f32 %v534, %v716
        %v718 = vpop.f32.mrb[0].mxu0
        %719 = vmatprep.mubr.f32.mxu0 0.0
        %720 = vmatmul.mubr.f32.gmra.mrb[0].mxu0 %v580
        %v721 = vpop.f32.mrb[0].mxu0
        %v722 = vadd.f32 %v534, %v721
        %v723 = vpop.f32.mrb[0].mxu0
        %724 = vmatprep.mubr.f32.mxu0 0.0
        %725 = vmatmul.mubr.f32.gmra.mrb[0].mxu0 %v583
        %v726 = vpop.f32.mrb[0].mxu0
        %v727 = vadd.f32 %v534, %v726
        %v728 = vpop.f32.mrb[0].mxu0
        %729 = vdwg.mxu0
        %vm730 = vcmp.ge.f32.partialorder %v652, 0.0
        %vm731 = vcmp.ge.f32.partialorder %v657, 0.0
        %vm732 = vcmp.ge.f32.partialorder %v662, 0.0
        %vm733 = vcmp.ge.f32.partialorder %v667, 0.0
        %vm734 = vcmp.ge.f32.partialorder %v672, 0.0
        %vm735 = vcmp.ge.f32.partialorder %v677, 0.0
        %vm736 = vcmp.ge.f32.partialorder %v682, 0.0
        %vm737 = vcmp.ge.f32.partialorder %v687, 0.0
        %vm738 = vcmp.ge.f32.partialorder %v692, 0.0
        %vm739 = vcmp.ge.f32.partialorder %v697, 0.0
        %vm740 = vcmp.ge.f32.partialorder %v702, 0.0
        %vm741 = vcmp.ge.f32.partialorder %v707, 0.0
        %vm742 = vcmp.ge.f32.partialorder %v712, 0.0
        %vm743 = vcmp.ge.f32.partialorder %v717, 0.0
        %vm744 = vcmp.ge.f32.partialorder %v722, 0.0
        %vm745 = vcmp.ge.f32.partialorder %v727, 0.0
        %v746 = vmul.f32 %v652, 0.2
        %v747 = vmul.f32 %v657, 0.2
        %v748 = vmul.f32 %v662, 0.2
        %v749 = vmul.f32 %v667, 0.2
        %v750 = vmul.f32 %v672, 0.2
        %v751 = vmul.f32 %v677, 0.2
        %v752 = vmul.f32 %v682, 0.2
        %v753 = vmul.f32 %v687, 0.2
        %v754 = vmul.f32 %v692, 0.2
        %v755 = vmul.f32 %v697, 0.2
        %v756 = vmul.f32 %v702, 0.2
        %v757 = vmul.f32 %v707, 0.2
        %v758 = vmul.f32 %v712, 0.2
        %v759 = vmul.f32 %v717, 0.2
        %v760 = vmul.f32 %v722, 0.2
        %v761 = vmul.f32 %v727, 0.2
        %v762 = vsel %vm730, %v652, %v746
        %v763 = vsel %vm731, %v657, %v747
        %v764 = vsel %vm732, %v662, %v748
        %v765 = vsel %vm733, %v667, %v749
        %v766 = vsel %vm734, %v672, %v750
        %v767 = vsel %vm735, %v677, %v751
        %v768 = vsel %vm736, %v682, %v752
        %v769 = vsel %vm737, %v687, %v753
        %v770 = vsel %vm738, %v692, %v754
        %v771 = vsel %vm739, %v697, %v755
        %v772 = vsel %vm740, %v702, %v756
        %v773 = vsel %vm741, %v707, %v757
        %v774 = vsel %vm742, %v712, %v758
        %v775 = vsel %vm743, %v717, %v759
        %v776 = vsel %vm744, %v722, %v760
        %v777 = vsel %vm745, %v727, %v761
        %vm778 = vcmask 261120
        %779 = vst.msk [vmem:[#allocation3 + $0x5] sm:$0xff] %vm778, %v762
        %780 = vst.msk [vmem:[#allocation3 + $0xd] sm:$0xff] %vm778, %v763
        %781 = vst.msk [vmem:[#allocation3 + $0x15] sm:$0xff] %vm778, %v764
        %782 = vst.msk [vmem:[#allocation3 + $0x1d] sm:$0xff] %vm778, %v765
        %783 = vst.msk [vmem:[#allocation3 + $0x25] sm:$0xff] %vm778, %v766
        %784 = vst.msk [vmem:[#allocation3 + $0x2d] sm:$0xff] %vm778, %v767
        %785 = vst.msk [vmem:[#allocation3 + $0x35] sm:$0xff] %vm778, %v768
        %786 = vst.msk [vmem:[#allocation3 + $0x3d] sm:$0xff] %vm778, %v769
        %787 = vst.msk [vmem:[#allocation3 + $0x45] sm:$0xff] %vm778, %v770
        %788 = vst.msk [vmem:[#allocation3 + $0x4d] sm:$0xff] %vm778, %v771
        %789 = vst.msk [vmem:[#allocation3 + $0x55] sm:$0xff] %vm778, %v772
        %790 = vst.msk [vmem:[#allocation3 + $0x5d] sm:$0xff] %vm778, %v773
        %791 = vst.msk [vmem:[#allocation3 + $0x65] sm:$0xff] %vm778, %v774
        %792 = vst.msk [vmem:[#allocation3 + $0x6d] sm:$0xff] %vm778, %v775
        %793 = vst.msk [vmem:[#allocation3 + $0x75] sm:$0xff] %vm778, %v776
        %794 = vst.msk [vmem:[#allocation3 + $0x7d] sm:$0xff] %vm778, %v777
        %v795 = vld [vmem:[#allocation3] sm:$0xff]
        %v796 = vld [vmem:[#allocation3 + $0x8] sm:$0xff]
        %v797 = vld [vmem:[#allocation3 + $0x10] sm:$0xff]
        %v798 = vld [vmem:[#allocation3 + $0x18] sm:$0xff]
        %v799 = vld [vmem:[#allocation3 + $0x20] sm:$0xff]
        %v800 = vld [vmem:[#allocation3 + $0x28] sm:$0xff]
        %v801 = vld [vmem:[#allocation3 + $0x30] sm:$0xff]
        %v802 = vld [vmem:[#allocation3 + $0x38] sm:$0xff]
        %v803 = vld [vmem:[#allocation3 + $0x40] sm:$0xff]
        %v804 = vld [vmem:[#allocation3 + $0x48] sm:$0xff]
        %v805 = vld [vmem:[#allocation3 + $0x50] sm:$0xff]
        %v806 = vld [vmem:[#allocation3 + $0x58] sm:$0xff]
        %v807 = vld [vmem:[#allocation3 + $0x60] sm:$0xff]
        %v808 = vld [vmem:[#allocation3 + $0x68] sm:$0xff]
        %v809 = vld [vmem:[#allocation3 + $0x70] sm:$0xff]
        %v810 = vld [vmem:[#allocation3 + $0x78] sm:$0xff]
        %812 = vset.pattern.permute.xlu0 0
        %813 = vperm.xlu0 %812, %v511
        %v814 = vpop.permute.xlu0 %813
        %817 = vset.pattern.permute.xlu0 0
        %818 = vperm.xlu0 %817, %v512
        %v819 = vpop.permute.xlu0 %818
        %822 = vset.pattern.permute.xlu0 0
        %823 = vperm.xlu0 %822, %v513
        %v824 = vpop.permute.xlu0 %823
        %827 = vset.pattern.permute.xlu0 0
        %828 = vperm.xlu0 %827, %v514
        %v829 = vpop.permute.xlu0 %828
        %832 = vset.pattern.permute.xlu0 0
        %833 = vperm.xlu0 %832, %v515
        %v834 = vpop.permute.xlu0 %833
        %837 = vset.pattern.permute.xlu0 0
        %838 = vperm.xlu0 %837, %v516
        %v839 = vpop.permute.xlu0 %838
        %842 = vset.pattern.permute.xlu0 0
        %843 = vperm.xlu0 %842, %v517
        %v844 = vpop.permute.xlu0 %843
        %847 = vset.pattern.permute.xlu0 0
        %848 = vperm.xlu0 %847, %v518
        %v849 = vpop.permute.xlu0 %848
        %852 = vset.pattern.permute.xlu0 0
        %853 = vperm.xlu0 %852, %v519
        %v854 = vpop.permute.xlu0 %853
        %857 = vset.pattern.permute.xlu0 0
        %858 = vperm.xlu0 %857, %v520
        %v859 = vpop.permute.xlu0 %858
        %862 = vset.pattern.permute.xlu0 0
        %863 = vperm.xlu0 %862, %v521
        %v864 = vpop.permute.xlu0 %863
        %867 = vset.pattern.permute.xlu0 0
        %868 = vperm.xlu0 %867, %v522
        %v869 = vpop.permute.xlu0 %868
        %872 = vset.pattern.permute.xlu0 0
        %873 = vperm.xlu0 %872, %v523
        %v874 = vpop.permute.xlu0 %873
        %877 = vset.pattern.permute.xlu0 0
        %878 = vperm.xlu0 %877, %v524
        %v879 = vpop.permute.xlu0 %878
        %882 = vset.pattern.permute.xlu0 0
        %883 = vperm.xlu0 %882, %v525
        %v884 = vpop.permute.xlu0 %883
        %887 = vset.pattern.permute.xlu0 0
        %888 = vperm.xlu0 %887, %v526
        %v889 = vpop.permute.xlu0 %888
        %v891 = vmul.f32 %v795, %v814
        %v892 = vmul.f32 %v796, %v819
        %v893 = vmul.f32 %v797, %v824
        %v894 = vmul.f32 %v798, %v829
        %v895 = vmul.f32 %v799, %v834
        %v896 = vmul.f32 %v800, %v839
        %v897 = vmul.f32 %v801, %v844
        %v898 = vmul.f32 %v802, %v849
        %v899 = vmul.f32 %v803, %v854
        %v900 = vmul.f32 %v804, %v859
        %v901 = vmul.f32 %v805, %v864
        %v902 = vmul.f32 %v806, %v869
        %v903 = vmul.f32 %v807, %v874
        %v904 = vmul.f32 %v808, %v879
        %v905 = vmul.f32 %v809, %v884
        %v906 = vmul.f32 %v810, %v889
        %v907 = vld [vmem:[%s446] sm:$0xff]
        %v908 = vld [vmem:[%s446 + $0x8] sm:$0xff]
        %s909 = scalar_lea.vmem %s446, 16
        %v910 = vld [vmem:[%s909] sm:$0xff]
        %v911 = vld [vmem:[%s909 + $0x8] sm:$0xff]
        %v912 = vld [vmem:[#allocation3 + $0x1] sm:$0xff]
        %v913 = vld [vmem:[#allocation3 + $0x9] sm:$0xff]
        %v914 = vld [vmem:[#allocation3 + $0x11] sm:$0xff]
        %v915 = vld [vmem:[#allocation3 + $0x19] sm:$0xff]
        %v916 = vld [vmem:[#allocation3 + $0x21] sm:$0xff]
        %v917 = vld [vmem:[#allocation3 + $0x29] sm:$0xff]
        %v918 = vld [vmem:[#allocation3 + $0x31] sm:$0xff]
        %v919 = vld [vmem:[#allocation3 + $0x39] sm:$0xff]
        %v920 = vld [vmem:[#allocation3 + $0x41] sm:$0xff]
        %v921 = vld [vmem:[#allocation3 + $0x49] sm:$0xff]
        %v922 = vld [vmem:[#allocation3 + $0x51] sm:$0xff]
        %v923 = vld [vmem:[#allocation3 + $0x59] sm:$0xff]
        %v924 = vld [vmem:[#allocation3 + $0x61] sm:$0xff]
        %v925 = vld [vmem:[#allocation3 + $0x69] sm:$0xff]
        %v926 = vld [vmem:[#allocation3 + $0x71] sm:$0xff]
        %v927 = vld [vmem:[#allocation3 + $0x79] sm:$0xff]
        %928 = vset.pattern.permute.xlu0 1
        %929 = vperm.xlu0 %928, %v511
        %v930 = vpop.permute.xlu0 %929
        %932 = vset.pattern.permute.xlu0 1
        %933 = vperm.xlu0 %932, %v512
        %v934 = vpop.permute.xlu0 %933
        %936 = vset.pattern.permute.xlu0 1
        %937 = vperm.xlu0 %936, %v513
        %v938 = vpop.permute.xlu0 %937
        %940 = vset.pattern.permute.xlu0 1
        %941 = vperm.xlu0 %940, %v514
        %v942 = vpop.permute.xlu0 %941
        %944 = vset.pattern.permute.xlu0 1
        %945 = vperm.xlu0 %944, %v515
        %v946 = vpop.permute.xlu0 %945
        %948 = vset.pattern.permute.xlu0 1
        %949 = vperm.xlu0 %948, %v516
        %v950 = vpop.permute.xlu0 %949
        %952 = vset.pattern.permute.xlu0 1
        %953 = vperm.xlu0 %952, %v517
        %v954 = vpop.permute.xlu0 %953
        %956 = vset.pattern.permute.xlu0 1
        %957 = vperm.xlu0 %956, %v518
        %v958 = vpop.permute.xlu0 %957
        %960 = vset.pattern.permute.xlu0 1
        %961 = vperm.xlu0 %960, %v519
        %v962 = vpop.permute.xlu0 %961
        %964 = vset.pattern.permute.xlu0 1
        %965 = vperm.xlu0 %964, %v520
        %v966 = vpop.permute.xlu0 %965
        %968 = vset.pattern.permute.xlu0 1
        %969 = vperm.xlu0 %968, %v521
        %v970 = vpop.permute.xlu0 %969
        %972 = vset.pattern.permute.xlu0 1
        %973 = vperm.xlu0 %972, %v522
        %v974 = vpop.permute.xlu0 %973
        %976 = vset.pattern.permute.xlu0 1
        %977 = vperm.xlu0 %976, %v523
        %v978 = vpop.permute.xlu0 %977
        %980 = vset.pattern.permute.xlu0 1
        %981 = vperm.xlu0 %980, %v524
        %v982 = vpop.permute.xlu0 %981
        %984 = vset.pattern.permute.xlu0 1
        %985 = vperm.xlu0 %984, %v525
        %v986 = vpop.permute.xlu0 %985
        %988 = vset.pattern.permute.xlu0 1
        %989 = vperm.xlu0 %988, %v526
        %v990 = vpop.permute.xlu0 %989
        %v992 = vmul.f32 %v912, %v930
        %v993 = vmul.f32 %v913, %v934
        %v994 = vmul.f32 %v914, %v938
        %v995 = vmul.f32 %v915, %v942
        %v996 = vmul.f32 %v916, %v946
        %v997 = vmul.f32 %v917, %v950
        %v998 = vmul.f32 %v918, %v954
        %v999 = vmul.f32 %v919, %v958
        %v1000 = vmul.f32 %v920, %v962
        %v1001 = vmul.f32 %v921, %v966
        %v1002 = vmul.f32 %v922, %v970
        %v1003 = vmul.f32 %v923, %v974
        %v1004 = vmul.f32 %v924, %v978
        %v1005 = vmul.f32 %v925, %v982
        %v1006 = vmul.f32 %v926, %v986
        %v1007 = vmul.f32 %v927, %v990
        %s1008 = scalar_lea.vmem %s446, 32
        %v1009 = vld [vmem:[%s1008] sm:$0xff]
        %v1010 = vld [vmem:[%s1008 + $0x8] sm:$0xff]
        %v1012 = vsel %vm536, %v992, 0
        %v1015 = vsel %vm536, %v993, 0
        %v1018 = vsel %vm536, %v994, 0
        %v1021 = vsel %vm536, %v995, 0
        %v1024 = vsel %vm536, %v996, 0
        %v1027 = vsel %vm536, %v997, 0
        %v1030 = vsel %vm536, %v998, 0
        %v1033 = vsel %vm536, %v999, 0
        %v1036 = vsel %vm536, %v1000, 0
        %v1039 = vsel %vm536, %v1001, 0
        %v1042 = vsel %vm536, %v1002, 0
        %v1045 = vsel %vm536, %v1003, 0
        %v1048 = vsel %vm536, %v1004, 0
        %v1051 = vsel %vm536, %v1005, 0
        %v1054 = vsel %vm536, %v1006, 0
        %v1057 = vsel %vm536, %v1007, 0
        %1059 = vmatprep.subr.mxu0 0.0
        %1060 = vmatpush1.msra.mxu0 %v1009
        %1061 = vmatprep.subr.mxu0 0.0
        %1062 = vmatpush1.msra.mxu0 %v1010
        %1063 = vmatprep.subr.mxu0 0.0
        %1064 = vmatpush1.msra.mxu0 0.0
        %1065 = vmatprep.subr.mxu0 0.0
        %1066 = vmatpush1.msra.mxu0 0.0
        %1067 = vmatprep.subr.mxu0 0.0
        %1068 = vmatpush1.msra.mxu0 0.0
        %1069 = vmatprep.subr.mxu0 0.0
        %1070 = vmatpush1.msra.mxu0 0.0
        %1071 = vmatprep.subr.mxu0 0.0
        %1072 = vmatpush1.msra.mxu0 0.0
        %1073 = vmatprep.subr.mxu0 0.0
        %1074 = vmatpush1.msra.mxu0 0.0
        %1075 = vmatprep.subr.mxu0 0.0
        %1076 = vmatpush1.msra.mxu0 0.0
        %1077 = vmatprep.subr.mxu0 0.0
        %1078 = vmatpush1.msra.mxu0 0.0
        %1079 = vmatprep.subr.mxu0 0.0
        %1080 = vmatpush1.msra.mxu0 0.0
        %1081 = vmatprep.subr.mxu0 0.0
        %1082 = vmatpush1.msra.mxu0 0.0
        %1083 = vmatprep.subr.mxu0 0.0
        %1084 = vmatpush1.msra.mxu0 0.0
        %1085 = vmatprep.subr.mxu0 0.0
        %1086 = vmatpush1.msra.mxu0 0.0
        %1087 = vmatprep.subr.mxu0 0.0
        %1088 = vmatpush1.msra.mxu0 0.0
        %1089 = vmatprep.subr.mxu0 0.0
        %1090 = vmatpush1.msra.mxu0 0.0
        %1091 = vmatprep.subr.mxu0 0.0
        %1092 = vmatpush1.msra.mxu0 0.0
        %1093 = vmatprep.subr.mxu0 0.0
        %1094 = vmatpush1.msra.mxu0 0.0
        %1095 = vmatprep.subr.mxu0 0.0
        %1096 = vmatpush1.msra.mxu0 0.0
        %1097 = vmatprep.subr.mxu0 0.0
        %1098 = vmatpush1.msra.mxu0 0.0
        %1099 = vmatprep.subr.mxu0 0.0
        %1100 = vmatpush1.msra.mxu0 0.0
        %1101 = vmatprep.subr.mxu0 0.0
        %1102 = vmatpush1.msra.mxu0 0.0
        %1103 = vmatprep.subr.mxu0 0.0
        %1104 = vmatpush1.msra.mxu0 0.0
        %1105 = vmatprep.subr.mxu0 0.0
        %1106 = vmatpush1.msra.mxu0 0.0
        %1107 = vmatprep.subr.mxu0 0.0
        %1108 = vmatpush1.msra.mxu0 0.0
        %1109 = vmatprep.subr.mxu0 0.0
        %1110 = vmatpush1.msra.mxu0 0.0
        %1111 = vmatprep.subr.mxu0 0.0
        %1112 = vmatpush1.msra.mxu0 0.0
        %1113 = vmatprep.subr.mxu0 0.0
        %1114 = vmatpush1.msra.mxu0 0.0
        %1115 = vmatprep.subr.mxu0 0.0
        %1116 = vmatpush1.msra.mxu0 0.0
        %1117 = vmatprep.subr.mxu0 0.0
        %1118 = vmatpush1.msra.mxu0 0.0
        %1119 = vmatprep.subr.mxu0 0.0
        %1120 = vmatpush1.msra.mxu0 0.0
        %1121 = vmatprep.subr.mxu0 0.0
        %1122 = vmatpush1.msra.mxu0 0.0
        %1123 = vmatprep.mubr.f32.mxu0 0.0
        %1124 = vmatmul.mubr.f32.gmra.mrb[0].mxu0 %v1012
        %v1125 = vpop.f32.mrb[0].mxu0
        %v1126 = vadd.f32 0.0, %v1125
        %v1127 = vpop.f32.mrb[0].mxu0
        %1128 = vmatprep.mubr.f32.mxu0 0.0
        %1129 = vmatmul.mubr.f32.gmra.mrb[0].mxu0 %v1015
        %v1130 = vpop.f32.mrb[0].mxu0
        %v1131 = vadd.f32 0.0, %v1130
        %v1132 = vpop.f32.mrb[0].mxu0
        %1133 = vmatprep.mubr.f32.mxu0 0.0
        %1134 = vmatmul.mubr.f32.gmra.mrb[0].mxu0 %v1018
        %v1135 = vpop.f32.mrb[0].mxu0
        %v1136 = vadd.f32 0.0, %v1135
        %v1137 = vpop.f32.mrb[0].mxu0
        %1138 = vmatprep.mubr.f32.mxu0 0.0
        %1139 = vmatmul.mubr.f32.gmra.mrb[0].mxu0 %v1021
        %v1140 = vpop.f32.mrb[0].mxu0
        %v1141 = vadd.f32 0.0, %v1140
        %v1142 = vpop.f32.mrb[0].mxu0
        %1143 = vmatprep.mubr.f32.mxu0 0.0
        %1144 = vmatmul.mubr.f32.gmra.mrb[0].mxu0 %v1024
        %v1145 = vpop.f32.mrb[0].mxu0
        %v1146 = vadd.f32 0.0, %v1145
        %v1147 = vpop.f32.mrb[0].mxu0
        %1148 = vmatprep.mubr.f32.mxu0 0.0
        %1149 = vmatmul.mubr.f32.gmra.mrb[0].mxu0 %v1027
        %v1150 = vpop.f32.mrb[0].mxu0
        %v1151 = vadd.f32 0.0, %v1150
        %v1152 = vpop.f32.mrb[0].mxu0
        %1153 = vmatprep.mubr.f32.mxu0 0.0
        %1154 = vmatmul.mubr.f32.gmra.mrb[0].mxu0 %v1030
        %v1155 = vpop.f32.mrb[0].mxu0
        %v1156 = vadd.f32 0.0, %v1155
        %v1157 = vpop.f32.mrb[0].mxu0
        %1158 = vmatprep.mubr.f32.mxu0 0.0
        %1159 = vmatmul.mubr.f32.gmra.mrb[0].mxu0 %v1033
        %v1160 = vpop.f32.mrb[0].mxu0
        %v1161 = vadd.f32 0.0, %v1160
        %v1162 = vpop.f32.mrb[0].mxu0
        %1163 = vmatprep.mubr.f32.mxu0 0.0
        %1164 = vmatmul.mubr.f32.gmra.mrb[0].mxu0 %v1036
        %v1165 = vpop.f32.mrb[0].mxu0
        %v1166 = vadd.f32 0.0, %v1165
        %v1167 = vpop.f32.mrb[0].mxu0
        %1168 = vmatprep.mubr.f32.mxu0 0.0
        %1169 = vmatmul.mubr.f32.gmra.mrb[0].mxu0 %v1039
        %v1170 = vpop.f32.mrb[0].mxu0
        %v1171 = vadd.f32 0.0, %v1170
        %v1172 = vpop.f32.mrb[0].mxu0
        %1173 = vmatprep.mubr.f32.mxu0 0.0
        %1174 = vmatmul.mubr.f32.gmra.mrb[0].mxu0 %v1042
        %v1175 = vpop.f32.mrb[0].mxu0
        %v1176 = vadd.f32 0.0, %v1175
        %v1177 = vpop.f32.mrb[0].mxu0
        %1178 = vmatprep.mubr.f32.mxu0 0.0
        %1179 = vmatmul.mubr.f32.gmra.mrb[0].mxu0 %v1045
        %v1180 = vpop.f32.mrb[0].mxu0
        %v1181 = vadd.f32 0.0, %v1180
        %v1182 = vpop.f32.mrb[0].mxu0
        %1183 = vmatprep.mubr.f32.mxu0 0.0
        %1184 = vmatmul.mubr.f32.gmra.mrb[0].mxu0 %v1048
        %v1185 = vpop.f32.mrb[0].mxu0
        %v1186 = vadd.f32 0.0, %v1185
        %v1187 = vpop.f32.mrb[0].mxu0
        %1188 = vmatprep.mubr.f32.mxu0 0.0
        %1189 = vmatmul.mubr.f32.gmra.mrb[0].mxu0 %v1051
        %v1190 = vpop.f32.mrb[0].mxu0
        %v1191 = vadd.f32 0.0, %v1190
        %v1192 = vpop.f32.mrb[0].mxu0
        %1193 = vmatprep.mubr.f32.mxu0 0.0
        %1194 = vmatmul.mubr.f32.gmra.mrb[0].mxu0 %v1054
        %v1195 = vpop.f32.mrb[0].mxu0
        %v1196 = vadd.f32 0.0, %v1195
        %v1197 = vpop.f32.mrb[0].mxu0
        %1198 = vmatprep.mubr.f32.mxu0 0.0
        %1199 = vmatmul.mubr.f32.gmra.mrb[0].mxu0 %v1057
        %v1200 = vpop.f32.mrb[0].mxu0
        %v1201 = vadd.f32 0.0, %v1200
        %v1202 = vpop.f32.mrb[0].mxu0
        %1203 = vdwg.mxu0
        %v1205 = vsel %vm536, %v891, 0
        %v1208 = vsel %vm536, %v892, 0
        %v1211 = vsel %vm536, %v893, 0
        %v1214 = vsel %vm536, %v894, 0
        %v1217 = vsel %vm536, %v895, 0
        %v1220 = vsel %vm536, %v896, 0
        %v1223 = vsel %vm536, %v897, 0
        %v1226 = vsel %vm536, %v898, 0
        %v1229 = vsel %vm536, %v899, 0
        %v1232 = vsel %vm536, %v900, 0
        %v1235 = vsel %vm536, %v901, 0
        %v1238 = vsel %vm536, %v902, 0
        %v1241 = vsel %vm536, %v903, 0
        %v1244 = vsel %vm536, %v904, 0
        %v1247 = vsel %vm536, %v905, 0
        %v1250 = vsel %vm536, %v906, 0
        %1252 = vmatprep.subr.mxu0 0.0
        %1253 = vmatpush1.msra.mxu0 %v907
        %1254 = vmatprep.subr.mxu0 0.0
        %1255 = vmatpush1.msra.mxu0 %v908
        %1256 = vmatprep.subr.mxu0 0.0
        %1257 = vmatpush1.msra.mxu0 0.0
        %1258 = vmatprep.subr.mxu0 0.0
        %1259 = vmatpush1.msra.mxu0 0.0
        %1260 = vmatprep.subr.mxu0 0.0
        %1261 = vmatpush1.msra.mxu0 0.0
        %1262 = vmatprep.subr.mxu0 0.0
        %1263 = vmatpush1.msra.mxu0 0.0
        %1264 = vmatprep.subr.mxu0 0.0
        %1265 = vmatpush1.msra.mxu0 0.0
        %1266 = vmatprep.subr.mxu0 0.0
        %1267 = vmatpush1.msra.mxu0 0.0
        %1268 = vmatprep.subr.mxu0 0.0
        %1269 = vmatpush1.msra.mxu0 0.0
        %1270 = vmatprep.subr.mxu0 0.0
        %1271 = vmatpush1.msra.mxu0 0.0
        %1272 = vmatprep.subr.mxu0 0.0
        %1273 = vmatpush1.msra.mxu0 0.0
        %1274 = vmatprep.subr.mxu0 0.0
        %1275 = vmatpush1.msra.mxu0 0.0
        %1276 = vmatprep.subr.mxu0 0.0
        %1277 = vmatpush1.msra.mxu0 0.0
        %1278 = vmatprep.subr.mxu0 0.0
        %1279 = vmatpush1.msra.mxu0 0.0
        %1280 = vmatprep.subr.mxu0 0.0
        %1281 = vmatpush1.msra.mxu0 0.0
        %1282 = vmatprep.subr.mxu0 0.0
        %1283 = vmatpush1.msra.mxu0 0.0
        %1284 = vmatprep.subr.mxu0 0.0
        %1285 = vmatpush1.msra.mxu0 0.0
        %1286 = vmatprep.subr.mxu0 0.0
        %1287 = vmatpush1.msra.mxu0 0.0
        %1288 = vmatprep.subr.mxu0 0.0
        %1289 = vmatpush1.msra.mxu0 0.0
        %1290 = vmatprep.subr.mxu0 0.0
        %1291 = vmatpush1.msra.mxu0 0.0
        %1292 = vmatprep.subr.mxu0 0.0
        %1293 = vmatpush1.msra.mxu0 0.0
        %1294 = vmatprep.subr.mxu0 0.0
        %1295 = vmatpush1.msra.mxu0 0.0
        %1296 = vmatprep.subr.mxu0 0.0
        %1297 = vmatpush1.msra.mxu0 0.0
        %1298 = vmatprep.subr.mxu0 0.0
        %1299 = vmatpush1.msra.mxu0 0.0
        %1300 = vmatprep.subr.mxu0 0.0
        %1301 = vmatpush1.msra.mxu0 0.0
        %1302 = vmatprep.subr.mxu0 0.0
        %1303 = vmatpush1.msra.mxu0 0.0
        %1304 = vmatprep.subr.mxu0 0.0
        %1305 = vmatpush1.msra.mxu0 0.0
        %1306 = vmatprep.subr.mxu0 0.0
        %1307 = vmatpush1.msra.mxu0 0.0
        %1308 = vmatprep.subr.mxu0 0.0
        %1309 = vmatpush1.msra.mxu0 0.0
        %1310 = vmatprep.subr.mxu0 0.0
        %1311 = vmatpush1.msra.mxu0 0.0
        %1312 = vmatprep.subr.mxu0 0.0
        %1313 = vmatpush1.msra.mxu0 0.0
        %1314 = vmatprep.subr.mxu0 0.0
        %1315 = vmatpush1.msra.mxu0 0.0
        %1316 = vmatprep.mubr.f32.mxu0 0.0
        %1317 = vmatmul.mubr.f32.gmra.mrb[0].mxu0 %v1205
        %v1318 = vpop.f32.mrb[0].mxu0
        %v1319 = vadd.f32 %v1126, %v1318
        %v1320 = vpop.f32.mrb[0].mxu0
        %1321 = vmatprep.mubr.f32.mxu0 0.0
        %1322 = vmatmul.mubr.f32.gmra.mrb[0].mxu0 %v1208
        %v1323 = vpop.f32.mrb[0].mxu0
        %v1324 = vadd.f32 %v1131, %v1323
        %v1325 = vpop.f32.mrb[0].mxu0
        %1326 = vmatprep.mubr.f32.mxu0 0.0
        %1327 = vmatmul.mubr.f32.gmra.mrb[0].mxu0 %v1211
        %v1328 = vpop.f32.mrb[0].mxu0
        %v1329 = vadd.f32 %v1136, %v1328
        %v1330 = vpop.f32.mrb[0].mxu0
        %1331 = vmatprep.mubr.f32.mxu0 0.0
        %1332 = vmatmul.mubr.f32.gmra.mrb[0].mxu0 %v1214
        %v1333 = vpop.f32.mrb[0].mxu0
        %v1334 = vadd.f32 %v1141, %v1333
        %v1335 = vpop.f32.mrb[0].mxu0
        %1336 = vmatprep.mubr.f32.mxu0 0.0
        %1337 = vmatmul.mubr.f32.gmra.mrb[0].mxu0 %v1217
        %v1338 = vpop.f32.mrb[0].mxu0
        %v1339 = vadd.f32 %v1146, %v1338
        %v1340 = vpop.f32.mrb[0].mxu0
        %1341 = vmatprep.mubr.f32.mxu0 0.0
        %1342 = vmatmul.mubr.f32.gmra.mrb[0].mxu0 %v1220
        %v1343 = vpop.f32.mrb[0].mxu0
        %v1344 = vadd.f32 %v1151, %v1343
        %v1345 = vpop.f32.mrb[0].mxu0
        %1346 = vmatprep.mubr.f32.mxu0 0.0
        %1347 = vmatmul.mubr.f32.gmra.mrb[0].mxu0 %v1223
        %v1348 = vpop.f32.mrb[0].mxu0
        %v1349 = vadd.f32 %v1156, %v1348
        %v1350 = vpop.f32.mrb[0].mxu0
        %1351 = vmatprep.mubr.f32.mxu0 0.0
        %1352 = vmatmul.mubr.f32.gmra.mrb[0].mxu0 %v1226
        %v1353 = vpop.f32.mrb[0].mxu0
        %v1354 = vadd.f32 %v1161, %v1353
        %v1355 = vpop.f32.mrb[0].mxu0
        %1356 = vmatprep.mubr.f32.mxu0 0.0
        %1357 = vmatmul.mubr.f32.gmra.mrb[0].mxu0 %v1229
        %v1358 = vpop.f32.mrb[0].mxu0
        %v1359 = vadd.f32 %v1166, %v1358
        %v1360 = vpop.f32.mrb[0].mxu0
        %1361 = vmatprep.mubr.f32.mxu0 0.0
        %1362 = vmatmul.mubr.f32.gmra.mrb[0].mxu0 %v1232
        %v1363 = vpop.f32.mrb[0].mxu0
        %v1364 = vadd.f32 %v1171, %v1363
        %v1365 = vpop.f32.mrb[0].mxu0
        %1366 = vmatprep.mubr.f32.mxu0 0.0
        %1367 = vmatmul.mubr.f32.gmra.mrb[0].mxu0 %v1235
        %v1368 = vpop.f32.mrb[0].mxu0
        %v1369 = vadd.f32 %v1176, %v1368
        %v1370 = vpop.f32.mrb[0].mxu0
        %1371 = vmatprep.mubr.f32.mxu0 0.0
        %1372 = vmatmul.mubr.f32.gmra.mrb[0].mxu0 %v1238
        %v1373 = vpop.f32.mrb[0].mxu0
        %v1374 = vadd.f32 %v1181, %v1373
        %v1375 = vpop.f32.mrb[0].mxu0
        %1376 = vmatprep.mubr.f32.mxu0 0.0
        %1377 = vmatmul.mubr.f32.gmra.mrb[0].mxu0 %v1241
        %v1378 = vpop.f32.mrb[0].mxu0
        %v1379 = vadd.f32 %v1186, %v1378
        %v1380 = vpop.f32.mrb[0].mxu0
        %1381 = vmatprep.mubr.f32.mxu0 0.0
        %1382 = vmatmul.mubr.f32.gmra.mrb[0].mxu0 %v1244
        %v1383 = vpop.f32.mrb[0].mxu0
        %v1384 = vadd.f32 %v1191, %v1383
        %v1385 = vpop.f32.mrb[0].mxu0
        %1386 = vmatprep.mubr.f32.mxu0 0.0
        %1387 = vmatmul.mubr.f32.gmra.mrb[0].mxu0 %v1247
        %v1388 = vpop.f32.mrb[0].mxu0
        %v1389 = vadd.f32 %v1196, %v1388
        %v1390 = vpop.f32.mrb[0].mxu0
        %1391 = vmatprep.mubr.f32.mxu0 0.0
        %1392 = vmatmul.mubr.f32.gmra.mrb[0].mxu0 %v1250
        %v1393 = vpop.f32.mrb[0].mxu0
        %v1394 = vadd.f32 %v1201, %v1393
        %v1395 = vpop.f32.mrb[0].mxu0
        %1396 = vdwg.mxu0
        %s1397 = scalar_lea.vmem %s446, 48
        %v1398 = vld [vmem:[%s1397] sm:$0xff]
        %v1399 = vld [vmem:[%s1397 + $0x8] sm:$0xff]
        %1400 = vrot.lane.b32.xlu0 %v992, 112
        %v1401 = vpop.permute.xlu0 %1400
        %1402 = vrot.lane.b32.xlu0 %v993, 112
        %v1403 = vpop.permute.xlu0 %1402
        %1404 = vrot.lane.b32.xlu0 %v994, 112
        %v1405 = vpop.permute.xlu0 %1404
        %1406 = vrot.lane.b32.xlu0 %v995, 112
        %v1407 = vpop.permute.xlu0 %1406
        %1408 = vrot.lane.b32.xlu0 %v996, 112
        %v1409 = vpop.permute.xlu0 %1408
        %1410 = vrot.lane.b32.xlu0 %v997, 112
        %v1411 = vpop.permute.xlu0 %1410
        %1412 = vrot.lane.b32.xlu0 %v998, 112
        %v1413 = vpop.permute.xlu0 %1412
        %1414 = vrot.lane.b32.xlu0 %v999, 112
        %v1415 = vpop.permute.xlu0 %1414
        %1416 = vrot.lane.b32.xlu0 %v1000, 112
        %v1417 = vpop.permute.xlu0 %1416
        %1418 = vrot.lane.b32.xlu0 %v1001, 112
        %v1419 = vpop.permute.xlu0 %1418
        %1420 = vrot.lane.b32.xlu0 %v1002, 112
        %v1421 = vpop.permute.xlu0 %1420
        %1422 = vrot.lane.b32.xlu0 %v1003, 112
        %v1423 = vpop.permute.xlu0 %1422
        %1424 = vrot.lane.b32.xlu0 %v1004, 112
        %v1425 = vpop.permute.xlu0 %1424
        %1426 = vrot.lane.b32.xlu0 %v1005, 112
        %v1427 = vpop.permute.xlu0 %1426
        %1428 = vrot.lane.b32.xlu0 %v1006, 112
        %v1429 = vpop.permute.xlu0 %1428
        %1430 = vrot.lane.b32.xlu0 %v1007, 112
        %v1431 = vpop.permute.xlu0 %1430
        %v1432 = vsel %vm536, %v1401, 0
        %v1434 = vsel %vm536, %v1403, 0
        %v1436 = vsel %vm536, %v1405, 0
        %v1438 = vsel %vm536, %v1407, 0
        %v1440 = vsel %vm536, %v1409, 0
        %v1442 = vsel %vm536, %v1411, 0
        %v1444 = vsel %vm536, %v1413, 0
        %v1446 = vsel %vm536, %v1415, 0
        %v1448 = vsel %vm536, %v1417, 0
        %v1450 = vsel %vm536, %v1419, 0
        %v1452 = vsel %vm536, %v1421, 0
        %v1454 = vsel %vm536, %v1423, 0
        %v1456 = vsel %vm536, %v1425, 0
        %v1458 = vsel %vm536, %v1427, 0
        %v1460 = vsel %vm536, %v1429, 0
        %v1462 = vsel %vm536, %v1431, 0
        %1464 = vmatprep.subr.mxu0 0.0
        %1465 = vmatpush1.msra.mxu0 %v1398
        %1466 = vmatprep.subr.mxu0 0.0
        %1467 = vmatpush1.msra.mxu0 %v1399
        %1468 = vmatprep.subr.mxu0 0.0
        %1469 = vmatpush1.msra.mxu0 0.0
        %1470 = vmatprep.subr.mxu0 0.0
        %1471 = vmatpush1.msra.mxu0 0.0
        %1472 = vmatprep.subr.mxu0 0.0
        %1473 = vmatpush1.msra.mxu0 0.0
        %1474 = vmatprep.subr.mxu0 0.0
        %1475 = vmatpush1.msra.mxu0 0.0
        %1476 = vmatprep.subr.mxu0 0.0
        %1477 = vmatpush1.msra.mxu0 0.0
        %1478 = vmatprep.subr.mxu0 0.0
        %1479 = vmatpush1.msra.mxu0 0.0
        %1480 = vmatprep.subr.mxu0 0.0
        %1481 = vmatpush1.msra.mxu0 0.0
        %1482 = vmatprep.subr.mxu0 0.0
        %1483 = vmatpush1.msra.mxu0 0.0
        %1484 = vmatprep.subr.mxu0 0.0
        %1485 = vmatpush1.msra.mxu0 0.0
        %1486 = vmatprep.subr.mxu0 0.0
        %1487 = vmatpush1.msra.mxu0 0.0
        %1488 = vmatprep.subr.mxu0 0.0
        %1489 = vmatpush1.msra.mxu0 0.0
        %1490 = vmatprep.subr.mxu0 0.0
        %1491 = vmatpush1.msra.mxu0 0.0
        %1492 = vmatprep.subr.mxu0 0.0
        %1493 = vmatpush1.msra.mxu0 0.0
        %1494 = vmatprep.subr.mxu0 0.0
        %1495 = vmatpush1.msra.mxu0 0.0
        %1496 = vmatprep.subr.mxu0 0.0
        %1497 = vmatpush1.msra.mxu0 0.0
        %1498 = vmatprep.subr.mxu0 0.0
        %1499 = vmatpush1.msra.mxu0 0.0
        %1500 = vmatprep.subr.mxu0 0.0
        %1501 = vmatpush1.msra.mxu0 0.0
        %1502 = vmatprep.subr.mxu0 0.0
        %1503 = vmatpush1.msra.mxu0 0.0
        %1504 = vmatprep.subr.mxu0 0.0
        %1505 = vmatpush1.msra.mxu0 0.0
        %1506 = vmatprep.subr.mxu0 0.0
        %1507 = vmatpush1.msra.mxu0 0.0
        %1508 = vmatprep.subr.mxu0 0.0
        %1509 = vmatpush1.msra.mxu0 0.0
        %1510 = vmatprep.subr.mxu0 0.0
        %1511 = vmatpush1.msra.mxu0 0.0
        %1512 = vmatprep.subr.mxu0 0.0
        %1513 = vmatpush1.msra.mxu0 0.0
        %1514 = vmatprep.subr.mxu0 0.0
        %1515 = vmatpush1.msra.mxu0 0.0
        %1516 = vmatprep.subr.mxu0 0.0
        %1517 = vmatpush1.msra.mxu0 0.0
        %1518 = vmatprep.subr.mxu0 0.0
        %1519 = vmatpush1.msra.mxu0 0.0
        %1520 = vmatprep.subr.mxu0 0.0
        %1521 = vmatpush1.msra.mxu0 0.0
        %1522 = vmatprep.subr.mxu0 0.0
        %1523 = vmatpush1.msra.mxu0 0.0
        %1524 = vmatprep.subr.mxu0 0.0
        %1525 = vmatpush1.msra.mxu0 0.0
        %1526 = vmatprep.subr.mxu0 0.0
        %1527 = vmatpush1.msra.mxu0 0.0
        %1528 = vmatprep.mubr.f32.mxu0 0.0
        %1529 = vmatmul.mubr.f32.gmra.mrb[0].mxu0 %v1432
        %v1530 = vpop.f32.mrb[0].mxu0
        %v1531 = vadd.f32 0.0, %v1530
        %v1532 = vpop.f32.mrb[0].mxu0
        %1533 = vmatprep.mubr.f32.mxu0 0.0
        %1534 = vmatmul.mubr.f32.gmra.mrb[0].mxu0 %v1434
        %v1535 = vpop.f32.mrb[0].mxu0
        %v1536 = vadd.f32 0.0, %v1535
        %v1537 = vpop.f32.mrb[0].mxu0
        %1538 = vmatprep.mubr.f32.mxu0 0.0
        %1539 = vmatmul.mubr.f32.gmra.mrb[0].mxu0 %v1436
        %v1540 = vpop.f32.mrb[0].mxu0
        %v1541 = vadd.f32 0.0, %v1540
        %v1542 = vpop.f32.mrb[0].mxu0
        %1543 = vmatprep.mubr.f32.mxu0 0.0
        %1544 = vmatmul.mubr.f32.gmra.mrb[0].mxu0 %v1438
        %v1545 = vpop.f32.mrb[0].mxu0
        %v1546 = vadd.f32 0.0, %v1545
        %v1547 = vpop.f32.mrb[0].mxu0
        %1548 = vmatprep.mubr.f32.mxu0 0.0
        %1549 = vmatmul.mubr.f32.gmra.mrb[0].mxu0 %v1440
        %v1550 = vpop.f32.mrb[0].mxu0
        %v1551 = vadd.f32 0.0, %v1550
        %v1552 = vpop.f32.mrb[0].mxu0
        %1553 = vmatprep.mubr.f32.mxu0 0.0
        %1554 = vmatmul.mubr.f32.gmra.mrb[0].mxu0 %v1442
        %v1555 = vpop.f32.mrb[0].mxu0
        %v1556 = vadd.f32 0.0, %v1555
        %v1557 = vpop.f32.mrb[0].mxu0
        %1558 = vmatprep.mubr.f32.mxu0 0.0
        %1559 = vmatmul.mubr.f32.gmra.mrb[0].mxu0 %v1444
        %v1560 = vpop.f32.mrb[0].mxu0
        %v1561 = vadd.f32 0.0, %v1560
        %v1562 = vpop.f32.mrb[0].mxu0
        %1563 = vmatprep.mubr.f32.mxu0 0.0
        %1564 = vmatmul.mubr.f32.gmra.mrb[0].mxu0 %v1446
        %v1565 = vpop.f32.mrb[0].mxu0
        %v1566 = vadd.f32 0.0, %v1565
        %v1567 = vpop.f32.mrb[0].mxu0
        %1568 = vmatprep.mubr.f32.mxu0 0.0
        %1569 = vmatmul.mubr.f32.gmra.mrb[0].mxu0 %v1448
        %v1570 = vpop.f32.mrb[0].mxu0
        %v1571 = vadd.f32 0.0, %v1570
        %v1572 = vpop.f32.mrb[0].mxu0
        %1573 = vmatprep.mubr.f32.mxu0 0.0
        %1574 = vmatmul.mubr.f32.gmra.mrb[0].mxu0 %v1450
        %v1575 = vpop.f32.mrb[0].mxu0
        %v1576 = vadd.f32 0.0, %v1575
        %v1577 = vpop.f32.mrb[0].mxu0
        %1578 = vmatprep.mubr.f32.mxu0 0.0
        %1579 = vmatmul.mubr.f32.gmra.mrb[0].mxu0 %v1452
        %v1580 = vpop.f32.mrb[0].mxu0
        %v1581 = vadd.f32 0.0, %v1580
        %v1582 = vpop.f32.mrb[0].mxu0
        %1583 = vmatprep.mubr.f32.mxu0 0.0
        %1584 = vmatmul.mubr.f32.gmra.mrb[0].mxu0 %v1454
        %v1585 = vpop.f32.mrb[0].mxu0
        %v1586 = vadd.f32 0.0, %v1585
        %v1587 = vpop.f32.mrb[0].mxu0
        %1588 = vmatprep.mubr.f32.mxu0 0.0
        %1589 = vmatmul.mubr.f32.gmra.mrb[0].mxu0 %v1456
        %v1590 = vpop.f32.mrb[0].mxu0
        %v1591 = vadd.f32 0.0, %v1590
        %v1592 = vpop.f32.mrb[0].mxu0
        %1593 = vmatprep.mubr.f32.mxu0 0.0
        %1594 = vmatmul.mubr.f32.gmra.mrb[0].mxu0 %v1458
        %v1595 = vpop.f32.mrb[0].mxu0
        %v1596 = vadd.f32 0.0, %v1595
        %v1597 = vpop.f32.mrb[0].mxu0
        %1598 = vmatprep.mubr.f32.mxu0 0.0
        %1599 = vmatmul.mubr.f32.gmra.mrb[0].mxu0 %v1460
        %v1600 = vpop.f32.mrb[0].mxu0
        %v1601 = vadd.f32 0.0, %v1600
        %v1602 = vpop.f32.mrb[0].mxu0
        %1603 = vmatprep.mubr.f32.mxu0 0.0
        %1604 = vmatmul.mubr.f32.gmra.mrb[0].mxu0 %v1462
        %v1605 = vpop.f32.mrb[0].mxu0
        %v1606 = vadd.f32 0.0, %v1605
        %v1607 = vpop.f32.mrb[0].mxu0
        %1608 = vdwg.mxu0
        %1609 = vrot.lane.b32.xlu0 %v891, 112
        %v1610 = vpop.permute.xlu0 %1609
        %1611 = vrot.lane.b32.xlu0 %v892, 112
        %v1612 = vpop.permute.xlu0 %1611
        %1613 = vrot.lane.b32.xlu0 %v893, 112
        %v1614 = vpop.permute.xlu0 %1613
        %1615 = vrot.lane.b32.xlu0 %v894, 112
        %v1616 = vpop.permute.xlu0 %1615
        %1617 = vrot.lane.b32.xlu0 %v895, 112
        %v1618 = vpop.permute.xlu0 %1617
        %1619 = vrot.lane.b32.xlu0 %v896, 112
        %v1620 = vpop.permute.xlu0 %1619
        %1621 = vrot.lane.b32.xlu0 %v897, 112
        %v1622 = vpop.permute.xlu0 %1621
        %1623 = vrot.lane.b32.xlu0 %v898, 112
        %v1624 = vpop.permute.xlu0 %1623
        %1625 = vrot.lane.b32.xlu0 %v899, 112
        %v1626 = vpop.permute.xlu0 %1625
        %1627 = vrot.lane.b32.xlu0 %v900, 112
        %v1628 = vpop.permute.xlu0 %1627
        %1629 = vrot.lane.b32.xlu0 %v901, 112
        %v1630 = vpop.permute.xlu0 %1629
        %1631 = vrot.lane.b32.xlu0 %v902, 112
        %v1632 = vpop.permute.xlu0 %1631
        %1633 = vrot.lane.b32.xlu0 %v903, 112
        %v1634 = vpop.permute.xlu0 %1633
        %1635 = vrot.lane.b32.xlu0 %v904, 112
        %v1636 = vpop.permute.xlu0 %1635
        %1637 = vrot.lane.b32.xlu0 %v905, 112
        %v1638 = vpop.permute.xlu0 %1637
        %1639 = vrot.lane.b32.xlu0 %v906, 112
        %v1640 = vpop.permute.xlu0 %1639
        %v1641 = vsel %vm536, %v1610, 0
        %v1643 = vsel %vm536, %v1612, 0
        %v1645 = vsel %vm536, %v1614, 0
        %v1647 = vsel %vm536, %v1616, 0
        %v1649 = vsel %vm536, %v1618, 0
        %v1651 = vsel %vm536, %v1620, 0
        %v1653 = vsel %vm536, %v1622, 0
        %v1655 = vsel %vm536, %v1624, 0
        %v1657 = vsel %vm536, %v1626, 0
        %v1659 = vsel %vm536, %v1628, 0
        %v1661 = vsel %vm536, %v1630, 0
        %v1663 = vsel %vm536, %v1632, 0
        %v1665 = vsel %vm536, %v1634, 0
        %v1667 = vsel %vm536, %v1636, 0
        %v1669 = vsel %vm536, %v1638, 0
        %v1671 = vsel %vm536, %v1640, 0
        %1673 = vmatprep.subr.mxu0 0.0
        %1674 = vmatpush1.msra.mxu0 %v910
        %1675 = vmatprep.subr.mxu0 0.0
        %1676 = vmatpush1.msra.mxu0 %v911
        %1677 = vmatprep.subr.mxu0 0.0
        %1678 = vmatpush1.msra.mxu0 0.0
        %1679 = vmatprep.subr.mxu0 0.0
        %1680 = vmatpush1.msra.mxu0 0.0
        %1681 = vmatprep.subr.mxu0 0.0
        %1682 = vmatpush1.msra.mxu0 0.0
        %1683 = vmatprep.subr.mxu0 0.0
        %1684 = vmatpush1.msra.mxu0 0.0
        %1685 = vmatprep.subr.mxu0 0.0
        %1686 = vmatpush1.msra.mxu0 0.0
        %1687 = vmatprep.subr.mxu0 0.0
        %1688 = vmatpush1.msra.mxu0 0.0
        %1689 = vmatprep.subr.mxu0 0.0
        %1690 = vmatpush1.msra.mxu0 0.0
        %1691 = vmatprep.subr.mxu0 0.0
        %1692 = vmatpush1.msra.mxu0 0.0
        %1693 = vmatprep.subr.mxu0 0.0
        %1694 = vmatpush1.msra.mxu0 0.0
        %1695 = vmatprep.subr.mxu0 0.0
        %1696 = vmatpush1.msra.mxu0 0.0
        %1697 = vmatprep.subr.mxu0 0.0
        %1698 = vmatpush1.msra.mxu0 0.0
        %1699 = vmatprep.subr.mxu0 0.0
        %1700 = vmatpush1.msra.mxu0 0.0
        %1701 = vmatprep.subr.mxu0 0.0
        %1702 = vmatpush1.msra.mxu0 0.0
        %1703 = vmatprep.subr.mxu0 0.0
        %1704 = vmatpush1.msra.mxu0 0.0
        %1705 = vmatprep.subr.mxu0 0.0
        %1706 = vmatpush1.msra.mxu0 0.0
        %1707 = vmatprep.subr.mxu0 0.0
        %1708 = vmatpush1.msra.mxu0 0.0
        %1709 = vmatprep.subr.mxu0 0.0
        %1710 = vmatpush1.msra.mxu0 0.0
        %1711 = vmatprep.subr.mxu0 0.0
        %1712 = vmatpush1.msra.mxu0 0.0
        %1713 = vmatprep.subr.mxu0 0.0
        %1714 = vmatpush1.msra.mxu0 0.0
        %1715 = vmatprep.subr.mxu0 0.0
        %1716 = vmatpush1.msra.mxu0 0.0
        %1717 = vmatprep.subr.mxu0 0.0
        %1718 = vmatpush1.msra.mxu0 0.0
        %1719 = vmatprep.subr.mxu0 0.0
        %1720 = vmatpush1.msra.mxu0 0.0
        %1721 = vmatprep.subr.mxu0 0.0
        %1722 = vmatpush1.msra.mxu0 0.0
        %1723 = vmatprep.subr.mxu0 0.0
        %1724 = vmatpush1.msra.mxu0 0.0
        %1725 = vmatprep.subr.mxu0 0.0
        %1726 = vmatpush1.msra.mxu0 0.0
        %1727 = vmatprep.subr.mxu0 0.0
        %1728 = vmatpush1.msra.mxu0 0.0
        %1729 = vmatprep.subr.mxu0 0.0
        %1730 = vmatpush1.msra.mxu0 0.0
        %1731 = vmatprep.subr.mxu0 0.0
        %1732 = vmatpush1.msra.mxu0 0.0
        %1733 = vmatprep.subr.mxu0 0.0
        %1734 = vmatpush1.msra.mxu0 0.0
        %1735 = vmatprep.subr.mxu0 0.0
        %1736 = vmatpush1.msra.mxu0 0.0
        %1737 = vmatprep.mubr.f32.mxu0 0.0
        %1738 = vmatmul.mubr.f32.gmra.mrb[0].mxu0 %v1641
        %v1739 = vpop.f32.mrb[0].mxu0
        %v1740 = vadd.f32 %v1531, %v1739
        %v1741 = vpop.f32.mrb[0].mxu0
        %1742 = vmatprep.mubr.f32.mxu0 0.0
        %1743 = vmatmul.mubr.f32.gmra.mrb[0].mxu0 %v1643
        %v1744 = vpop.f32.mrb[0].mxu0
        %v1745 = vadd.f32 %v1536, %v1744
        %v1746 = vpop.f32.mrb[0].mxu0
        %1747 = vmatprep.mubr.f32.mxu0 0.0
        %1748 = vmatmul.mubr.f32.gmra.mrb[0].mxu0 %v1645
        %v1749 = vpop.f32.mrb[0].mxu0
        %v1750 = vadd.f32 %v1541, %v1749
        %v1751 = vpop.f32.mrb[0].mxu0
        %1752 = vmatprep.mubr.f32.mxu0 0.0
        %1753 = vmatmul.mubr.f32.gmra.mrb[0].mxu0 %v1647
        %v1754 = vpop.f32.mrb[0].mxu0
        %v1755 = vadd.f32 %v1546, %v1754
        %v1756 = vpop.f32.mrb[0].mxu0
        %1757 = vmatprep.mubr.f32.mxu0 0.0
        %1758 = vmatmul.mubr.f32.gmra.mrb[0].mxu0 %v1649
        %v1759 = vpop.f32.mrb[0].mxu0
        %v1760 = vadd.f32 %v1551, %v1759
        %v1761 = vpop.f32.mrb[0].mxu0
        %1762 = vmatprep.mubr.f32.mxu0 0.0
        %1763 = vmatmul.mubr.f32.gmra.mrb[0].mxu0 %v1651
        %v1764 = vpop.f32.mrb[0].mxu0
        %v1765 = vadd.f32 %v1556, %v1764
        %v1766 = vpop.f32.mrb[0].mxu0
        %1767 = vmatprep.mubr.f32.mxu0 0.0
        %1768 = vmatmul.mubr.f32.gmra.mrb[0].mxu0 %v1653
        %v1769 = vpop.f32.mrb[0].mxu0
        %v1770 = vadd.f32 %v1561, %v1769
        %v1771 = vpop.f32.mrb[0].mxu0
        %1772 = vmatprep.mubr.f32.mxu0 0.0
        %1773 = vmatmul.mubr.f32.gmra.mrb[0].mxu0 %v1655
        %v1774 = vpop.f32.mrb[0].mxu0
        %v1775 = vadd.f32 %v1566, %v1774
        %v1776 = vpop.f32.mrb[0].mxu0
        %1777 = vmatprep.mubr.f32.mxu0 0.0
        %1778 = vmatmul.mubr.f32.gmra.mrb[0].mxu0 %v1657
        %v1779 = vpop.f32.mrb[0].mxu0
        %v1780 = vadd.f32 %v1571, %v1779
        %v1781 = vpop.f32.mrb[0].mxu0
        %1782 = vmatprep.mubr.f32.mxu0 0.0
        %1783 = vmatmul.mubr.f32.gmra.mrb[0].mxu0 %v1659
        %v1784 = vpop.f32.mrb[0].mxu0
        %v1785 = vadd.f32 %v1576, %v1784
        %v1786 = vpop.f32.mrb[0].mxu0
        %1787 = vmatprep.mubr.f32.mxu0 0.0
        %1788 = vmatmul.mubr.f32.gmra.mrb[0].mxu0 %v1661
        %v1789 = vpop.f32.mrb[0].mxu0
        %v1790 = vadd.f32 %v1581, %v1789
        %v1791 = vpop.f32.mrb[0].mxu0
        %1792 = vmatprep.mubr.f32.mxu0 0.0
        %1793 = vmatmul.mubr.f32.gmra.mrb[0].mxu0 %v1663
        %v1794 = vpop.f32.mrb[0].mxu0
        %v1795 = vadd.f32 %v1586, %v1794
        %v1796 = vpop.f32.mrb[0].mxu0
        %1797 = vmatprep.mubr.f32.mxu0 0.0
        %1798 = vmatmul.mubr.f32.gmra.mrb[0].mxu0 %v1665
        %v1799 = vpop.f32.mrb[0].mxu0
        %v1800 = vadd.f32 %v1591, %v1799
        %v1801 = vpop.f32.mrb[0].mxu0
        %1802 = vmatprep.mubr.f32.mxu0 0.0
        %1803 = vmatmul.mubr.f32.gmra.mrb[0].mxu0 %v1667
        %v1804 = vpop.f32.mrb[0].mxu0
        %v1805 = vadd.f32 %v1596, %v1804
        %v1806 = vpop.f32.mrb[0].mxu0
        %1807 = vmatprep.mubr.f32.mxu0 0.0
        %1808 = vmatmul.mubr.f32.gmra.mrb[0].mxu0 %v1669
        %v1809 = vpop.f32.mrb[0].mxu0
        %v1810 = vadd.f32 %v1601, %v1809
        %v1811 = vpop.f32.mrb[0].mxu0
        %1812 = vmatprep.mubr.f32.mxu0 0.0
        %1813 = vmatmul.mubr.f32.gmra.mrb[0].mxu0 %v1671
        %v1814 = vpop.f32.mrb[0].mxu0
        %v1815 = vadd.f32 %v1606, %v1814
        %v1816 = vpop.f32.mrb[0].mxu0
        %1817 = vdwg.mxu0
        %v1818 = vld [vmem:[#allocation3 + $0x2] sm:$0xff]
        %v1819 = vld [vmem:[#allocation3 + $0xa] sm:$0xff]
        %v1820 = vld [vmem:[#allocation3 + $0x12] sm:$0xff]
        %v1821 = vld [vmem:[#allocation3 + $0x1a] sm:$0xff]
        %v1822 = vld [vmem:[#allocation3 + $0x22] sm:$0xff]
        %v1823 = vld [vmem:[#allocation3 + $0x2a] sm:$0xff]
        %v1824 = vld [vmem:[#allocation3 + $0x32] sm:$0xff]
        %v1825 = vld [vmem:[#allocation3 + $0x3a] sm:$0xff]
        %v1826 = vld [vmem:[#allocation3 + $0x42] sm:$0xff]
        %v1827 = vld [vmem:[#allocation3 + $0x4a] sm:$0xff]
        %v1828 = vld [vmem:[#allocation3 + $0x52] sm:$0xff]
        %v1829 = vld [vmem:[#allocation3 + $0x5a] sm:$0xff]
        %v1830 = vld [vmem:[#allocation3 + $0x62] sm:$0xff]
        %v1831 = vld [vmem:[#allocation3 + $0x6a] sm:$0xff]
        %v1832 = vld [vmem:[#allocation3 + $0x72] sm:$0xff]
        %v1833 = vld [vmem:[#allocation3 + $0x7a] sm:$0xff]
        %1834 = vset.pattern.permute.xlu0 2
        %1835 = vperm.xlu0 %1834, %v511
        %v1836 = vpop.permute.xlu0 %1835
        %1838 = vset.pattern.permute.xlu0 2
        %1839 = vperm.xlu0 %1838, %v512
        %v1840 = vpop.permute.xlu0 %1839
        %1842 = vset.pattern.permute.xlu0 2
        %1843 = vperm.xlu0 %1842, %v513
        %v1844 = vpop.permute.xlu0 %1843
        %1846 = vset.pattern.permute.xlu0 2
        %1847 = vperm.xlu0 %1846, %v514
        %v1848 = vpop.permute.xlu0 %1847
        %1850 = vset.pattern.permute.xlu0 2
        %1851 = vperm.xlu0 %1850, %v515
        %v1852 = vpop.permute.xlu0 %1851
        %1854 = vset.pattern.permute.xlu0 2
        %1855 = vperm.xlu0 %1854, %v516
        %v1856 = vpop.permute.xlu0 %1855
        %1858 = vset.pattern.permute.xlu0 2
        %1859 = vperm.xlu0 %1858, %v517
        %v1860 = vpop.permute.xlu0 %1859
        %1862 = vset.pattern.permute.xlu0 2
        %1863 = vperm.xlu0 %1862, %v518
        %v1864 = vpop.permute.xlu0 %1863
        %1866 = vset.pattern.permute.xlu0 2
        %1867 = vperm.xlu0 %1866, %v519
        %v1868 = vpop.permute.xlu0 %1867
        %1870 = vset.pattern.permute.xlu0 2
        %1871 = vperm.xlu0 %1870, %v520
        %v1872 = vpop.permute.xlu0 %1871
        %1874 = vset.pattern.permute.xlu0 2
        %1875 = vperm.xlu0 %1874, %v521
        %v1876 = vpop.permute.xlu0 %1875
        %1878 = vset.pattern.permute.xlu0 2
        %1879 = vperm.xlu0 %1878, %v522
        %v1880 = vpop.permute.xlu0 %1879
        %1882 = vset.pattern.permute.xlu0 2
        %1883 = vperm.xlu0 %1882, %v523
        %v1884 = vpop.permute.xlu0 %1883
        %1886 = vset.pattern.permute.xlu0 2
        %1887 = vperm.xlu0 %1886, %v524
        %v1888 = vpop.permute.xlu0 %1887
        %1890 = vset.pattern.permute.xlu0 2
        %1891 = vperm.xlu0 %1890, %v525
        %v1892 = vpop.permute.xlu0 %1891
        %1894 = vset.pattern.permute.xlu0 2
        %1895 = vperm.xlu0 %1894, %v526
        %v1896 = vpop.permute.xlu0 %1895
        %v1898 = vmul.f32 %v1818, %v1836
        %v1899 = vmul.f32 %v1819, %v1840
        %v1900 = vmul.f32 %v1820, %v1844
        %v1901 = vmul.f32 %v1821, %v1848
        %v1902 = vmul.f32 %v1822, %v1852
        %v1903 = vmul.f32 %v1823, %v1856
        %v1904 = vmul.f32 %v1824, %v1860
        %v1905 = vmul.f32 %v1825, %v1864
        %v1906 = vmul.f32 %v1826, %v1868
        %v1907 = vmul.f32 %v1827, %v1872
        %v1908 = vmul.f32 %v1828, %v1876
        %v1909 = vmul.f32 %v1829, %v1880
        %v1910 = vmul.f32 %v1830, %v1884
        %v1911 = vmul.f32 %v1831, %v1888
        %v1912 = vmul.f32 %v1832, %v1892
        %v1913 = vmul.f32 %v1833, %v1896
        %s1914 = scalar_lea.vmem %s446, 64
        %v1915 = vld [vmem:[%s1914] sm:$0xff]
        %v1916 = vld [vmem:[%s1914 + $0x8] sm:$0xff]
        %v1918 = vsel %vm536, %v1898, 0
        %v1921 = vsel %vm536, %v1899, 0
        %v1924 = vsel %vm536, %v1900, 0
        %v1927 = vsel %vm536, %v1901, 0
        %v1930 = vsel %vm536, %v1902, 0
        %v1933 = vsel %vm536, %v1903, 0
        %v1936 = vsel %vm536, %v1904, 0
        %v1939 = vsel %vm536, %v1905, 0
        %v1942 = vsel %vm536, %v1906, 0
        %v1945 = vsel %vm536, %v1907, 0
        %v1948 = vsel %vm536, %v1908, 0
        %v1951 = vsel %vm536, %v1909, 0
        %v1954 = vsel %vm536, %v1910, 0
        %v1957 = vsel %vm536, %v1911, 0
        %v1960 = vsel %vm536, %v1912, 0
        %v1963 = vsel %vm536, %v1913, 0
        %1965 = vmatprep.subr.mxu0 0.0
        %1966 = vmatpush1.msra.mxu0 %v1915
        %1967 = vmatprep.subr.mxu0 0.0
        %1968 = vmatpush1.msra.mxu0 %v1916
        %1969 = vmatprep.subr.mxu0 0.0
        %1970 = vmatpush1.msra.mxu0 0.0
        %1971 = vmatprep.subr.mxu0 0.0
        %1972 = vmatpush1.msra.mxu0 0.0
        %1973 = vmatprep.subr.mxu0 0.0
        %1974 = vmatpush1.msra.mxu0 0.0
        %1975 = vmatprep.subr.mxu0 0.0
        %1976 = vmatpush1.msra.mxu0 0.0
        %1977 = vmatprep.subr.mxu0 0.0
        %1978 = vmatpush1.msra.mxu0 0.0
        %1979 = vmatprep.subr.mxu0 0.0
        %1980 = vmatpush1.msra.mxu0 0.0
        %1981 = vmatprep.subr.mxu0 0.0
        %1982 = vmatpush1.msra.mxu0 0.0
        %1983 = vmatprep.subr.mxu0 0.0
        %1984 = vmatpush1.msra.mxu0 0.0
        %1985 = vmatprep.subr.mxu0 0.0
        %1986 = vmatpush1.msra.mxu0 0.0
        %1987 = vmatprep.subr.mxu0 0.0
        %1988 = vmatpush1.msra.mxu0 0.0
        %1989 = vmatprep.subr.mxu0 0.0
        %1990 = vmatpush1.msra.mxu0 0.0
        %1991 = vmatprep.subr.mxu0 0.0
        %1992 = vmatpush1.msra.mxu0 0.0
        %1993 = vmatprep.subr.mxu0 0.0
        %1994 = vmatpush1.msra.mxu0 0.0
        %1995 = vmatprep.subr.mxu0 0.0
        %1996 = vmatpush1.msra.mxu0 0.0
        %1997 = vmatprep.subr.mxu0 0.0
        %1998 = vmatpush1.msra.mxu0 0.0
        %1999 = vmatprep.subr.mxu0 0.0
        %2000 = vmatpush1.msra.mxu0 0.0
        %2001 = vmatprep.subr.mxu0 0.0
        %2002 = vmatpush1.msra.mxu0 0.0
        %2003 = vmatprep.subr.mxu0 0.0
        %2004 = vmatpush1.msra.mxu0 0.0
        %2005 = vmatprep.subr.mxu0 0.0
        %2006 = vmatpush1.msra.mxu0 0.0
        %2007 = vmatprep.subr.mxu0 0.0
        %2008 = vmatpush1.msra.mxu0 0.0
        %2009 = vmatprep.subr.mxu0 0.0
        %2010 = vmatpush1.msra.mxu0 0.0
        %2011 = vmatprep.subr.mxu0 0.0
        %2012 = vmatpush1.msra.mxu0 0.0
        %2013 = vmatprep.subr.mxu0 0.0
        %2014 = vmatpush1.msra.mxu0 0.0
        %2015 = vmatprep.subr.mxu0 0.0
        %2016 = vmatpush1.msra.mxu0 0.0
        %2017 = vmatprep.subr.mxu0 0.0
        %2018 = vmatpush1.msra.mxu0 0.0
        %2019 = vmatprep.subr.mxu0 0.0
        %2020 = vmatpush1.msra.mxu0 0.0
        %2021 = vmatprep.subr.mxu0 0.0
        %2022 = vmatpush1.msra.mxu0 0.0
        %2023 = vmatprep.subr.mxu0 0.0
        %2024 = vmatpush1.msra.mxu0 0.0
        %2025 = vmatprep.subr.mxu0 0.0
        %2026 = vmatpush1.msra.mxu0 0.0
        %2027 = vmatprep.subr.mxu0 0.0
        %2028 = vmatpush1.msra.mxu0 0.0
        %2029 = vmatprep.mubr.f32.mxu0 0.0
        %2030 = vmatmul.mubr.f32.gmra.mrb[0].mxu0 %v1918
        %v2031 = vpop.f32.mrb[0].mxu0
        %v2032 = vadd.f32 0.0, %v2031
        %v2033 = vpop.f32.mrb[0].mxu0
        %2034 = vmatprep.mubr.f32.mxu0 0.0
        %2035 = vmatmul.mubr.f32.gmra.mrb[0].mxu0 %v1921
        %v2036 = vpop.f32.mrb[0].mxu0
        %v2037 = vadd.f32 0.0, %v2036
        %v2038 = vpop.f32.mrb[0].mxu0
        %2039 = vmatprep.mubr.f32.mxu0 0.0
        %2040 = vmatmul.mubr.f32.gmra.mrb[0].mxu0 %v1924
        %v2041 = vpop.f32.mrb[0].mxu0
        %v2042 = vadd.f32 0.0, %v2041
        %v2043 = vpop.f32.mrb[0].mxu0
        %2044 = vmatprep.mubr.f32.mxu0 0.0
        %2045 = vmatmul.mubr.f32.gmra.mrb[0].mxu0 %v1927
        %v2046 = vpop.f32.mrb[0].mxu0
        %v2047 = vadd.f32 0.0, %v2046
        %v2048 = vpop.f32.mrb[0].mxu0
        %2049 = vmatprep.mubr.f32.mxu0 0.0
        %2050 = vmatmul.mubr.f32.gmra.mrb[0].mxu0 %v1930
        %v2051 = vpop.f32.mrb[0].mxu0
        %v2052 = vadd.f32 0.0, %v2051
        %v2053 = vpop.f32.mrb[0].mxu0
        %2054 = vmatprep.mubr.f32.mxu0 0.0
        %2055 = vmatmul.mubr.f32.gmra.mrb[0].mxu0 %v1933
        %v2056 = vpop.f32.mrb[0].mxu0
        %v2057 = vadd.f32 0.0, %v2056
        %v2058 = vpop.f32.mrb[0].mxu0
        %2059 = vmatprep.mubr.f32.mxu0 0.0
        %2060 = vmatmul.mubr.f32.gmra.mrb[0].mxu0 %v1936
        %v2061 = vpop.f32.mrb[0].mxu0
        %v2062 = vadd.f32 0.0, %v2061
        %v2063 = vpop.f32.mrb[0].mxu0
        %2064 = vmatprep.mubr.f32.mxu0 0.0
        %2065 = vmatmul.mubr.f32.gmra.mrb[0].mxu0 %v1939
        %v2066 = vpop.f32.mrb[0].mxu0
        %v2067 = vadd.f32 0.0, %v2066
        %v2068 = vpop.f32.mrb[0].mxu0
        %2069 = vmatprep.mubr.f32.mxu0 0.0
        %2070 = vmatmul.mubr.f32.gmra.mrb[0].mxu0 %v1942
        %v2071 = vpop.f32.mrb[0].mxu0
        %v2072 = vadd.f32 0.0, %v2071
        %v2073 = vpop.f32.mrb[0].mxu0
        %2074 = vmatprep.mubr.f32.mxu0 0.0
        %2075 = vmatmul.mubr.f32.gmra.mrb[0].mxu0 %v1945
        %v2076 = vpop.f32.mrb[0].mxu0
        %v2077 = vadd.f32 0.0, %v2076
        %v2078 = vpop.f32.mrb[0].mxu0
        %2079 = vmatprep.mubr.f32.mxu0 0.0
        %2080 = vmatmul.mubr.f32.gmra.mrb[0].mxu0 %v1948
        %v2081 = vpop.f32.mrb[0].mxu0
        %v2082 = vadd.f32 0.0, %v2081
        %v2083 = vpop.f32.mrb[0].mxu0
        %2084 = vmatprep.mubr.f32.mxu0 0.0
        %2085 = vmatmul.mubr.f32.gmra.mrb[0].mxu0 %v1951
        %v2086 = vpop.f32.mrb[0].mxu0
        %v2087 = vadd.f32 0.0, %v2086
        %v2088 = vpop.f32.mrb[0].mxu0
        %2089 = vmatprep.mubr.f32.mxu0 0.0
        %2090 = vmatmul.mubr.f32.gmra.mrb[0].mxu0 %v1954
        %v2091 = vpop.f32.mrb[0].mxu0
        %v2092 = vadd.f32 0.0, %v2091
        %v2093 = vpop.f32.mrb[0].mxu0
        %2094 = vmatprep.mubr.f32.mxu0 0.0
        %2095 = vmatmul.mubr.f32.gmra.mrb[0].mxu0 %v1957
        %v2096 = vpop.f32.mrb[0].mxu0
        %v2097 = vadd.f32 0.0, %v2096
        %v2098 = vpop.f32.mrb[0].mxu0
        %2099 = vmatprep.mubr.f32.mxu0 0.0
        %2100 = vmatmul.mubr.f32.gmra.mrb[0].mxu0 %v1960
        %v2101 = vpop.f32.mrb[0].mxu0
        %v2102 = vadd.f32 0.0, %v2101
        %v2103 = vpop.f32.mrb[0].mxu0
        %2104 = vmatprep.mubr.f32.mxu0 0.0
        %2105 = vmatmul.mubr.f32.gmra.mrb[0].mxu0 %v1963
        %v2106 = vpop.f32.mrb[0].mxu0
        %v2107 = vadd.f32 0.0, %v2106
        %v2108 = vpop.f32.mrb[0].mxu0
        %2109 = vdwg.mxu0
        %v2110 = vadd.f32 %v1319, %v2032
        %v2111 = vadd.f32 %v1324, %v2037
        %v2112 = vadd.f32 %v1329, %v2042
        %v2113 = vadd.f32 %v1334, %v2047
        %v2114 = vadd.f32 %v1339, %v2052
        %v2115 = vadd.f32 %v1344, %v2057
        %v2116 = vadd.f32 %v1349, %v2062
        %v2117 = vadd.f32 %v1354, %v2067
        %v2118 = vadd.f32 %v1359, %v2072
        %v2119 = vadd.f32 %v1364, %v2077
        %v2120 = vadd.f32 %v1369, %v2082
        %v2121 = vadd.f32 %v1374, %v2087
        %v2122 = vadd.f32 %v1379, %v2092
        %v2123 = vadd.f32 %v1384, %v2097
        %v2124 = vadd.f32 %v1389, %v2102
        %v2125 = vadd.f32 %v1394, %v2107
        %s2126 = scalar_lea.vmem %s446, 80
        %v2127 = vld [vmem:[%s2126] sm:$0xff]
        %v2128 = vld [vmem:[%s2126 + $0x8] sm:$0xff]
        %2129 = vrot.lane.b32.xlu0 %v1898, 112
        %v2130 = vpop.permute.xlu0 %2129
        %2131 = vrot.lane.b32.xlu0 %v1899, 112
        %v2132 = vpop.permute.xlu0 %2131
        %2133 = vrot.lane.b32.xlu0 %v1900, 112
        %v2134 = vpop.permute.xlu0 %2133
        %2135 = vrot.lane.b32.xlu0 %v1901, 112
        %v2136 = vpop.permute.xlu0 %2135
        %2137 = vrot.lane.b32.xlu0 %v1902, 112
        %v2138 = vpop.permute.xlu0 %2137
        %2139 = vrot.lane.b32.xlu0 %v1903, 112
        %v2140 = vpop.permute.xlu0 %2139
        %2141 = vrot.lane.b32.xlu0 %v1904, 112
        %v2142 = vpop.permute.xlu0 %2141
        %2143 = vrot.lane.b32.xlu0 %v1905, 112
        %v2144 = vpop.permute.xlu0 %2143
        %2145 = vrot.lane.b32.xlu0 %v1906, 112
        %v2146 = vpop.permute.xlu0 %2145
        %2147 = vrot.lane.b32.xlu0 %v1907, 112
        %v2148 = vpop.permute.xlu0 %2147
        %2149 = vrot.lane.b32.xlu0 %v1908, 112
        %v2150 = vpop.permute.xlu0 %2149
        %2151 = vrot.lane.b32.xlu0 %v1909, 112
        %v2152 = vpop.permute.xlu0 %2151
        %2153 = vrot.lane.b32.xlu0 %v1910, 112
        %v2154 = vpop.permute.xlu0 %2153
        %2155 = vrot.lane.b32.xlu0 %v1911, 112
        %v2156 = vpop.permute.xlu0 %2155
        %2157 = vrot.lane.b32.xlu0 %v1912, 112
        %v2158 = vpop.permute.xlu0 %2157
        %2159 = vrot.lane.b32.xlu0 %v1913, 112
        %v2160 = vpop.permute.xlu0 %2159
        %v2161 = vsel %vm536, %v2130, 0
        %v2163 = vsel %vm536, %v2132, 0
        %v2165 = vsel %vm536, %v2134, 0
        %v2167 = vsel %vm536, %v2136, 0
        %v2169 = vsel %vm536, %v2138, 0
        %v2171 = vsel %vm536, %v2140, 0
        %v2173 = vsel %vm536, %v2142, 0
        %v2175 = vsel %vm536, %v2144, 0
        %v2177 = vsel %vm536, %v2146, 0
        %v2179 = vsel %vm536, %v2148, 0
        %v2181 = vsel %vm536, %v2150, 0
        %v2183 = vsel %vm536, %v2152, 0
        %v2185 = vsel %vm536, %v2154, 0
        %v2187 = vsel %vm536, %v2156, 0
        %v2189 = vsel %vm536, %v2158, 0
        %v2191 = vsel %vm536, %v2160, 0
        %2193 = vmatprep.subr.mxu0 0.0
        %2194 = vmatpush1.msra.mxu0 %v2127
        %2195 = vmatprep.subr.mxu0 0.0
        %2196 = vmatpush1.msra.mxu0 %v2128
        %2197 = vmatprep.subr.mxu0 0.0
        %2198 = vmatpush1.msra.mxu0 0.0
        %2199 = vmatprep.subr.mxu0 0.0
        %2200 = vmatpush1.msra.mxu0 0.0
        %2201 = vmatprep.subr.mxu0 0.0
        %2202 = vmatpush1.msra.mxu0 0.0
        %2203 = vmatprep.subr.mxu0 0.0
        %2204 = vmatpush1.msra.mxu0 0.0
        %2205 = vmatprep.subr.mxu0 0.0
        %2206 = vmatpush1.msra.mxu0 0.0
        %2207 = vmatprep.subr.mxu0 0.0
        %2208 = vmatpush1.msra.mxu0 0.0
        %2209 = vmatprep.subr.mxu0 0.0
        %2210 = vmatpush1.msra.mxu0 0.0
        %2211 = vmatprep.subr.mxu0 0.0
        %2212 = vmatpush1.msra.mxu0 0.0
        %2213 = vmatprep.subr.mxu0 0.0
        %2214 = vmatpush1.msra.mxu0 0.0
        %2215 = vmatprep.subr.mxu0 0.0
        %2216 = vmatpush1.msra.mxu0 0.0
        %2217 = vmatprep.subr.mxu0 0.0
        %2218 = vmatpush1.msra.mxu0 0.0
        %2219 = vmatprep.subr.mxu0 0.0
        %2220 = vmatpush1.msra.mxu0 0.0
        %2221 = vmatprep.subr.mxu0 0.0
        %2222 = vmatpush1.msra.mxu0 0.0
        %2223 = vmatprep.subr.mxu0 0.0
        %2224 = vmatpush1.msra.mxu0 0.0
        %2225 = vmatprep.subr.mxu0 0.0
        %2226 = vmatpush1.msra.mxu0 0.0
        %2227 = vmatprep.subr.mxu0 0.0
        %2228 = vmatpush1.msra.mxu0 0.0
        %2229 = vmatprep.subr.mxu0 0.0
        %2230 = vmatpush1.msra.mxu0 0.0
        %2231 = vmatprep.subr.mxu0 0.0
        %2232 = vmatpush1.msra.mxu0 0.0
        %2233 = vmatprep.subr.mxu0 0.0
        %2234 = vmatpush1.msra.mxu0 0.0
        %2235 = vmatprep.subr.mxu0 0.0
        %2236 = vmatpush1.msra.mxu0 0.0
        %2237 = vmatprep.subr.mxu0 0.0
        %2238 = vmatpush1.msra.mxu0 0.0
        %2239 = vmatprep.subr.mxu0 0.0
        %2240 = vmatpush1.msra.mxu0 0.0
        %2241 = vmatprep.subr.mxu0 0.0
        %2242 = vmatpush1.msra.mxu0 0.0
        %2243 = vmatprep.subr.mxu0 0.0
        %2244 = vmatpush1.msra.mxu0 0.0
        %2245 = vmatprep.subr.mxu0 0.0
        %2246 = vmatpush1.msra.mxu0 0.0
        %2247 = vmatprep.subr.mxu0 0.0
        %2248 = vmatpush1.msra.mxu0 0.0
        %2249 = vmatprep.subr.mxu0 0.0
        %2250 = vmatpush1.msra.mxu0 0.0
        %2251 = vmatprep.subr.mxu0 0.0
        %2252 = vmatpush1.msra.mxu0 0.0
        %2253 = vmatprep.subr.mxu0 0.0
        %2254 = vmatpush1.msra.mxu0 0.0
        %2255 = vmatprep.subr.mxu0 0.0
        %2256 = vmatpush1.msra.mxu0 0.0
        %2257 = vmatprep.mubr.f32.mxu0 0.0
        %2258 = vmatmul.mubr.f32.gmra.mrb[0].mxu0 %v2161
        %v2259 = vpop.f32.mrb[0].mxu0
        %v2260 = vadd.f32 0.0, %v2259
        %v2261 = vpop.f32.mrb[0].mxu0
        %2262 = vmatprep.mubr.f32.mxu0 0.0
        %2263 = vmatmul.mubr.f32.gmra.mrb[0].mxu0 %v2163
        %v2264 = vpop.f32.mrb[0].mxu0
        %v2265 = vadd.f32 0.0, %v2264
        %v2266 = vpop.f32.mrb[0].mxu0
        %2267 = vmatprep.mubr.f32.mxu0 0.0
        %2268 = vmatmul.mubr.f32.gmra.mrb[0].mxu0 %v2165
        %v2269 = vpop.f32.mrb[0].mxu0
        %v2270 = vadd.f32 0.0, %v2269
        %v2271 = vpop.f32.mrb[0].mxu0
        %2272 = vmatprep.mubr.f32.mxu0 0.0
        %2273 = vmatmul.mubr.f32.gmra.mrb[0].mxu0 %v2167
        %v2274 = vpop.f32.mrb[0].mxu0
        %v2275 = vadd.f32 0.0, %v2274
        %v2276 = vpop.f32.mrb[0].mxu0
        %2277 = vmatprep.mubr.f32.mxu0 0.0
        %2278 = vmatmul.mubr.f32.gmra.mrb[0].mxu0 %v2169
        %v2279 = vpop.f32.mrb[0].mxu0
        %v2280 = vadd.f32 0.0, %v2279
        %v2281 = vpop.f32.mrb[0].mxu0
        %2282 = vmatprep.mubr.f32.mxu0 0.0
        %2283 = vmatmul.mubr.f32.gmra.mrb[0].mxu0 %v2171
        %v2284 = vpop.f32.mrb[0].mxu0
        %v2285 = vadd.f32 0.0, %v2284
        %v2286 = vpop.f32.mrb[0].mxu0
        %2287 = vmatprep.mubr.f32.mxu0 0.0
        %2288 = vmatmul.mubr.f32.gmra.mrb[0].mxu0 %v2173
        %v2289 = vpop.f32.mrb[0].mxu0
        %v2290 = vadd.f32 0.0, %v2289
        %v2291 = vpop.f32.mrb[0].mxu0
        %2292 = vmatprep.mubr.f32.mxu0 0.0
        %2293 = vmatmul.mubr.f32.gmra.mrb[0].mxu0 %v2175
        %v2294 = vpop.f32.mrb[0].mxu0
        %v2295 = vadd.f32 0.0, %v2294
        %v2296 = vpop.f32.mrb[0].mxu0
        %2297 = vmatprep.mubr.f32.mxu0 0.0
        %2298 = vmatmul.mubr.f32.gmra.mrb[0].mxu0 %v2177
        %v2299 = vpop.f32.mrb[0].mxu0
        %v2300 = vadd.f32 0.0, %v2299
        %v2301 = vpop.f32.mrb[0].mxu0
        %2302 = vmatprep.mubr.f32.mxu0 0.0
        %2303 = vmatmul.mubr.f32.gmra.mrb[0].mxu0 %v2179
        %v2304 = vpop.f32.mrb[0].mxu0
        %v2305 = vadd.f32 0.0, %v2304
        %v2306 = vpop.f32.mrb[0].mxu0
        %2307 = vmatprep.mubr.f32.mxu0 0.0
        %2308 = vmatmul.mubr.f32.gmra.mrb[0].mxu0 %v2181
        %v2309 = vpop.f32.mrb[0].mxu0
        %v2310 = vadd.f32 0.0, %v2309
        %v2311 = vpop.f32.mrb[0].mxu0
        %2312 = vmatprep.mubr.f32.mxu0 0.0
        %2313 = vmatmul.mubr.f32.gmra.mrb[0].mxu0 %v2183
        %v2314 = vpop.f32.mrb[0].mxu0
        %v2315 = vadd.f32 0.0, %v2314
        %v2316 = vpop.f32.mrb[0].mxu0
        %2317 = vmatprep.mubr.f32.mxu0 0.0
        %2318 = vmatmul.mubr.f32.gmra.mrb[0].mxu0 %v2185
        %v2319 = vpop.f32.mrb[0].mxu0
        %v2320 = vadd.f32 0.0, %v2319
        %v2321 = vpop.f32.mrb[0].mxu0
        %2322 = vmatprep.mubr.f32.mxu0 0.0
        %2323 = vmatmul.mubr.f32.gmra.mrb[0].mxu0 %v2187
        %v2324 = vpop.f32.mrb[0].mxu0
        %v2325 = vadd.f32 0.0, %v2324
        %v2326 = vpop.f32.mrb[0].mxu0
        %2327 = vmatprep.mubr.f32.mxu0 0.0
        %2328 = vmatmul.mubr.f32.gmra.mrb[0].mxu0 %v2189
        %v2329 = vpop.f32.mrb[0].mxu0
        %v2330 = vadd.f32 0.0, %v2329
        %v2331 = vpop.f32.mrb[0].mxu0
        %2332 = vmatprep.mubr.f32.mxu0 0.0
        %2333 = vmatmul.mubr.f32.gmra.mrb[0].mxu0 %v2191
        %v2334 = vpop.f32.mrb[0].mxu0
        %v2335 = vadd.f32 0.0, %v2334
        %v2336 = vpop.f32.mrb[0].mxu0
        %2337 = vdwg.mxu0
        %v2338 = vadd.f32 %v1740, %v2260
        %v2339 = vadd.f32 %v1745, %v2265
        %v2340 = vadd.f32 %v1750, %v2270
        %v2341 = vadd.f32 %v1755, %v2275
        %v2342 = vadd.f32 %v1760, %v2280
        %v2343 = vadd.f32 %v1765, %v2285
        %v2344 = vadd.f32 %v1770, %v2290
        %v2345 = vadd.f32 %v1775, %v2295
        %v2346 = vadd.f32 %v1780, %v2300
        %v2347 = vadd.f32 %v1785, %v2305
        %v2348 = vadd.f32 %v1790, %v2310
        %v2349 = vadd.f32 %v1795, %v2315
        %v2350 = vadd.f32 %v1800, %v2320
        %v2351 = vadd.f32 %v1805, %v2325
        %v2352 = vadd.f32 %v1810, %v2330
        %v2353 = vadd.f32 %v1815, %v2335
        %v2354 = vld [vmem:[#allocation3 + $0x4] sm:$0xff]
        %v2355 = vld [vmem:[#allocation3 + $0xc] sm:$0xff]
        %v2356 = vld [vmem:[#allocation3 + $0x14] sm:$0xff]
        %v2357 = vld [vmem:[#allocation3 + $0x1c] sm:$0xff]
        %v2358 = vld [vmem:[#allocation3 + $0x24] sm:$0xff]
        %v2359 = vld [vmem:[#allocation3 + $0x2c] sm:$0xff]
        %v2360 = vld [vmem:[#allocation3 + $0x34] sm:$0xff]
        %v2361 = vld [vmem:[#allocation3 + $0x3c] sm:$0xff]
        %v2362 = vld [vmem:[#allocation3 + $0x44] sm:$0xff]
        %v2363 = vld [vmem:[#allocation3 + $0x4c] sm:$0xff]
        %v2364 = vld [vmem:[#allocation3 + $0x54] sm:$0xff]
        %v2365 = vld [vmem:[#allocation3 + $0x5c] sm:$0xff]
        %v2366 = vld [vmem:[#allocation3 + $0x64] sm:$0xff]
        %v2367 = vld [vmem:[#allocation3 + $0x6c] sm:$0xff]
        %v2368 = vld [vmem:[#allocation3 + $0x74] sm:$0xff]
        %v2369 = vld [vmem:[#allocation3 + $0x7c] sm:$0xff]
        %2370 = vset.pattern.permute.xlu0 3
        %2371 = vperm.xlu0 %2370, %v511
        %v2372 = vpop.permute.xlu0 %2371
        %2374 = vset.pattern.permute.xlu0 3
        %2375 = vperm.xlu0 %2374, %v512
        %v2376 = vpop.permute.xlu0 %2375
        %2378 = vset.pattern.permute.xlu0 3
        %2379 = vperm.xlu0 %2378, %v513
        %v2380 = vpop.permute.xlu0 %2379
        %2382 = vset.pattern.permute.xlu0 3
        %2383 = vperm.xlu0 %2382, %v514
        %v2384 = vpop.permute.xlu0 %2383
        %2386 = vset.pattern.permute.xlu0 3
        %2387 = vperm.xlu0 %2386, %v515
        %v2388 = vpop.permute.xlu0 %2387
        %2390 = vset.pattern.permute.xlu0 3
        %2391 = vperm.xlu0 %2390, %v516
        %v2392 = vpop.permute.xlu0 %2391
        %2394 = vset.pattern.permute.xlu0 3
        %2395 = vperm.xlu0 %2394, %v517
        %v2396 = vpop.permute.xlu0 %2395
        %2398 = vset.pattern.permute.xlu0 3
        %2399 = vperm.xlu0 %2398, %v518
        %v2400 = vpop.permute.xlu0 %2399
        %2402 = vset.pattern.permute.xlu0 3
        %2403 = vperm.xlu0 %2402, %v519
        %v2404 = vpop.permute.xlu0 %2403
        %2406 = vset.pattern.permute.xlu0 3
        %2407 = vperm.xlu0 %2406, %v520
        %v2408 = vpop.permute.xlu0 %2407
        %2410 = vset.pattern.permute.xlu0 3
        %2411 = vperm.xlu0 %2410, %v521
        %v2412 = vpop.permute.xlu0 %2411
        %2414 = vset.pattern.permute.xlu0 3
        %2415 = vperm.xlu0 %2414, %v522
        %v2416 = vpop.permute.xlu0 %2415
        %2418 = vset.pattern.permute.xlu0 3
        %2419 = vperm.xlu0 %2418, %v523
        %v2420 = vpop.permute.xlu0 %2419
        %2422 = vset.pattern.permute.xlu0 3
        %2423 = vperm.xlu0 %2422, %v524
        %v2424 = vpop.permute.xlu0 %2423
        %2426 = vset.pattern.permute.xlu0 3
        %2427 = vperm.xlu0 %2426, %v525
        %v2428 = vpop.permute.xlu0 %2427
        %2430 = vset.pattern.permute.xlu0 3
        %2431 = vperm.xlu0 %2430, %v526
        %v2432 = vpop.permute.xlu0 %2431
        %v2434 = vmul.f32 %v2354, %v2372
        %v2435 = vmul.f32 %v2355, %v2376
        %v2436 = vmul.f32 %v2356, %v2380
        %v2437 = vmul.f32 %v2357, %v2384
        %v2438 = vmul.f32 %v2358, %v2388
        %v2439 = vmul.f32 %v2359, %v2392
        %v2440 = vmul.f32 %v2360, %v2396
        %v2441 = vmul.f32 %v2361, %v2400
        %v2442 = vmul.f32 %v2362, %v2404
        %v2443 = vmul.f32 %v2363, %v2408
        %v2444 = vmul.f32 %v2364, %v2412
        %v2445 = vmul.f32 %v2365, %v2416
        %v2446 = vmul.f32 %v2366, %v2420
        %v2447 = vmul.f32 %v2367, %v2424
        %v2448 = vmul.f32 %v2368, %v2428
        %v2449 = vmul.f32 %v2369, %v2432
        %s2450 = scalar_lea.vmem %s446, 96
        %v2451 = vld [vmem:[%s2450] sm:$0xff]
        %v2452 = vld [vmem:[%s2450 + $0x8] sm:$0xff]
        %v2454 = vsel %vm536, %v2434, 0
        %v2457 = vsel %vm536, %v2435, 0
        %v2460 = vsel %vm536, %v2436, 0
        %v2463 = vsel %vm536, %v2437, 0
        %v2466 = vsel %vm536, %v2438, 0
        %v2469 = vsel %vm536, %v2439, 0
        %v2472 = vsel %vm536, %v2440, 0
        %v2475 = vsel %vm536, %v2441, 0
        %v2478 = vsel %vm536, %v2442, 0
        %v2481 = vsel %vm536, %v2443, 0
        %v2484 = vsel %vm536, %v2444, 0
        %v2487 = vsel %vm536, %v2445, 0
        %v2490 = vsel %vm536, %v2446, 0
        %v2493 = vsel %vm536, %v2447, 0
        %v2496 = vsel %vm536, %v2448, 0
        %v2499 = vsel %vm536, %v2449, 0
        %2501 = vmatprep.subr.mxu0 0.0
        %2502 = vmatpush1.msra.mxu0 %v2451
        %2503 = vmatprep.subr.mxu0 0.0
        %2504 = vmatpush1.msra.mxu0 %v2452
        %2505 = vmatprep.subr.mxu0 0.0
        %2506 = vmatpush1.msra.mxu0 0.0
        %2507 = vmatprep.subr.mxu0 0.0
        %2508 = vmatpush1.msra.mxu0 0.0
        %2509 = vmatprep.subr.mxu0 0.0
        %2510 = vmatpush1.msra.mxu0 0.0
        %2511 = vmatprep.subr.mxu0 0.0
        %2512 = vmatpush1.msra.mxu0 0.0
        %2513 = vmatprep.subr.mxu0 0.0
        %2514 = vmatpush1.msra.mxu0 0.0
        %2515 = vmatprep.subr.mxu0 0.0
        %2516 = vmatpush1.msra.mxu0 0.0
        %2517 = vmatprep.subr.mxu0 0.0
        %2518 = vmatpush1.msra.mxu0 0.0
        %2519 = vmatprep.subr.mxu0 0.0
        %2520 = vmatpush1.msra.mxu0 0.0
        %2521 = vmatprep.subr.mxu0 0.0
        %2522 = vmatpush1.msra.mxu0 0.0
        %2523 = vmatprep.subr.mxu0 0.0
        %2524 = vmatpush1.msra.mxu0 0.0
        %2525 = vmatprep.subr.mxu0 0.0
        %2526 = vmatpush1.msra.mxu0 0.0
        %2527 = vmatprep.subr.mxu0 0.0
        %2528 = vmatpush1.msra.mxu0 0.0
        %2529 = vmatprep.subr.mxu0 0.0
        %2530 = vmatpush1.msra.mxu0 0.0
        %2531 = vmatprep.subr.mxu0 0.0
        %2532 = vmatpush1.msra.mxu0 0.0
        %2533 = vmatprep.subr.mxu0 0.0
        %2534 = vmatpush1.msra.mxu0 0.0
        %2535 = vmatprep.subr.mxu0 0.0
        %2536 = vmatpush1.msra.mxu0 0.0
        %2537 = vmatprep.subr.mxu0 0.0
        %2538 = vmatpush1.msra.mxu0 0.0
        %2539 = vmatprep.subr.mxu0 0.0
        %2540 = vmatpush1.msra.mxu0 0.0
        %2541 = vmatprep.subr.mxu0 0.0
        %2542 = vmatpush1.msra.mxu0 0.0
        %2543 = vmatprep.subr.mxu0 0.0
        %2544 = vmatpush1.msra.mxu0 0.0
        %2545 = vmatprep.subr.mxu0 0.0
        %2546 = vmatpush1.msra.mxu0 0.0
        %2547 = vmatprep.subr.mxu0 0.0
        %2548 = vmatpush1.msra.mxu0 0.0
        %2549 = vmatprep.subr.mxu0 0.0
        %2550 = vmatpush1.msra.mxu0 0.0
        %2551 = vmatprep.subr.mxu0 0.0
        %2552 = vmatpush1.msra.mxu0 0.0
        %2553 = vmatprep.subr.mxu0 0.0
        %2554 = vmatpush1.msra.mxu0 0.0
        %2555 = vmatprep.subr.mxu0 0.0
        %2556 = vmatpush1.msra.mxu0 0.0
        %2557 = vmatprep.subr.mxu0 0.0
        %2558 = vmatpush1.msra.mxu0 0.0
        %2559 = vmatprep.subr.mxu0 0.0
        %2560 = vmatpush1.msra.mxu0 0.0
        %2561 = vmatprep.subr.mxu0 0.0
        %2562 = vmatpush1.msra.mxu0 0.0
        %2563 = vmatprep.subr.mxu0 0.0
        %2564 = vmatpush1.msra.mxu0 0.0
        %2565 = vmatprep.mubr.f32.mxu0 0.0
        %2566 = vmatmul.mubr.f32.gmra.mrb[0].mxu0 %v2454
        %v2567 = vpop.f32.mrb[0].mxu0
        %v2568 = vadd.f32 0.0, %v2567
        %v2569 = vpop.f32.mrb[0].mxu0
        %2570 = vmatprep.mubr.f32.mxu0 0.0
        %2571 = vmatmul.mubr.f32.gmra.mrb[0].mxu0 %v2457
        %v2572 = vpop.f32.mrb[0].mxu0
        %v2573 = vadd.f32 0.0, %v2572
        %v2574 = vpop.f32.mrb[0].mxu0
        %2575 = vmatprep.mubr.f32.mxu0 0.0
        %2576 = vmatmul.mubr.f32.gmra.mrb[0].mxu0 %v2460
        %v2577 = vpop.f32.mrb[0].mxu0
        %v2578 = vadd.f32 0.0, %v2577
        %v2579 = vpop.f32.mrb[0].mxu0
        %2580 = vmatprep.mubr.f32.mxu0 0.0
        %2581 = vmatmul.mubr.f32.gmra.mrb[0].mxu0 %v2463
        %v2582 = vpop.f32.mrb[0].mxu0
        %v2583 = vadd.f32 0.0, %v2582
        %v2584 = vpop.f32.mrb[0].mxu0
        %2585 = vmatprep.mubr.f32.mxu0 0.0
        %2586 = vmatmul.mubr.f32.gmra.mrb[0].mxu0 %v2466
        %v2587 = vpop.f32.mrb[0].mxu0
        %v2588 = vadd.f32 0.0, %v2587
        %v2589 = vpop.f32.mrb[0].mxu0
        %2590 = vmatprep.mubr.f32.mxu0 0.0
        %2591 = vmatmul.mubr.f32.gmra.mrb[0].mxu0 %v2469
        %v2592 = vpop.f32.mrb[0].mxu0
        %v2593 = vadd.f32 0.0, %v2592
        %v2594 = vpop.f32.mrb[0].mxu0
        %2595 = vmatprep.mubr.f32.mxu0 0.0
        %2596 = vmatmul.mubr.f32.gmra.mrb[0].mxu0 %v2472
        %v2597 = vpop.f32.mrb[0].mxu0
        %v2598 = vadd.f32 0.0, %v2597
        %v2599 = vpop.f32.mrb[0].mxu0
        %2600 = vmatprep.mubr.f32.mxu0 0.0
        %2601 = vmatmul.mubr.f32.gmra.mrb[0].mxu0 %v2475
        %v2602 = vpop.f32.mrb[0].mxu0
        %v2603 = vadd.f32 0.0, %v2602
        %v2604 = vpop.f32.mrb[0].mxu0
        %2605 = vmatprep.mubr.f32.mxu0 0.0
        %2606 = vmatmul.mubr.f32.gmra.mrb[0].mxu0 %v2478
        %v2607 = vpop.f32.mrb[0].mxu0
        %v2608 = vadd.f32 0.0, %v2607
        %v2609 = vpop.f32.mrb[0].mxu0
        %2610 = vmatprep.mubr.f32.mxu0 0.0
        %2611 = vmatmul.mubr.f32.gmra.mrb[0].mxu0 %v2481
        %v2612 = vpop.f32.mrb[0].mxu0
        %v2613 = vadd.f32 0.0, %v2612
        %v2614 = vpop.f32.mrb[0].mxu0
        %2615 = vmatprep.mubr.f32.mxu0 0.0
        %2616 = vmatmul.mubr.f32.gmra.mrb[0].mxu0 %v2484
        %v2617 = vpop.f32.mrb[0].mxu0
        %v2618 = vadd.f32 0.0, %v2617
        %v2619 = vpop.f32.mrb[0].mxu0
        %2620 = vmatprep.mubr.f32.mxu0 0.0
        %2621 = vmatmul.mubr.f32.gmra.mrb[0].mxu0 %v2487
        %v2622 = vpop.f32.mrb[0].mxu0
        %v2623 = vadd.f32 0.0, %v2622
        %v2624 = vpop.f32.mrb[0].mxu0
        %2625 = vmatprep.mubr.f32.mxu0 0.0
        %2626 = vmatmul.mubr.f32.gmra.mrb[0].mxu0 %v2490
        %v2627 = vpop.f32.mrb[0].mxu0
        %v2628 = vadd.f32 0.0, %v2627
        %v2629 = vpop.f32.mrb[0].mxu0
        %2630 = vmatprep.mubr.f32.mxu0 0.0
        %2631 = vmatmul.mubr.f32.gmra.mrb[0].mxu0 %v2493
        %v2632 = vpop.f32.mrb[0].mxu0
        %v2633 = vadd.f32 0.0, %v2632
        %v2634 = vpop.f32.mrb[0].mxu0
        %2635 = vmatprep.mubr.f32.mxu0 0.0
        %2636 = vmatmul.mubr.f32.gmra.mrb[0].mxu0 %v2496
        %v2637 = vpop.f32.mrb[0].mxu0
        %v2638 = vadd.f32 0.0, %v2637
        %v2639 = vpop.f32.mrb[0].mxu0
        %2640 = vmatprep.mubr.f32.mxu0 0.0
        %2641 = vmatmul.mubr.f32.gmra.mrb[0].mxu0 %v2499
        %v2642 = vpop.f32.mrb[0].mxu0
        %v2643 = vadd.f32 0.0, %v2642
        %v2644 = vpop.f32.mrb[0].mxu0
        %2645 = vdwg.mxu0
        %v2646 = vadd.f32 %v2110, %v2568
        %v2647 = vadd.f32 %v2111, %v2573
        %v2648 = vadd.f32 %v2112, %v2578
        %v2649 = vadd.f32 %v2113, %v2583
        %v2650 = vadd.f32 %v2114, %v2588
        %v2651 = vadd.f32 %v2115, %v2593
        %v2652 = vadd.f32 %v2116, %v2598
        %v2653 = vadd.f32 %v2117, %v2603
        %v2654 = vadd.f32 %v2118, %v2608
        %v2655 = vadd.f32 %v2119, %v2613
        %v2656 = vadd.f32 %v2120, %v2618
        %v2657 = vadd.f32 %v2121, %v2623
        %v2658 = vadd.f32 %v2122, %v2628
        %v2659 = vadd.f32 %v2123, %v2633
        %v2660 = vadd.f32 %v2124, %v2638
        %v2661 = vadd.f32 %v2125, %v2643
        %s2662 = scalar_lea.vmem %s446, 112
        %v2663 = vld [vmem:[%s2662] sm:$0xff]
        %v2664 = vld [vmem:[%s2662 + $0x8] sm:$0xff]
        %2665 = vrot.lane.b32.xlu0 %v2434, 112
        %v2666 = vpop.permute.xlu0 %2665
        %2667 = vrot.lane.b32.xlu0 %v2435, 112
        %v2668 = vpop.permute.xlu0 %2667
        %2669 = vrot.lane.b32.xlu0 %v2436, 112
        %v2670 = vpop.permute.xlu0 %2669
        %2671 = vrot.lane.b32.xlu0 %v2437, 112
        %v2672 = vpop.permute.xlu0 %2671
        %2673 = vrot.lane.b32.xlu0 %v2438, 112
        %v2674 = vpop.permute.xlu0 %2673
        %2675 = vrot.lane.b32.xlu0 %v2439, 112
        %v2676 = vpop.permute.xlu0 %2675
        %2677 = vrot.lane.b32.xlu0 %v2440, 112
        %v2678 = vpop.permute.xlu0 %2677
        %2679 = vrot.lane.b32.xlu0 %v2441, 112
        %v2680 = vpop.permute.xlu0 %2679
        %2681 = vrot.lane.b32.xlu0 %v2442, 112
        %v2682 = vpop.permute.xlu0 %2681
        %2683 = vrot.lane.b32.xlu0 %v2443, 112
        %v2684 = vpop.permute.xlu0 %2683
        %2685 = vrot.lane.b32.xlu0 %v2444, 112
        %v2686 = vpop.permute.xlu0 %2685
        %2687 = vrot.lane.b32.xlu0 %v2445, 112
        %v2688 = vpop.permute.xlu0 %2687
        %2689 = vrot.lane.b32.xlu0 %v2446, 112
        %v2690 = vpop.permute.xlu0 %2689
        %2691 = vrot.lane.b32.xlu0 %v2447, 112
        %v2692 = vpop.permute.xlu0 %2691
        %2693 = vrot.lane.b32.xlu0 %v2448, 112
        %v2694 = vpop.permute.xlu0 %2693
        %2695 = vrot.lane.b32.xlu0 %v2449, 112
        %v2696 = vpop.permute.xlu0 %2695
        %v2697 = vsel %vm536, %v2666, 0
        %v2699 = vsel %vm536, %v2668, 0
        %v2701 = vsel %vm536, %v2670, 0
        %v2703 = vsel %vm536, %v2672, 0
        %v2705 = vsel %vm536, %v2674, 0
        %v2707 = vsel %vm536, %v2676, 0
        %v2709 = vsel %vm536, %v2678, 0
        %v2711 = vsel %vm536, %v2680, 0
        %v2713 = vsel %vm536, %v2682, 0
        %v2715 = vsel %vm536, %v2684, 0
        %v2717 = vsel %vm536, %v2686, 0
        %v2719 = vsel %vm536, %v2688, 0
        %v2721 = vsel %vm536, %v2690, 0
        %v2723 = vsel %vm536, %v2692, 0
        %v2725 = vsel %vm536, %v2694, 0
        %v2727 = vsel %vm536, %v2696, 0
        %2729 = vmatprep.subr.mxu0 0.0
        %2730 = vmatpush1.msra.mxu0 %v2663
        %2731 = vmatprep.subr.mxu0 0.0
        %2732 = vmatpush1.msra.mxu0 %v2664
        %2733 = vmatprep.subr.mxu0 0.0
        %2734 = vmatpush1.msra.mxu0 0.0
        %2735 = vmatprep.subr.mxu0 0.0
        %2736 = vmatpush1.msra.mxu0 0.0
        %2737 = vmatprep.subr.mxu0 0.0
        %2738 = vmatpush1.msra.mxu0 0.0
        %2739 = vmatprep.subr.mxu0 0.0
        %2740 = vmatpush1.msra.mxu0 0.0
        %2741 = vmatprep.subr.mxu0 0.0
        %2742 = vmatpush1.msra.mxu0 0.0
        %2743 = vmatprep.subr.mxu0 0.0
        %2744 = vmatpush1.msra.mxu0 0.0
        %2745 = vmatprep.subr.mxu0 0.0
        %2746 = vmatpush1.msra.mxu0 0.0
        %2747 = vmatprep.subr.mxu0 0.0
        %2748 = vmatpush1.msra.mxu0 0.0
        %2749 = vmatprep.subr.mxu0 0.0
        %2750 = vmatpush1.msra.mxu0 0.0
        %2751 = vmatprep.subr.mxu0 0.0
        %2752 = vmatpush1.msra.mxu0 0.0
        %2753 = vmatprep.subr.mxu0 0.0
        %2754 = vmatpush1.msra.mxu0 0.0
        %2755 = vmatprep.subr.mxu0 0.0
        %2756 = vmatpush1.msra.mxu0 0.0
        %2757 = vmatprep.subr.mxu0 0.0
        %2758 = vmatpush1.msra.mxu0 0.0
        %2759 = vmatprep.subr.mxu0 0.0
        %2760 = vmatpush1.msra.mxu0 0.0
        %2761 = vmatprep.subr.mxu0 0.0
        %2762 = vmatpush1.msra.mxu0 0.0
        %2763 = vmatprep.subr.mxu0 0.0
        %2764 = vmatpush1.msra.mxu0 0.0
        %2765 = vmatprep.subr.mxu0 0.0
        %2766 = vmatpush1.msra.mxu0 0.0
        %2767 = vmatprep.subr.mxu0 0.0
        %2768 = vmatpush1.msra.mxu0 0.0
        %2769 = vmatprep.subr.mxu0 0.0
        %2770 = vmatpush1.msra.mxu0 0.0
        %2771 = vmatprep.subr.mxu0 0.0
        %2772 = vmatpush1.msra.mxu0 0.0
        %2773 = vmatprep.subr.mxu0 0.0
        %2774 = vmatpush1.msra.mxu0 0.0
        %2775 = vmatprep.subr.mxu0 0.0
        %2776 = vmatpush1.msra.mxu0 0.0
        %2777 = vmatprep.subr.mxu0 0.0
        %2778 = vmatpush1.msra.mxu0 0.0
        %2779 = vmatprep.subr.mxu0 0.0
        %2780 = vmatpush1.msra.mxu0 0.0
        %2781 = vmatprep.subr.mxu0 0.0
        %2782 = vmatpush1.msra.mxu0 0.0
        %2783 = vmatprep.subr.mxu0 0.0
        %2784 = vmatpush1.msra.mxu0 0.0
        %2785 = vmatprep.subr.mxu0 0.0
        %2786 = vmatpush1.msra.mxu0 0.0
        %2787 = vmatprep.subr.mxu0 0.0
        %2788 = vmatpush1.msra.mxu0 0.0
        %2789 = vmatprep.subr.mxu0 0.0
        %2790 = vmatpush1.msra.mxu0 0.0
        %2791 = vmatprep.subr.mxu0 0.0
        %2792 = vmatpush1.msra.mxu0 0.0
        %2793 = vmatprep.mubr.f32.mxu0 0.0
        %2794 = vmatmul.mubr.f32.gmra.mrb[0].mxu0 %v2697
        %v2795 = vpop.f32.mrb[0].mxu0
        %v2796 = vadd.f32 0.0, %v2795
        %v2797 = vpop.f32.mrb[0].mxu0
        %2798 = vmatprep.mubr.f32.mxu0 0.0
        %2799 = vmatmul.mubr.f32.gmra.mrb[0].mxu0 %v2699
        %v2800 = vpop.f32.mrb[0].mxu0
        %v2801 = vadd.f32 0.0, %v2800
        %v2802 = vpop.f32.mrb[0].mxu0
        %2803 = vmatprep.mubr.f32.mxu0 0.0
        %2804 = vmatmul.mubr.f32.gmra.mrb[0].mxu0 %v2701
        %v2805 = vpop.f32.mrb[0].mxu0
        %v2806 = vadd.f32 0.0, %v2805
        %v2807 = vpop.f32.mrb[0].mxu0
        %2808 = vmatprep.mubr.f32.mxu0 0.0
        %2809 = vmatmul.mubr.f32.gmra.mrb[0].mxu0 %v2703
        %v2810 = vpop.f32.mrb[0].mxu0
        %v2811 = vadd.f32 0.0, %v2810
        %v2812 = vpop.f32.mrb[0].mxu0
        %2813 = vmatprep.mubr.f32.mxu0 0.0
        %2814 = vmatmul.mubr.f32.gmra.mrb[0].mxu0 %v2705
        %v2815 = vpop.f32.mrb[0].mxu0
        %v2816 = vadd.f32 0.0, %v2815
        %v2817 = vpop.f32.mrb[0].mxu0
        %2818 = vmatprep.mubr.f32.mxu0 0.0
        %2819 = vmatmul.mubr.f32.gmra.mrb[0].mxu0 %v2707
        %v2820 = vpop.f32.mrb[0].mxu0
        %v2821 = vadd.f32 0.0, %v2820
        %v2822 = vpop.f32.mrb[0].mxu0
        %2823 = vmatprep.mubr.f32.mxu0 0.0
        %2824 = vmatmul.mubr.f32.gmra.mrb[0].mxu0 %v2709
        %v2825 = vpop.f32.mrb[0].mxu0
        %v2826 = vadd.f32 0.0, %v2825
        %v2827 = vpop.f32.mrb[0].mxu0
        %2828 = vmatprep.mubr.f32.mxu0 0.0
        %2829 = vmatmul.mubr.f32.gmra.mrb[0].mxu0 %v2711
        %v2830 = vpop.f32.mrb[0].mxu0
        %v2831 = vadd.f32 0.0, %v2830
        %v2832 = vpop.f32.mrb[0].mxu0
        %2833 = vmatprep.mubr.f32.mxu0 0.0
        %2834 = vmatmul.mubr.f32.gmra.mrb[0].mxu0 %v2713
        %v2835 = vpop.f32.mrb[0].mxu0
        %v2836 = vadd.f32 0.0, %v2835
        %v2837 = vpop.f32.mrb[0].mxu0
        %2838 = vmatprep.mubr.f32.mxu0 0.0
        %2839 = vmatmul.mubr.f32.gmra.mrb[0].mxu0 %v2715
        %v2840 = vpop.f32.mrb[0].mxu0
        %v2841 = vadd.f32 0.0, %v2840
        %v2842 = vpop.f32.mrb[0].mxu0
        %2843 = vmatprep.mubr.f32.mxu0 0.0
        %2844 = vmatmul.mubr.f32.gmra.mrb[0].mxu0 %v2717
        %v2845 = vpop.f32.mrb[0].mxu0
        %v2846 = vadd.f32 0.0, %v2845
        %v2847 = vpop.f32.mrb[0].mxu0
        %2848 = vmatprep.mubr.f32.mxu0 0.0
        %2849 = vmatmul.mubr.f32.gmra.mrb[0].mxu0 %v2719
        %v2850 = vpop.f32.mrb[0].mxu0
        %v2851 = vadd.f32 0.0, %v2850
        %v2852 = vpop.f32.mrb[0].mxu0
        %2853 = vmatprep.mubr.f32.mxu0 0.0
        %2854 = vmatmul.mubr.f32.gmra.mrb[0].mxu0 %v2721
        %v2855 = vpop.f32.mrb[0].mxu0
        %v2856 = vadd.f32 0.0, %v2855
        %v2857 = vpop.f32.mrb[0].mxu0
        %2858 = vmatprep.mubr.f32.mxu0 0.0
        %2859 = vmatmul.mubr.f32.gmra.mrb[0].mxu0 %v2723
        %v2860 = vpop.f32.mrb[0].mxu0
        %v2861 = vadd.f32 0.0, %v2860
        %v2862 = vpop.f32.mrb[0].mxu0
        %2863 = vmatprep.mubr.f32.mxu0 0.0
        %2864 = vmatmul.mubr.f32.gmra.mrb[0].mxu0 %v2725
        %v2865 = vpop.f32.mrb[0].mxu0
        %v2866 = vadd.f32 0.0, %v2865
        %v2867 = vpop.f32.mrb[0].mxu0
        %2868 = vmatprep.mubr.f32.mxu0 0.0
        %2869 = vmatmul.mubr.f32.gmra.mrb[0].mxu0 %v2727
        %v2870 = vpop.f32.mrb[0].mxu0
        %v2871 = vadd.f32 0.0, %v2870
        %v2872 = vpop.f32.mrb[0].mxu0
        %2873 = vdwg.mxu0
        %v2874 = vadd.f32 %v2338, %v2796
        %v2875 = vadd.f32 %v2339, %v2801
        %v2876 = vadd.f32 %v2340, %v2806
        %v2877 = vadd.f32 %v2341, %v2811
        %v2878 = vadd.f32 %v2342, %v2816
        %v2879 = vadd.f32 %v2343, %v2821
        %v2880 = vadd.f32 %v2344, %v2826
        %v2881 = vadd.f32 %v2345, %v2831
        %v2882 = vadd.f32 %v2346, %v2836
        %v2883 = vadd.f32 %v2347, %v2841
        %v2884 = vadd.f32 %v2348, %v2846
        %v2885 = vadd.f32 %v2349, %v2851
        %v2886 = vadd.f32 %v2350, %v2856
        %v2887 = vadd.f32 %v2351, %v2861
        %v2888 = vadd.f32 %v2352, %v2866
        %v2889 = vadd.f32 %v2353, %v2871
        %v2890 = vld [vmem:[#allocation3 + $0x5] sm:$0xff]
        %v2891 = vld [vmem:[#allocation3 + $0xd] sm:$0xff]
        %v2892 = vld [vmem:[#allocation3 + $0x15] sm:$0xff]
        %v2893 = vld [vmem:[#allocation3 + $0x1d] sm:$0xff]
        %v2894 = vld [vmem:[#allocation3 + $0x25] sm:$0xff]
        %v2895 = vld [vmem:[#allocation3 + $0x2d] sm:$0xff]
        %v2896 = vld [vmem:[#allocation3 + $0x35] sm:$0xff]
        %v2897 = vld [vmem:[#allocation3 + $0x3d] sm:$0xff]
        %v2898 = vld [vmem:[#allocation3 + $0x45] sm:$0xff]
        %v2899 = vld [vmem:[#allocation3 + $0x4d] sm:$0xff]
        %v2900 = vld [vmem:[#allocation3 + $0x55] sm:$0xff]
        %v2901 = vld [vmem:[#allocation3 + $0x5d] sm:$0xff]
        %v2902 = vld [vmem:[#allocation3 + $0x65] sm:$0xff]
        %v2903 = vld [vmem:[#allocation3 + $0x6d] sm:$0xff]
        %v2904 = vld [vmem:[#allocation3 + $0x75] sm:$0xff]
        %v2905 = vld [vmem:[#allocation3 + $0x7d] sm:$0xff]
        %2906 = vset.pattern.permute.xlu0 4
        %2907 = vperm.xlu0 %2906, %v511
        %v2908 = vpop.permute.xlu0 %2907
        %2910 = vset.pattern.permute.xlu0 4
        %2911 = vperm.xlu0 %2910, %v512
        %v2912 = vpop.permute.xlu0 %2911
        %2914 = vset.pattern.permute.xlu0 4
        %2915 = vperm.xlu0 %2914, %v513
        %v2916 = vpop.permute.xlu0 %2915
        %2918 = vset.pattern.permute.xlu0 4
        %2919 = vperm.xlu0 %2918, %v514
        %v2920 = vpop.permute.xlu0 %2919
        %2922 = vset.pattern.permute.xlu0 4
        %2923 = vperm.xlu0 %2922, %v515
        %v2924 = vpop.permute.xlu0 %2923
        %2926 = vset.pattern.permute.xlu0 4
        %2927 = vperm.xlu0 %2926, %v516
        %v2928 = vpop.permute.xlu0 %2927
        %2930 = vset.pattern.permute.xlu0 4
        %2931 = vperm.xlu0 %2930, %v517
        %v2932 = vpop.permute.xlu0 %2931
        %2934 = vset.pattern.permute.xlu0 4
        %2935 = vperm.xlu0 %2934, %v518
        %v2936 = vpop.permute.xlu0 %2935
        %2938 = vset.pattern.permute.xlu0 4
        %2939 = vperm.xlu0 %2938, %v519
        %v2940 = vpop.permute.xlu0 %2939
        %2942 = vset.pattern.permute.xlu0 4
        %2943 = vperm.xlu0 %2942, %v520
        %v2944 = vpop.permute.xlu0 %2943
        %2946 = vset.pattern.permute.xlu0 4
        %2947 = vperm.xlu0 %2946, %v521
        %v2948 = vpop.permute.xlu0 %2947
        %2950 = vset.pattern.permute.xlu0 4
        %2951 = vperm.xlu0 %2950, %v522
        %v2952 = vpop.permute.xlu0 %2951
        %2954 = vset.pattern.permute.xlu0 4
        %2955 = vperm.xlu0 %2954, %v523
        %v2956 = vpop.permute.xlu0 %2955
        %2958 = vset.pattern.permute.xlu0 4
        %2959 = vperm.xlu0 %2958, %v524
        %v2960 = vpop.permute.xlu0 %2959
        %2962 = vset.pattern.permute.xlu0 4
        %2963 = vperm.xlu0 %2962, %v525
        %v2964 = vpop.permute.xlu0 %2963
        %2966 = vset.pattern.permute.xlu0 4
        %2967 = vperm.xlu0 %2966, %v526
        %v2968 = vpop.permute.xlu0 %2967
        %v2970 = vmul.f32 %v2890, %v2908
        %v2971 = vmul.f32 %v2891, %v2912
        %v2972 = vmul.f32 %v2892, %v2916
        %v2973 = vmul.f32 %v2893, %v2920
        %v2974 = vmul.f32 %v2894, %v2924
        %v2975 = vmul.f32 %v2895, %v2928
        %v2976 = vmul.f32 %v2896, %v2932
        %v2977 = vmul.f32 %v2897, %v2936
        %v2978 = vmul.f32 %v2898, %v2940
        %v2979 = vmul.f32 %v2899, %v2944
        %v2980 = vmul.f32 %v2900, %v2948
        %v2981 = vmul.f32 %v2901, %v2952
        %v2982 = vmul.f32 %v2902, %v2956
        %v2983 = vmul.f32 %v2903, %v2960
        %v2984 = vmul.f32 %v2904, %v2964
        %v2985 = vmul.f32 %v2905, %v2968
        %s2986 = scalar_lea.vmem %s446, 128
        %v2987 = vld [vmem:[%s2986] sm:$0xff]
        %v2988 = vld [vmem:[%s2986 + $0x8] sm:$0xff]
        %v2990 = vsel %vm536, %v2970, 0
        %v2993 = vsel %vm536, %v2971, 0
        %v2996 = vsel %vm536, %v2972, 0
        %v2999 = vsel %vm536, %v2973, 0
        %v3002 = vsel %vm536, %v2974, 0
        %v3005 = vsel %vm536, %v2975, 0
        %v3008 = vsel %vm536, %v2976, 0
        %v3011 = vsel %vm536, %v2977, 0
        %v3014 = vsel %vm536, %v2978, 0
        %v3017 = vsel %vm536, %v2979, 0
        %v3020 = vsel %vm536, %v2980, 0
        %v3023 = vsel %vm536, %v2981, 0
        %v3026 = vsel %vm536, %v2982, 0
        %v3029 = vsel %vm536, %v2983, 0
        %v3032 = vsel %vm536, %v2984, 0
        %v3035 = vsel %vm536, %v2985, 0
        %3037 = vmatprep.subr.mxu0 0.0
        %3038 = vmatpush1.msra.mxu0 %v2987
        %3039 = vmatprep.subr.mxu0 0.0
        %3040 = vmatpush1.msra.mxu0 %v2988
        %3041 = vmatprep.subr.mxu0 0.0
        %3042 = vmatpush1.msra.mxu0 0.0
        %3043 = vmatprep.subr.mxu0 0.0
        %3044 = vmatpush1.msra.mxu0 0.0
        %3045 = vmatprep.subr.mxu0 0.0
        %3046 = vmatpush1.msra.mxu0 0.0
        %3047 = vmatprep.subr.mxu0 0.0
        %3048 = vmatpush1.msra.mxu0 0.0
        %3049 = vmatprep.subr.mxu0 0.0
        %3050 = vmatpush1.msra.mxu0 0.0
        %3051 = vmatprep.subr.mxu0 0.0
        %3052 = vmatpush1.msra.mxu0 0.0
        %3053 = vmatprep.subr.mxu0 0.0
        %3054 = vmatpush1.msra.mxu0 0.0
        %3055 = vmatprep.subr.mxu0 0.0
        %3056 = vmatpush1.msra.mxu0 0.0
        %3057 = vmatprep.subr.mxu0 0.0
        %3058 = vmatpush1.msra.mxu0 0.0
        %3059 = vmatprep.subr.mxu0 0.0
        %3060 = vmatpush1.msra.mxu0 0.0
        %3061 = vmatprep.subr.mxu0 0.0
        %3062 = vmatpush1.msra.mxu0 0.0
        %3063 = vmatprep.subr.mxu0 0.0
        %3064 = vmatpush1.msra.mxu0 0.0
        %3065 = vmatprep.subr.mxu0 0.0
        %3066 = vmatpush1.msra.mxu0 0.0
        %3067 = vmatprep.subr.mxu0 0.0
        %3068 = vmatpush1.msra.mxu0 0.0
        %3069 = vmatprep.subr.mxu0 0.0
        %3070 = vmatpush1.msra.mxu0 0.0
        %3071 = vmatprep.subr.mxu0 0.0
        %3072 = vmatpush1.msra.mxu0 0.0
        %3073 = vmatprep.subr.mxu0 0.0
        %3074 = vmatpush1.msra.mxu0 0.0
        %3075 = vmatprep.subr.mxu0 0.0
        %3076 = vmatpush1.msra.mxu0 0.0
        %3077 = vmatprep.subr.mxu0 0.0
        %3078 = vmatpush1.msra.mxu0 0.0
        %3079 = vmatprep.subr.mxu0 0.0
        %3080 = vmatpush1.msra.mxu0 0.0
        %3081 = vmatprep.subr.mxu0 0.0
        %3082 = vmatpush1.msra.mxu0 0.0
        %3083 = vmatprep.subr.mxu0 0.0
        %3084 = vmatpush1.msra.mxu0 0.0
        %3085 = vmatprep.subr.mxu0 0.0
        %3086 = vmatpush1.msra.mxu0 0.0
        %3087 = vmatprep.subr.mxu0 0.0
        %3088 = vmatpush1.msra.mxu0 0.0
        %3089 = vmatprep.subr.mxu0 0.0
        %3090 = vmatpush1.msra.mxu0 0.0
        %3091 = vmatprep.subr.mxu0 0.0
        %3092 = vmatpush1.msra.mxu0 0.0
        %3093 = vmatprep.subr.mxu0 0.0
        %3094 = vmatpush1.msra.mxu0 0.0
        %3095 = vmatprep.subr.mxu0 0.0
        %3096 = vmatpush1.msra.mxu0 0.0
        %3097 = vmatprep.subr.mxu0 0.0
        %3098 = vmatpush1.msra.mxu0 0.0
        %3099 = vmatprep.subr.mxu0 0.0
        %3100 = vmatpush1.msra.mxu0 0.0
        %3101 = vmatprep.mubr.f32.mxu0 0.0
        %3102 = vmatmul.mubr.f32.gmra.mrb[0].mxu0 %v2990
        %v3103 = vpop.f32.mrb[0].mxu0
        %v3104 = vadd.f32 0.0, %v3103
        %v3105 = vpop.f32.mrb[0].mxu0
        %3106 = vmatprep.mubr.f32.mxu0 0.0
        %3107 = vmatmul.mubr.f32.gmra.mrb[0].mxu0 %v2993
        %v3108 = vpop.f32.mrb[0].mxu0
        %v3109 = vadd.f32 0.0, %v3108
        %v3110 = vpop.f32.mrb[0].mxu0
        %3111 = vmatprep.mubr.f32.mxu0 0.0
        %3112 = vmatmul.mubr.f32.gmra.mrb[0].mxu0 %v2996
        %v3113 = vpop.f32.mrb[0].mxu0
        %v3114 = vadd.f32 0.0, %v3113
        %v3115 = vpop.f32.mrb[0].mxu0
        %3116 = vmatprep.mubr.f32.mxu0 0.0
        %3117 = vmatmul.mubr.f32.gmra.mrb[0].mxu0 %v2999
        %v3118 = vpop.f32.mrb[0].mxu0
        %v3119 = vadd.f32 0.0, %v3118
        %v3120 = vpop.f32.mrb[0].mxu0
        %3121 = vmatprep.mubr.f32.mxu0 0.0
        %3122 = vmatmul.mubr.f32.gmra.mrb[0].mxu0 %v3002
        %v3123 = vpop.f32.mrb[0].mxu0
        %v3124 = vadd.f32 0.0, %v3123
        %v3125 = vpop.f32.mrb[0].mxu0
        %3126 = vmatprep.mubr.f32.mxu0 0.0
        %3127 = vmatmul.mubr.f32.gmra.mrb[0].mxu0 %v3005
        %v3128 = vpop.f32.mrb[0].mxu0
        %v3129 = vadd.f32 0.0, %v3128
        %v3130 = vpop.f32.mrb[0].mxu0
        %3131 = vmatprep.mubr.f32.mxu0 0.0
        %3132 = vmatmul.mubr.f32.gmra.mrb[0].mxu0 %v3008
        %v3133 = vpop.f32.mrb[0].mxu0
        %v3134 = vadd.f32 0.0, %v3133
        %v3135 = vpop.f32.mrb[0].mxu0
        %3136 = vmatprep.mubr.f32.mxu0 0.0
        %3137 = vmatmul.mubr.f32.gmra.mrb[0].mxu0 %v3011
        %v3138 = vpop.f32.mrb[0].mxu0
        %v3139 = vadd.f32 0.0, %v3138
        %v3140 = vpop.f32.mrb[0].mxu0
        %3141 = vmatprep.mubr.f32.mxu0 0.0
        %3142 = vmatmul.mubr.f32.gmra.mrb[0].mxu0 %v3014
        %v3143 = vpop.f32.mrb[0].mxu0
        %v3144 = vadd.f32 0.0, %v3143
        %v3145 = vpop.f32.mrb[0].mxu0
        %3146 = vmatprep.mubr.f32.mxu0 0.0
        %3147 = vmatmul.mubr.f32.gmra.mrb[0].mxu0 %v3017
        %v3148 = vpop.f32.mrb[0].mxu0
        %v3149 = vadd.f32 0.0, %v3148
        %v3150 = vpop.f32.mrb[0].mxu0
        %3151 = vmatprep.mubr.f32.mxu0 0.0
        %3152 = vmatmul.mubr.f32.gmra.mrb[0].mxu0 %v3020
        %v3153 = vpop.f32.mrb[0].mxu0
        %v3154 = vadd.f32 0.0, %v3153
        %v3155 = vpop.f32.mrb[0].mxu0
        %3156 = vmatprep.mubr.f32.mxu0 0.0
        %3157 = vmatmul.mubr.f32.gmra.mrb[0].mxu0 %v3023
        %v3158 = vpop.f32.mrb[0].mxu0
        %v3159 = vadd.f32 0.0, %v3158
        %v3160 = vpop.f32.mrb[0].mxu0
        %3161 = vmatprep.mubr.f32.mxu0 0.0
        %3162 = vmatmul.mubr.f32.gmra.mrb[0].mxu0 %v3026
        %v3163 = vpop.f32.mrb[0].mxu0
        %v3164 = vadd.f32 0.0, %v3163
        %v3165 = vpop.f32.mrb[0].mxu0
        %3166 = vmatprep.mubr.f32.mxu0 0.0
        %3167 = vmatmul.mubr.f32.gmra.mrb[0].mxu0 %v3029
        %v3168 = vpop.f32.mrb[0].mxu0
        %v3169 = vadd.f32 0.0, %v3168
        %v3170 = vpop.f32.mrb[0].mxu0
        %3171 = vmatprep.mubr.f32.mxu0 0.0
        %3172 = vmatmul.mubr.f32.gmra.mrb[0].mxu0 %v3032
        %v3173 = vpop.f32.mrb[0].mxu0
        %v3174 = vadd.f32 0.0, %v3173
        %v3175 = vpop.f32.mrb[0].mxu0
        %3176 = vmatprep.mubr.f32.mxu0 0.0
        %3177 = vmatmul.mubr.f32.gmra.mrb[0].mxu0 %v3035
        %v3178 = vpop.f32.mrb[0].mxu0
        %v3179 = vadd.f32 0.0, %v3178
        %v3180 = vpop.f32.mrb[0].mxu0
        %3181 = vdwg.mxu0
        %v3182 = vadd.f32 %v2646, %v3104
        %v3183 = vadd.f32 %v2647, %v3109
        %v3184 = vadd.f32 %v2648, %v3114
        %v3185 = vadd.f32 %v2649, %v3119
        %v3186 = vadd.f32 %v2650, %v3124
        %v3187 = vadd.f32 %v2651, %v3129
        %v3188 = vadd.f32 %v2652, %v3134
        %v3189 = vadd.f32 %v2653, %v3139
        %v3190 = vadd.f32 %v2654, %v3144
        %v3191 = vadd.f32 %v2655, %v3149
        %v3192 = vadd.f32 %v2656, %v3154
        %v3193 = vadd.f32 %v2657, %v3159
        %v3194 = vadd.f32 %v2658, %v3164
        %v3195 = vadd.f32 %v2659, %v3169
        %v3196 = vadd.f32 %v2660, %v3174
        %v3197 = vadd.f32 %v2661, %v3179
        %s3198 = scalar_lea.vmem %s446, 144
        %v3199 = vld [vmem:[%s3198] sm:$0xff]
        %v3200 = vld [vmem:[%s3198 + $0x8] sm:$0xff]
        %3201 = vrot.lane.b32.xlu0 %v2970, 112
        %v3202 = vpop.permute.xlu0 %3201
        %3203 = vrot.lane.b32.xlu0 %v2971, 112
        %v3204 = vpop.permute.xlu0 %3203
        %3205 = vrot.lane.b32.xlu0 %v2972, 112
        %v3206 = vpop.permute.xlu0 %3205
        %3207 = vrot.lane.b32.xlu0 %v2973, 112
        %v3208 = vpop.permute.xlu0 %3207
        %3209 = vrot.lane.b32.xlu0 %v2974, 112
        %v3210 = vpop.permute.xlu0 %3209
        %3211 = vrot.lane.b32.xlu0 %v2975, 112
        %v3212 = vpop.permute.xlu0 %3211
        %3213 = vrot.lane.b32.xlu0 %v2976, 112
        %v3214 = vpop.permute.xlu0 %3213
        %3215 = vrot.lane.b32.xlu0 %v2977, 112
        %v3216 = vpop.permute.xlu0 %3215
        %3217 = vrot.lane.b32.xlu0 %v2978, 112
        %v3218 = vpop.permute.xlu0 %3217
        %3219 = vrot.lane.b32.xlu0 %v2979, 112
        %v3220 = vpop.permute.xlu0 %3219
        %3221 = vrot.lane.b32.xlu0 %v2980, 112
        %v3222 = vpop.permute.xlu0 %3221
        %3223 = vrot.lane.b32.xlu0 %v2981, 112
        %v3224 = vpop.permute.xlu0 %3223
        %3225 = vrot.lane.b32.xlu0 %v2982, 112
        %v3226 = vpop.permute.xlu0 %3225
        %3227 = vrot.lane.b32.xlu0 %v2983, 112
        %v3228 = vpop.permute.xlu0 %3227
        %3229 = vrot.lane.b32.xlu0 %v2984, 112
        %v3230 = vpop.permute.xlu0 %3229
        %3231 = vrot.lane.b32.xlu0 %v2985, 112
        %v3232 = vpop.permute.xlu0 %3231
        %v3233 = vsel %vm536, %v3202, 0
        %v3235 = vsel %vm536, %v3204, 0
        %v3237 = vsel %vm536, %v3206, 0
        %v3239 = vsel %vm536, %v3208, 0
        %v3241 = vsel %vm536, %v3210, 0
        %v3243 = vsel %vm536, %v3212, 0
        %v3245 = vsel %vm536, %v3214, 0
        %v3247 = vsel %vm536, %v3216, 0
        %v3249 = vsel %vm536, %v3218, 0
        %v3251 = vsel %vm536, %v3220, 0
        %v3253 = vsel %vm536, %v3222, 0
        %v3255 = vsel %vm536, %v3224, 0
        %v3257 = vsel %vm536, %v3226, 0
        %v3259 = vsel %vm536, %v3228, 0
        %v3261 = vsel %vm536, %v3230, 0
        %v3263 = vsel %vm536, %v3232, 0
        %3265 = vmatprep.subr.mxu0 0.0
        %3266 = vmatpush1.msra.mxu0 %v3199
        %3267 = vmatprep.subr.mxu0 0.0
        %3268 = vmatpush1.msra.mxu0 %v3200
        %3269 = vmatprep.subr.mxu0 0.0
        %3270 = vmatpush1.msra.mxu0 0.0
        %3271 = vmatprep.subr.mxu0 0.0
        %3272 = vmatpush1.msra.mxu0 0.0
        %3273 = vmatprep.subr.mxu0 0.0
        %3274 = vmatpush1.msra.mxu0 0.0
        %3275 = vmatprep.subr.mxu0 0.0
        %3276 = vmatpush1.msra.mxu0 0.0
        %3277 = vmatprep.subr.mxu0 0.0
        %3278 = vmatpush1.msra.mxu0 0.0
        %3279 = vmatprep.subr.mxu0 0.0
        %3280 = vmatpush1.msra.mxu0 0.0
        %3281 = vmatprep.subr.mxu0 0.0
        %3282 = vmatpush1.msra.mxu0 0.0
        %3283 = vmatprep.subr.mxu0 0.0
        %3284 = vmatpush1.msra.mxu0 0.0
        %3285 = vmatprep.subr.mxu0 0.0
        %3286 = vmatpush1.msra.mxu0 0.0
        %3287 = vmatprep.subr.mxu0 0.0
        %3288 = vmatpush1.msra.mxu0 0.0
        %3289 = vmatprep.subr.mxu0 0.0
        %3290 = vmatpush1.msra.mxu0 0.0
        %3291 = vmatprep.subr.mxu0 0.0
        %3292 = vmatpush1.msra.mxu0 0.0
        %3293 = vmatprep.subr.mxu0 0.0
        %3294 = vmatpush1.msra.mxu0 0.0
        %3295 = vmatprep.subr.mxu0 0.0
        %3296 = vmatpush1.msra.mxu0 0.0
        %3297 = vmatprep.subr.mxu0 0.0
        %3298 = vmatpush1.msra.mxu0 0.0
        %3299 = vmatprep.subr.mxu0 0.0
        %3300 = vmatpush1.msra.mxu0 0.0
        %3301 = vmatprep.subr.mxu0 0.0
        %3302 = vmatpush1.msra.mxu0 0.0
        %3303 = vmatprep.subr.mxu0 0.0
        %3304 = vmatpush1.msra.mxu0 0.0
        %3305 = vmatprep.subr.mxu0 0.0
        %3306 = vmatpush1.msra.mxu0 0.0
        %3307 = vmatprep.subr.mxu0 0.0
        %3308 = vmatpush1.msra.mxu0 0.0
        %3309 = vmatprep.subr.mxu0 0.0
        %3310 = vmatpush1.msra.mxu0 0.0
        %3311 = vmatprep.subr.mxu0 0.0
        %3312 = vmatpush1.msra.mxu0 0.0
        %3313 = vmatprep.subr.mxu0 0.0
        %3314 = vmatpush1.msra.mxu0 0.0
        %3315 = vmatprep.subr.mxu0 0.0
        %3316 = vmatpush1.msra.mxu0 0.0
        %3317 = vmatprep.subr.mxu0 0.0
        %3318 = vmatpush1.msra.mxu0 0.0
        %3319 = vmatprep.subr.mxu0 0.0
        %3320 = vmatpush1.msra.mxu0 0.0
        %3321 = vmatprep.subr.mxu0 0.0
        %3322 = vmatpush1.msra.mxu0 0.0
        %3323 = vmatprep.subr.mxu0 0.0
        %3324 = vmatpush1.msra.mxu0 0.0
        %3325 = vmatprep.subr.mxu0 0.0
        %3326 = vmatpush1.msra.mxu0 0.0
        %3327 = vmatprep.subr.mxu0 0.0
        %3328 = vmatpush1.msra.mxu0 0.0
        %3329 = vmatprep.mubr.f32.mxu0 0.0
        %3330 = vmatmul.mubr.f32.gmra.mrb[0].mxu0 %v3233
        %v3331 = vpop.f32.mrb[0].mxu0
        %v3332 = vadd.f32 0.0, %v3331
        %v3333 = vpop.f32.mrb[0].mxu0
        %3334 = vmatprep.mubr.f32.mxu0 0.0
        %3335 = vmatmul.mubr.f32.gmra.mrb[0].mxu0 %v3235
        %v3336 = vpop.f32.mrb[0].mxu0
        %v3337 = vadd.f32 0.0, %v3336
        %v3338 = vpop.f32.mrb[0].mxu0
        %3339 = vmatprep.mubr.f32.mxu0 0.0
        %3340 = vmatmul.mubr.f32.gmra.mrb[0].mxu0 %v3237
        %v3341 = vpop.f32.mrb[0].mxu0
        %v3342 = vadd.f32 0.0, %v3341
        %v3343 = vpop.f32.mrb[0].mxu0
        %3344 = vmatprep.mubr.f32.mxu0 0.0
        %3345 = vmatmul.mubr.f32.gmra.mrb[0].mxu0 %v3239
        %v3346 = vpop.f32.mrb[0].mxu0
        %v3347 = vadd.f32 0.0, %v3346
        %v3348 = vpop.f32.mrb[0].mxu0
        %3349 = vmatprep.mubr.f32.mxu0 0.0
        %3350 = vmatmul.mubr.f32.gmra.mrb[0].mxu0 %v3241
        %v3351 = vpop.f32.mrb[0].mxu0
        %v3352 = vadd.f32 0.0, %v3351
        %v3353 = vpop.f32.mrb[0].mxu0
        %3354 = vmatprep.mubr.f32.mxu0 0.0
        %3355 = vmatmul.mubr.f32.gmra.mrb[0].mxu0 %v3243
        %v3356 = vpop.f32.mrb[0].mxu0
        %v3357 = vadd.f32 0.0, %v3356
        %v3358 = vpop.f32.mrb[0].mxu0
        %3359 = vmatprep.mubr.f32.mxu0 0.0
        %3360 = vmatmul.mubr.f32.gmra.mrb[0].mxu0 %v3245
        %v3361 = vpop.f32.mrb[0].mxu0
        %v3362 = vadd.f32 0.0, %v3361
        %v3363 = vpop.f32.mrb[0].mxu0
        %3364 = vmatprep.mubr.f32.mxu0 0.0
        %3365 = vmatmul.mubr.f32.gmra.mrb[0].mxu0 %v3247
        %v3366 = vpop.f32.mrb[0].mxu0
        %v3367 = vadd.f32 0.0, %v3366
        %v3368 = vpop.f32.mrb[0].mxu0
        %3369 = vmatprep.mubr.f32.mxu0 0.0
        %3370 = vmatmul.mubr.f32.gmra.mrb[0].mxu0 %v3249
        %v3371 = vpop.f32.mrb[0].mxu0
        %v3372 = vadd.f32 0.0, %v3371
        %v3373 = vpop.f32.mrb[0].mxu0
        %3374 = vmatprep.mubr.f32.mxu0 0.0
        %3375 = vmatmul.mubr.f32.gmra.mrb[0].mxu0 %v3251
        %v3376 = vpop.f32.mrb[0].mxu0
        %v3377 = vadd.f32 0.0, %v3376
        %v3378 = vpop.f32.mrb[0].mxu0
        %3379 = vmatprep.mubr.f32.mxu0 0.0
        %3380 = vmatmul.mubr.f32.gmra.mrb[0].mxu0 %v3253
        %v3381 = vpop.f32.mrb[0].mxu0
        %v3382 = vadd.f32 0.0, %v3381
        %v3383 = vpop.f32.mrb[0].mxu0
        %3384 = vmatprep.mubr.f32.mxu0 0.0
        %3385 = vmatmul.mubr.f32.gmra.mrb[0].mxu0 %v3255
        %v3386 = vpop.f32.mrb[0].mxu0
        %v3387 = vadd.f32 0.0, %v3386
        %v3388 = vpop.f32.mrb[0].mxu0
        %3389 = vmatprep.mubr.f32.mxu0 0.0
        %3390 = vmatmul.mubr.f32.gmra.mrb[0].mxu0 %v3257
        %v3391 = vpop.f32.mrb[0].mxu0
        %v3392 = vadd.f32 0.0, %v3391
        %v3393 = vpop.f32.mrb[0].mxu0
        %3394 = vmatprep.mubr.f32.mxu0 0.0
        %3395 = vmatmul.mubr.f32.gmra.mrb[0].mxu0 %v3259
        %v3396 = vpop.f32.mrb[0].mxu0
        %v3397 = vadd.f32 0.0, %v3396
        %v3398 = vpop.f32.mrb[0].mxu0
        %3399 = vmatprep.mubr.f32.mxu0 0.0
        %3400 = vmatmul.mubr.f32.gmra.mrb[0].mxu0 %v3261
        %v3401 = vpop.f32.mrb[0].mxu0
        %v3402 = vadd.f32 0.0, %v3401
        %v3403 = vpop.f32.mrb[0].mxu0
        %3404 = vmatprep.mubr.f32.mxu0 0.0
        %3405 = vmatmul.mubr.f32.gmra.mrb[0].mxu0 %v3263
        %v3406 = vpop.f32.mrb[0].mxu0
        %v3407 = vadd.f32 0.0, %v3406
        %v3408 = vpop.f32.mrb[0].mxu0
        %3409 = vdwg.mxu0
        %v3410 = vadd.f32 %v2874, %v3332
        %v3411 = vadd.f32 %v2875, %v3337
        %v3412 = vadd.f32 %v2876, %v3342
        %v3413 = vadd.f32 %v2877, %v3347
        %v3414 = vadd.f32 %v2878, %v3352
        %v3415 = vadd.f32 %v2879, %v3357
        %v3416 = vadd.f32 %v2880, %v3362
        %v3417 = vadd.f32 %v2881, %v3367
        %v3418 = vadd.f32 %v2882, %v3372
        %v3419 = vadd.f32 %v2883, %v3377
        %v3420 = vadd.f32 %v2884, %v3382
        %v3421 = vadd.f32 %v2885, %v3387
        %v3422 = vadd.f32 %v2886, %v3392
        %v3423 = vadd.f32 %v2887, %v3397
        %v3424 = vadd.f32 %v2888, %v3402
        %v3425 = vadd.f32 %v2889, %v3407
        %v3426 = vld [vmem:[#allocation3 + $0x6] sm:$0xff]
        %v3427 = vld [vmem:[#allocation3 + $0xe] sm:$0xff]
        %v3428 = vld [vmem:[#allocation3 + $0x16] sm:$0xff]
        %v3429 = vld [vmem:[#allocation3 + $0x1e] sm:$0xff]
        %v3430 = vld [vmem:[#allocation3 + $0x26] sm:$0xff]
        %v3431 = vld [vmem:[#allocation3 + $0x2e] sm:$0xff]
        %v3432 = vld [vmem:[#allocation3 + $0x36] sm:$0xff]
        %v3433 = vld [vmem:[#allocation3 + $0x3e] sm:$0xff]
        %v3434 = vld [vmem:[#allocation3 + $0x46] sm:$0xff]
        %v3435 = vld [vmem:[#allocation3 + $0x4e] sm:$0xff]
        %v3436 = vld [vmem:[#allocation3 + $0x56] sm:$0xff]
        %v3437 = vld [vmem:[#allocation3 + $0x5e] sm:$0xff]
        %v3438 = vld [vmem:[#allocation3 + $0x66] sm:$0xff]
        %v3439 = vld [vmem:[#allocation3 + $0x6e] sm:$0xff]
        %v3440 = vld [vmem:[#allocation3 + $0x76] sm:$0xff]
        %v3441 = vld [vmem:[#allocation3 + $0x7e] sm:$0xff]
        %3442 = vset.pattern.permute.xlu0 5
        %3443 = vperm.xlu0 %3442, %v511
        %v3444 = vpop.permute.xlu0 %3443
        %3446 = vset.pattern.permute.xlu0 5
        %3447 = vperm.xlu0 %3446, %v512
        %v3448 = vpop.permute.xlu0 %3447
        %3450 = vset.pattern.permute.xlu0 5
        %3451 = vperm.xlu0 %3450, %v513
        %v3452 = vpop.permute.xlu0 %3451
        %3454 = vset.pattern.permute.xlu0 5
        %3455 = vperm.xlu0 %3454, %v514
        %v3456 = vpop.permute.xlu0 %3455
        %3458 = vset.pattern.permute.xlu0 5
        %3459 = vperm.xlu0 %3458, %v515
        %v3460 = vpop.permute.xlu0 %3459
        %3462 = vset.pattern.permute.xlu0 5
        %3463 = vperm.xlu0 %3462, %v516
        %v3464 = vpop.permute.xlu0 %3463
        %3466 = vset.pattern.permute.xlu0 5
        %3467 = vperm.xlu0 %3466, %v517
        %v3468 = vpop.permute.xlu0 %3467
        %3470 = vset.pattern.permute.xlu0 5
        %3471 = vperm.xlu0 %3470, %v518
        %v3472 = vpop.permute.xlu0 %3471
        %3474 = vset.pattern.permute.xlu0 5
        %3475 = vperm.xlu0 %3474, %v519
        %v3476 = vpop.permute.xlu0 %3475
        %3478 = vset.pattern.permute.xlu0 5
        %3479 = vperm.xlu0 %3478, %v520
        %v3480 = vpop.permute.xlu0 %3479
        %3482 = vset.pattern.permute.xlu0 5
        %3483 = vperm.xlu0 %3482, %v521
        %v3484 = vpop.permute.xlu0 %3483
        %3486 = vset.pattern.permute.xlu0 5
        %3487 = vperm.xlu0 %3486, %v522
        %v3488 = vpop.permute.xlu0 %3487
        %3490 = vset.pattern.permute.xlu0 5
        %3491 = vperm.xlu0 %3490, %v523
        %v3492 = vpop.permute.xlu0 %3491
        %3494 = vset.pattern.permute.xlu0 5
        %3495 = vperm.xlu0 %3494, %v524
        %v3496 = vpop.permute.xlu0 %3495
        %3498 = vset.pattern.permute.xlu0 5
        %3499 = vperm.xlu0 %3498, %v525
        %v3500 = vpop.permute.xlu0 %3499
        %3502 = vset.pattern.permute.xlu0 5
        %3503 = vperm.xlu0 %3502, %v526
        %v3504 = vpop.permute.xlu0 %3503
        %v3506 = vmul.f32 %v3426, %v3444
        %v3507 = vmul.f32 %v3427, %v3448
        %v3508 = vmul.f32 %v3428, %v3452
        %v3509 = vmul.f32 %v3429, %v3456
        %v3510 = vmul.f32 %v3430, %v3460
        %v3511 = vmul.f32 %v3431, %v3464
        %v3512 = vmul.f32 %v3432, %v3468
        %v3513 = vmul.f32 %v3433, %v3472
        %v3514 = vmul.f32 %v3434, %v3476
        %v3515 = vmul.f32 %v3435, %v3480
        %v3516 = vmul.f32 %v3436, %v3484
        %v3517 = vmul.f32 %v3437, %v3488
        %v3518 = vmul.f32 %v3438, %v3492
        %v3519 = vmul.f32 %v3439, %v3496
        %v3520 = vmul.f32 %v3440, %v3500
        %v3521 = vmul.f32 %v3441, %v3504
        %s3522 = scalar_lea.vmem %s446, 160
        %v3523 = vld [vmem:[%s3522] sm:$0xff]
        %v3524 = vld [vmem:[%s3522 + $0x8] sm:$0xff]
        %v3526 = vsel %vm536, %v3506, 0
        %v3529 = vsel %vm536, %v3507, 0
        %v3532 = vsel %vm536, %v3508, 0
        %v3535 = vsel %vm536, %v3509, 0
        %v3538 = vsel %vm536, %v3510, 0
        %v3541 = vsel %vm536, %v3511, 0
        %v3544 = vsel %vm536, %v3512, 0
        %v3547 = vsel %vm536, %v3513, 0
        %v3550 = vsel %vm536, %v3514, 0
        %v3553 = vsel %vm536, %v3515, 0
        %v3556 = vsel %vm536, %v3516, 0
        %v3559 = vsel %vm536, %v3517, 0
        %v3562 = vsel %vm536, %v3518, 0
        %v3565 = vsel %vm536, %v3519, 0
        %v3568 = vsel %vm536, %v3520, 0
        %v3571 = vsel %vm536, %v3521, 0
        %3573 = vmatprep.subr.mxu0 0.0
        %3574 = vmatpush1.msra.mxu0 %v3523
        %3575 = vmatprep.subr.mxu0 0.0
        %3576 = vmatpush1.msra.mxu0 %v3524
        %3577 = vmatprep.subr.mxu0 0.0
        %3578 = vmatpush1.msra.mxu0 0.0
        %3579 = vmatprep.subr.mxu0 0.0
        %3580 = vmatpush1.msra.mxu0 0.0
        %3581 = vmatprep.subr.mxu0 0.0
        %3582 = vmatpush1.msra.mxu0 0.0
        %3583 = vmatprep.subr.mxu0 0.0
        %3584 = vmatpush1.msra.mxu0 0.0
        %3585 = vmatprep.subr.mxu0 0.0
        %3586 = vmatpush1.msra.mxu0 0.0
        %3587 = vmatprep.subr.mxu0 0.0
        %3588 = vmatpush1.msra.mxu0 0.0
        %3589 = vmatprep.subr.mxu0 0.0
        %3590 = vmatpush1.msra.mxu0 0.0
        %3591 = vmatprep.subr.mxu0 0.0
        %3592 = vmatpush1.msra.mxu0 0.0
        %3593 = vmatprep.subr.mxu0 0.0
        %3594 = vmatpush1.msra.mxu0 0.0
        %3595 = vmatprep.subr.mxu0 0.0
        %3596 = vmatpush1.msra.mxu0 0.0
        %3597 = vmatprep.subr.mxu0 0.0
        %3598 = vmatpush1.msra.mxu0 0.0
        %3599 = vmatprep.subr.mxu0 0.0
        %3600 = vmatpush1.msra.mxu0 0.0
        %3601 = vmatprep.subr.mxu0 0.0
        %3602 = vmatpush1.msra.mxu0 0.0
        %3603 = vmatprep.subr.mxu0 0.0
        %3604 = vmatpush1.msra.mxu0 0.0
        %3605 = vmatprep.subr.mxu0 0.0
        %3606 = vmatpush1.msra.mxu0 0.0
        %3607 = vmatprep.subr.mxu0 0.0
        %3608 = vmatpush1.msra.mxu0 0.0
        %3609 = vmatprep.subr.mxu0 0.0
        %3610 = vmatpush1.msra.mxu0 0.0
        %3611 = vmatprep.subr.mxu0 0.0
        %3612 = vmatpush1.msra.mxu0 0.0
        %3613 = vmatprep.subr.mxu0 0.0
        %3614 = vmatpush1.msra.mxu0 0.0
        %3615 = vmatprep.subr.mxu0 0.0
        %3616 = vmatpush1.msra.mxu0 0.0
        %3617 = vmatprep.subr.mxu0 0.0
        %3618 = vmatpush1.msra.mxu0 0.0
        %3619 = vmatprep.subr.mxu0 0.0
        %3620 = vmatpush1.msra.mxu0 0.0
        %3621 = vmatprep.subr.mxu0 0.0
        %3622 = vmatpush1.msra.mxu0 0.0
        %3623 = vmatprep.subr.mxu0 0.0
        %3624 = vmatpush1.msra.mxu0 0.0
        %3625 = vmatprep.subr.mxu0 0.0
        %3626 = vmatpush1.msra.mxu0 0.0
        %3627 = vmatprep.subr.mxu0 0.0
        %3628 = vmatpush1.msra.mxu0 0.0
        %3629 = vmatprep.subr.mxu0 0.0
        %3630 = vmatpush1.msra.mxu0 0.0
        %3631 = vmatprep.subr.mxu0 0.0
        %3632 = vmatpush1.msra.mxu0 0.0
        %3633 = vmatprep.subr.mxu0 0.0
        %3634 = vmatpush1.msra.mxu0 0.0
        %3635 = vmatprep.subr.mxu0 0.0
        %3636 = vmatpush1.msra.mxu0 0.0
        %3637 = vmatprep.mubr.f32.mxu0 0.0
        %3638 = vmatmul.mubr.f32.gmra.mrb[0].mxu0 %v3526
        %v3639 = vpop.f32.mrb[0].mxu0
        %v3640 = vadd.f32 0.0, %v3639
        %v3641 = vpop.f32.mrb[0].mxu0
        %3642 = vmatprep.mubr.f32.mxu0 0.0
        %3643 = vmatmul.mubr.f32.gmra.mrb[0].mxu0 %v3529
        %v3644 = vpop.f32.mrb[0].mxu0
        %v3645 = vadd.f32 0.0, %v3644
        %v3646 = vpop.f32.mrb[0].mxu0
        %3647 = vmatprep.mubr.f32.mxu0 0.0
        %3648 = vmatmul.mubr.f32.gmra.mrb[0].mxu0 %v3532
        %v3649 = vpop.f32.mrb[0].mxu0
        %v3650 = vadd.f32 0.0, %v3649
        %v3651 = vpop.f32.mrb[0].mxu0
        %3652 = vmatprep.mubr.f32.mxu0 0.0
        %3653 = vmatmul.mubr.f32.gmra.mrb[0].mxu0 %v3535
        %v3654 = vpop.f32.mrb[0].mxu0
        %v3655 = vadd.f32 0.0, %v3654
        %v3656 = vpop.f32.mrb[0].mxu0
        %3657 = vmatprep.mubr.f32.mxu0 0.0
        %3658 = vmatmul.mubr.f32.gmra.mrb[0].mxu0 %v3538
        %v3659 = vpop.f32.mrb[0].mxu0
        %v3660 = vadd.f32 0.0, %v3659
        %v3661 = vpop.f32.mrb[0].mxu0
        %3662 = vmatprep.mubr.f32.mxu0 0.0
        %3663 = vmatmul.mubr.f32.gmra.mrb[0].mxu0 %v3541
        %v3664 = vpop.f32.mrb[0].mxu0
        %v3665 = vadd.f32 0.0, %v3664
        %v3666 = vpop.f32.mrb[0].mxu0
        %3667 = vmatprep.mubr.f32.mxu0 0.0
        %3668 = vmatmul.mubr.f32.gmra.mrb[0].mxu0 %v3544
        %v3669 = vpop.f32.mrb[0].mxu0
        %v3670 = vadd.f32 0.0, %v3669
        %v3671 = vpop.f32.mrb[0].mxu0
        %3672 = vmatprep.mubr.f32.mxu0 0.0
        %3673 = vmatmul.mubr.f32.gmra.mrb[0].mxu0 %v3547
        %v3674 = vpop.f32.mrb[0].mxu0
        %v3675 = vadd.f32 0.0, %v3674
        %v3676 = vpop.f32.mrb[0].mxu0
        %3677 = vmatprep.mubr.f32.mxu0 0.0
        %3678 = vmatmul.mubr.f32.gmra.mrb[0].mxu0 %v3550
        %v3679 = vpop.f32.mrb[0].mxu0
        %v3680 = vadd.f32 0.0, %v3679
        %v3681 = vpop.f32.mrb[0].mxu0
        %3682 = vmatprep.mubr.f32.mxu0 0.0
        %3683 = vmatmul.mubr.f32.gmra.mrb[0].mxu0 %v3553
        %v3684 = vpop.f32.mrb[0].mxu0
        %v3685 = vadd.f32 0.0, %v3684
        %v3686 = vpop.f32.mrb[0].mxu0
        %3687 = vmatprep.mubr.f32.mxu0 0.0
        %3688 = vmatmul.mubr.f32.gmra.mrb[0].mxu0 %v3556
        %v3689 = vpop.f32.mrb[0].mxu0
        %v3690 = vadd.f32 0.0, %v3689
        %v3691 = vpop.f32.mrb[0].mxu0
        %3692 = vmatprep.mubr.f32.mxu0 0.0
        %3693 = vmatmul.mubr.f32.gmra.mrb[0].mxu0 %v3559
        %v3694 = vpop.f32.mrb[0].mxu0
        %v3695 = vadd.f32 0.0, %v3694
        %v3696 = vpop.f32.mrb[0].mxu0
        %3697 = vmatprep.mubr.f32.mxu0 0.0
        %3698 = vmatmul.mubr.f32.gmra.mrb[0].mxu0 %v3562
        %v3699 = vpop.f32.mrb[0].mxu0
        %v3700 = vadd.f32 0.0, %v3699
        %v3701 = vpop.f32.mrb[0].mxu0
        %3702 = vmatprep.mubr.f32.mxu0 0.0
        %3703 = vmatmul.mubr.f32.gmra.mrb[0].mxu0 %v3565
        %v3704 = vpop.f32.mrb[0].mxu0
        %v3705 = vadd.f32 0.0, %v3704
        %v3706 = vpop.f32.mrb[0].mxu0
        %3707 = vmatprep.mubr.f32.mxu0 0.0
        %3708 = vmatmul.mubr.f32.gmra.mrb[0].mxu0 %v3568
        %v3709 = vpop.f32.mrb[0].mxu0
        %v3710 = vadd.f32 0.0, %v3709
        %v3711 = vpop.f32.mrb[0].mxu0
        %3712 = vmatprep.mubr.f32.mxu0 0.0
        %3713 = vmatmul.mubr.f32.gmra.mrb[0].mxu0 %v3571
        %v3714 = vpop.f32.mrb[0].mxu0
        %v3715 = vadd.f32 0.0, %v3714
        %v3716 = vpop.f32.mrb[0].mxu0
        %3717 = vdwg.mxu0
        %v3718 = vadd.f32 %v3182, %v3640
        %v3719 = vadd.f32 %v3183, %v3645
        %v3720 = vadd.f32 %v3184, %v3650
        %v3721 = vadd.f32 %v3185, %v3655
        %v3722 = vadd.f32 %v3186, %v3660
        %v3723 = vadd.f32 %v3187, %v3665
        %v3724 = vadd.f32 %v3188, %v3670
        %v3725 = vadd.f32 %v3189, %v3675
        %v3726 = vadd.f32 %v3190, %v3680
        %v3727 = vadd.f32 %v3191, %v3685
        %v3728 = vadd.f32 %v3192, %v3690
        %v3729 = vadd.f32 %v3193, %v3695
        %v3730 = vadd.f32 %v3194, %v3700
        %v3731 = vadd.f32 %v3195, %v3705
        %v3732 = vadd.f32 %v3196, %v3710
        %v3733 = vadd.f32 %v3197, %v3715
        %s3734 = scalar_lea.vmem %s446, 176
        %v3735 = vld [vmem:[%s3734] sm:$0xff]
        %v3736 = vld [vmem:[%s3734 + $0x8] sm:$0xff]
        %3737 = vrot.lane.b32.xlu0 %v3506, 112
        %v3738 = vpop.permute.xlu0 %3737
        %3739 = vrot.lane.b32.xlu0 %v3507, 112
        %v3740 = vpop.permute.xlu0 %3739
        %3741 = vrot.lane.b32.xlu0 %v3508, 112
        %v3742 = vpop.permute.xlu0 %3741
        %3743 = vrot.lane.b32.xlu0 %v3509, 112
        %v3744 = vpop.permute.xlu0 %3743
        %3745 = vrot.lane.b32.xlu0 %v3510, 112
        %v3746 = vpop.permute.xlu0 %3745
        %3747 = vrot.lane.b32.xlu0 %v3511, 112
        %v3748 = vpop.permute.xlu0 %3747
        %3749 = vrot.lane.b32.xlu0 %v3512, 112
        %v3750 = vpop.permute.xlu0 %3749
        %3751 = vrot.lane.b32.xlu0 %v3513, 112
        %v3752 = vpop.permute.xlu0 %3751
        %3753 = vrot.lane.b32.xlu0 %v3514, 112
        %v3754 = vpop.permute.xlu0 %3753
        %3755 = vrot.lane.b32.xlu0 %v3515, 112
        %v3756 = vpop.permute.xlu0 %3755
        %3757 = vrot.lane.b32.xlu0 %v3516, 112
        %v3758 = vpop.permute.xlu0 %3757
        %3759 = vrot.lane.b32.xlu0 %v3517, 112
        %v3760 = vpop.permute.xlu0 %3759
        %3761 = vrot.lane.b32.xlu0 %v3518, 112
        %v3762 = vpop.permute.xlu0 %3761
        %3763 = vrot.lane.b32.xlu0 %v3519, 112
        %v3764 = vpop.permute.xlu0 %3763
        %3765 = vrot.lane.b32.xlu0 %v3520, 112
        %v3766 = vpop.permute.xlu0 %3765
        %3767 = vrot.lane.b32.xlu0 %v3521, 112
        %v3768 = vpop.permute.xlu0 %3767
        %v3769 = vsel %vm536, %v3738, 0
        %v3771 = vsel %vm536, %v3740, 0
        %v3773 = vsel %vm536, %v3742, 0
        %v3775 = vsel %vm536, %v3744, 0
        %v3777 = vsel %vm536, %v3746, 0
        %v3779 = vsel %vm536, %v3748, 0
        %v3781 = vsel %vm536, %v3750, 0
        %v3783 = vsel %vm536, %v3752, 0
        %v3785 = vsel %vm536, %v3754, 0
        %v3787 = vsel %vm536, %v3756, 0
        %v3789 = vsel %vm536, %v3758, 0
        %v3791 = vsel %vm536, %v3760, 0
        %v3793 = vsel %vm536, %v3762, 0
        %v3795 = vsel %vm536, %v3764, 0
        %v3797 = vsel %vm536, %v3766, 0
        %v3799 = vsel %vm536, %v3768, 0
        %3801 = vmatprep.subr.mxu0 0.0
        %3802 = vmatpush1.msra.mxu0 %v3735
        %3803 = vmatprep.subr.mxu0 0.0
        %3804 = vmatpush1.msra.mxu0 %v3736
        %3805 = vmatprep.subr.mxu0 0.0
        %3806 = vmatpush1.msra.mxu0 0.0
        %3807 = vmatprep.subr.mxu0 0.0
        %3808 = vmatpush1.msra.mxu0 0.0
        %3809 = vmatprep.subr.mxu0 0.0
        %3810 = vmatpush1.msra.mxu0 0.0
        %3811 = vmatprep.subr.mxu0 0.0
        %3812 = vmatpush1.msra.mxu0 0.0
        %3813 = vmatprep.subr.mxu0 0.0
        %3814 = vmatpush1.msra.mxu0 0.0
        %3815 = vmatprep.subr.mxu0 0.0
        %3816 = vmatpush1.msra.mxu0 0.0
        %3817 = vmatprep.subr.mxu0 0.0
        %3818 = vmatpush1.msra.mxu0 0.0
        %3819 = vmatprep.subr.mxu0 0.0
        %3820 = vmatpush1.msra.mxu0 0.0
        %3821 = vmatprep.subr.mxu0 0.0
        %3822 = vmatpush1.msra.mxu0 0.0
        %3823 = vmatprep.subr.mxu0 0.0
        %3824 = vmatpush1.msra.mxu0 0.0
        %3825 = vmatprep.subr.mxu0 0.0
        %3826 = vmatpush1.msra.mxu0 0.0
        %3827 = vmatprep.subr.mxu0 0.0
        %3828 = vmatpush1.msra.mxu0 0.0
        %3829 = vmatprep.subr.mxu0 0.0
        %3830 = vmatpush1.msra.mxu0 0.0
        %3831 = vmatprep.subr.mxu0 0.0
        %3832 = vmatpush1.msra.mxu0 0.0
        %3833 = vmatprep.subr.mxu0 0.0
        %3834 = vmatpush1.msra.mxu0 0.0
        %3835 = vmatprep.subr.mxu0 0.0
        %3836 = vmatpush1.msra.mxu0 0.0
        %3837 = vmatprep.subr.mxu0 0.0
        %3838 = vmatpush1.msra.mxu0 0.0
        %3839 = vmatprep.subr.mxu0 0.0
        %3840 = vmatpush1.msra.mxu0 0.0
        %3841 = vmatprep.subr.mxu0 0.0
        %3842 = vmatpush1.msra.mxu0 0.0
        %3843 = vmatprep.subr.mxu0 0.0
        %3844 = vmatpush1.msra.mxu0 0.0
        %3845 = vmatprep.subr.mxu0 0.0
        %3846 = vmatpush1.msra.mxu0 0.0
        %3847 = vmatprep.subr.mxu0 0.0
        %3848 = vmatpush1.msra.mxu0 0.0
        %3849 = vmatprep.subr.mxu0 0.0
        %3850 = vmatpush1.msra.mxu0 0.0
        %3851 = vmatprep.subr.mxu0 0.0
        %3852 = vmatpush1.msra.mxu0 0.0
        %3853 = vmatprep.subr.mxu0 0.0
        %3854 = vmatpush1.msra.mxu0 0.0
        %3855 = vmatprep.subr.mxu0 0.0
        %3856 = vmatpush1.msra.mxu0 0.0
        %3857 = vmatprep.subr.mxu0 0.0
        %3858 = vmatpush1.msra.mxu0 0.0
        %3859 = vmatprep.subr.mxu0 0.0
        %3860 = vmatpush1.msra.mxu0 0.0
        %3861 = vmatprep.subr.mxu0 0.0
        %3862 = vmatpush1.msra.mxu0 0.0
        %3863 = vmatprep.subr.mxu0 0.0
        %3864 = vmatpush1.msra.mxu0 0.0
        %3865 = vmatprep.mubr.f32.mxu0 0.0
        %3866 = vmatmul.mubr.f32.gmra.mrb[0].mxu0 %v3769
        %v3867 = vpop.f32.mrb[0].mxu0
        %v3868 = vadd.f32 0.0, %v3867
        %v3869 = vpop.f32.mrb[0].mxu0
        %3870 = vmatprep.mubr.f32.mxu0 0.0
        %3871 = vmatmul.mubr.f32.gmra.mrb[0].mxu0 %v3771
        %v3872 = vpop.f32.mrb[0].mxu0
        %v3873 = vadd.f32 0.0, %v3872
        %v3874 = vpop.f32.mrb[0].mxu0
        %3875 = vmatprep.mubr.f32.mxu0 0.0
        %3876 = vmatmul.mubr.f32.gmra.mrb[0].mxu0 %v3773
        %v3877 = vpop.f32.mrb[0].mxu0
        %v3878 = vadd.f32 0.0, %v3877
        %v3879 = vpop.f32.mrb[0].mxu0
        %3880 = vmatprep.mubr.f32.mxu0 0.0
        %3881 = vmatmul.mubr.f32.gmra.mrb[0].mxu0 %v3775
        %v3882 = vpop.f32.mrb[0].mxu0
        %v3883 = vadd.f32 0.0, %v3882
        %v3884 = vpop.f32.mrb[0].mxu0
        %3885 = vmatprep.mubr.f32.mxu0 0.0
        %3886 = vmatmul.mubr.f32.gmra.mrb[0].mxu0 %v3777
        %v3887 = vpop.f32.mrb[0].mxu0
        %v3888 = vadd.f32 0.0, %v3887
        %v3889 = vpop.f32.mrb[0].mxu0
        %3890 = vmatprep.mubr.f32.mxu0 0.0
        %3891 = vmatmul.mubr.f32.gmra.mrb[0].mxu0 %v3779
        %v3892 = vpop.f32.mrb[0].mxu0
        %v3893 = vadd.f32 0.0, %v3892
        %v3894 = vpop.f32.mrb[0].mxu0
        %3895 = vmatprep.mubr.f32.mxu0 0.0
        %3896 = vmatmul.mubr.f32.gmra.mrb[0].mxu0 %v3781
        %v3897 = vpop.f32.mrb[0].mxu0
        %v3898 = vadd.f32 0.0, %v3897
        %v3899 = vpop.f32.mrb[0].mxu0
        %3900 = vmatprep.mubr.f32.mxu0 0.0
        %3901 = vmatmul.mubr.f32.gmra.mrb[0].mxu0 %v3783
        %v3902 = vpop.f32.mrb[0].mxu0
        %v3903 = vadd.f32 0.0, %v3902
        %v3904 = vpop.f32.mrb[0].mxu0
        %3905 = vmatprep.mubr.f32.mxu0 0.0
        %3906 = vmatmul.mubr.f32.gmra.mrb[0].mxu0 %v3785
        %v3907 = vpop.f32.mrb[0].mxu0
        %v3908 = vadd.f32 0.0, %v3907
        %v3909 = vpop.f32.mrb[0].mxu0
        %3910 = vmatprep.mubr.f32.mxu0 0.0
        %3911 = vmatmul.mubr.f32.gmra.mrb[0].mxu0 %v3787
        %v3912 = vpop.f32.mrb[0].mxu0
        %v3913 = vadd.f32 0.0, %v3912
        %v3914 = vpop.f32.mrb[0].mxu0
        %3915 = vmatprep.mubr.f32.mxu0 0.0
        %3916 = vmatmul.mubr.f32.gmra.mrb[0].mxu0 %v3789
        %v3917 = vpop.f32.mrb[0].mxu0
        %v3918 = vadd.f32 0.0, %v3917
        %v3919 = vpop.f32.mrb[0].mxu0
        %3920 = vmatprep.mubr.f32.mxu0 0.0
        %3921 = vmatmul.mubr.f32.gmra.mrb[0].mxu0 %v3791
        %v3922 = vpop.f32.mrb[0].mxu0
        %v3923 = vadd.f32 0.0, %v3922
        %v3924 = vpop.f32.mrb[0].mxu0
        %3925 = vmatprep.mubr.f32.mxu0 0.0
        %3926 = vmatmul.mubr.f32.gmra.mrb[0].mxu0 %v3793
        %v3927 = vpop.f32.mrb[0].mxu0
        %v3928 = vadd.f32 0.0, %v3927
        %v3929 = vpop.f32.mrb[0].mxu0
        %3930 = vmatprep.mubr.f32.mxu0 0.0
        %3931 = vmatmul.mubr.f32.gmra.mrb[0].mxu0 %v3795
        %v3932 = vpop.f32.mrb[0].mxu0
        %v3933 = vadd.f32 0.0, %v3932
        %v3934 = vpop.f32.mrb[0].mxu0
        %3935 = vmatprep.mubr.f32.mxu0 0.0
        %3936 = vmatmul.mubr.f32.gmra.mrb[0].mxu0 %v3797
        %v3937 = vpop.f32.mrb[0].mxu0
        %v3938 = vadd.f32 0.0, %v3937
        %v3939 = vpop.f32.mrb[0].mxu0
        %3940 = vmatprep.mubr.f32.mxu0 0.0
        %3941 = vmatmul.mubr.f32.gmra.mrb[0].mxu0 %v3799
        %v3942 = vpop.f32.mrb[0].mxu0
        %v3943 = vadd.f32 0.0, %v3942
        %v3944 = vpop.f32.mrb[0].mxu0
        %3945 = vdwg.mxu0
        %v3946 = vadd.f32 %v3410, %v3868
        %v3947 = vadd.f32 %v3411, %v3873
        %v3948 = vadd.f32 %v3412, %v3878
        %v3949 = vadd.f32 %v3413, %v3883
        %v3950 = vadd.f32 %v3414, %v3888
        %v3951 = vadd.f32 %v3415, %v3893
        %v3952 = vadd.f32 %v3416, %v3898
        %v3953 = vadd.f32 %v3417, %v3903
        %v3954 = vadd.f32 %v3418, %v3908
        %v3955 = vadd.f32 %v3419, %v3913
        %v3956 = vadd.f32 %v3420, %v3918
        %v3957 = vadd.f32 %v3421, %v3923
        %v3958 = vadd.f32 %v3422, %v3928
        %v3959 = vadd.f32 %v3423, %v3933
        %v3960 = vadd.f32 %v3424, %v3938
        %v3961 = vadd.f32 %v3425, %v3943
        %v3962 = vld [vmem:[#allocation3 + $0x8] sm:$0xff]
        %v3963 = vld [vmem:[#allocation3 + $0x10] sm:$0xff]
        %v3964 = vld [vmem:[#allocation3 + $0x18] sm:$0xff]
        %v3965 = vld [vmem:[#allocation3 + $0x20] sm:$0xff]
        %v3966 = vld [vmem:[#allocation3 + $0x28] sm:$0xff]
        %v3967 = vld [vmem:[#allocation3 + $0x30] sm:$0xff]
        %v3968 = vld [vmem:[#allocation3 + $0x38] sm:$0xff]
        %v3969 = vld [vmem:[#allocation3 + $0x40] sm:$0xff]
        %v3970 = vld [vmem:[#allocation3 + $0x48] sm:$0xff]
        %v3971 = vld [vmem:[#allocation3 + $0x50] sm:$0xff]
        %v3972 = vld [vmem:[#allocation3 + $0x58] sm:$0xff]
        %v3973 = vld [vmem:[#allocation3 + $0x60] sm:$0xff]
        %v3974 = vld [vmem:[#allocation3 + $0x68] sm:$0xff]
        %v3975 = vld [vmem:[#allocation3 + $0x70] sm:$0xff]
        %v3976 = vld [vmem:[#allocation3 + $0x78] sm:$0xff]
        %v3977 = vld [vmem:[#allocation3 + $0x80] sm:$0xff]
        %3978 = vset.pattern.permute.xlu0 6
        %3979 = vperm.xlu0 %3978, %v511
        %v3980 = vpop.permute.xlu0 %3979
        %3982 = vset.pattern.permute.xlu0 6
        %3983 = vperm.xlu0 %3982, %v512
        %v3984 = vpop.permute.xlu0 %3983
        %3986 = vset.pattern.permute.xlu0 6
        %3987 = vperm.xlu0 %3986, %v513
        %v3988 = vpop.permute.xlu0 %3987
        %3990 = vset.pattern.permute.xlu0 6
        %3991 = vperm.xlu0 %3990, %v514
        %v3992 = vpop.permute.xlu0 %3991
        %3994 = vset.pattern.permute.xlu0 6
        %3995 = vperm.xlu0 %3994, %v515
        %v3996 = vpop.permute.xlu0 %3995
        %3998 = vset.pattern.permute.xlu0 6
        %3999 = vperm.xlu0 %3998, %v516
        %v4000 = vpop.permute.xlu0 %3999
        %4002 = vset.pattern.permute.xlu0 6
        %4003 = vperm.xlu0 %4002, %v517
        %v4004 = vpop.permute.xlu0 %4003
        %4006 = vset.pattern.permute.xlu0 6
        %4007 = vperm.xlu0 %4006, %v518
        %v4008 = vpop.permute.xlu0 %4007
        %4010 = vset.pattern.permute.xlu0 6
        %4011 = vperm.xlu0 %4010, %v519
        %v4012 = vpop.permute.xlu0 %4011
        %4014 = vset.pattern.permute.xlu0 6
        %4015 = vperm.xlu0 %4014, %v520
        %v4016 = vpop.permute.xlu0 %4015
        %4018 = vset.pattern.permute.xlu0 6
        %4019 = vperm.xlu0 %4018, %v521
        %v4020 = vpop.permute.xlu0 %4019
        %4022 = vset.pattern.permute.xlu0 6
        %4023 = vperm.xlu0 %4022, %v522
        %v4024 = vpop.permute.xlu0 %4023
        %4026 = vset.pattern.permute.xlu0 6
        %4027 = vperm.xlu0 %4026, %v523
        %v4028 = vpop.permute.xlu0 %4027
        %4030 = vset.pattern.permute.xlu0 6
        %4031 = vperm.xlu0 %4030, %v524
        %v4032 = vpop.permute.xlu0 %4031
        %4034 = vset.pattern.permute.xlu0 6
        %4035 = vperm.xlu0 %4034, %v525
        %v4036 = vpop.permute.xlu0 %4035
        %4038 = vset.pattern.permute.xlu0 6
        %4039 = vperm.xlu0 %4038, %v526
        %v4040 = vpop.permute.xlu0 %4039
        %v4042 = vmul.f32 %v3962, %v3980
        %v4043 = vmul.f32 %v3963, %v3984
        %v4044 = vmul.f32 %v3964, %v3988
        %v4045 = vmul.f32 %v3965, %v3992
        %v4046 = vmul.f32 %v3966, %v3996
        %v4047 = vmul.f32 %v3967, %v4000
        %v4048 = vmul.f32 %v3968, %v4004
        %v4049 = vmul.f32 %v3969, %v4008
        %v4050 = vmul.f32 %v3970, %v4012
        %v4051 = vmul.f32 %v3971, %v4016
        %v4052 = vmul.f32 %v3972, %v4020
        %v4053 = vmul.f32 %v3973, %v4024
        %v4054 = vmul.f32 %v3974, %v4028
        %v4055 = vmul.f32 %v3975, %v4032
        %v4056 = vmul.f32 %v3976, %v4036
        %v4057 = vmul.f32 %v3977, %v4040
        %s4058 = scalar_lea.vmem %s446, 192
        %v4059 = vld [vmem:[%s4058] sm:$0xff]
        %v4060 = vld [vmem:[%s4058 + $0x8] sm:$0xff]
        %v4062 = vsel %vm536, %v4042, 0
        %v4065 = vsel %vm536, %v4043, 0
        %v4068 = vsel %vm536, %v4044, 0
        %v4071 = vsel %vm536, %v4045, 0
        %v4074 = vsel %vm536, %v4046, 0
        %v4077 = vsel %vm536, %v4047, 0
        %v4080 = vsel %vm536, %v4048, 0
        %v4083 = vsel %vm536, %v4049, 0
        %v4086 = vsel %vm536, %v4050, 0
        %v4089 = vsel %vm536, %v4051, 0
        %v4092 = vsel %vm536, %v4052, 0
        %v4095 = vsel %vm536, %v4053, 0
        %v4098 = vsel %vm536, %v4054, 0
        %v4101 = vsel %vm536, %v4055, 0
        %v4104 = vsel %vm536, %v4056, 0
        %v4107 = vsel %vm536, %v4057, 0
        %4109 = vmatprep.subr.mxu0 0.0
        %4110 = vmatpush1.msra.mxu0 %v4059
        %4111 = vmatprep.subr.mxu0 0.0
        %4112 = vmatpush1.msra.mxu0 %v4060
        %4113 = vmatprep.subr.mxu0 0.0
        %4114 = vmatpush1.msra.mxu0 0.0
        %4115 = vmatprep.subr.mxu0 0.0
        %4116 = vmatpush1.msra.mxu0 0.0
        %4117 = vmatprep.subr.mxu0 0.0
        %4118 = vmatpush1.msra.mxu0 0.0
        %4119 = vmatprep.subr.mxu0 0.0
        %4120 = vmatpush1.msra.mxu0 0.0
        %4121 = vmatprep.subr.mxu0 0.0
        %4122 = vmatpush1.msra.mxu0 0.0
        %4123 = vmatprep.subr.mxu0 0.0
        %4124 = vmatpush1.msra.mxu0 0.0
        %4125 = vmatprep.subr.mxu0 0.0
        %4126 = vmatpush1.msra.mxu0 0.0
        %4127 = vmatprep.subr.mxu0 0.0
        %4128 = vmatpush1.msra.mxu0 0.0
        %4129 = vmatprep.subr.mxu0 0.0
        %4130 = vmatpush1.msra.mxu0 0.0
        %4131 = vmatprep.subr.mxu0 0.0
        %4132 = vmatpush1.msra.mxu0 0.0
        %4133 = vmatprep.subr.mxu0 0.0
        %4134 = vmatpush1.msra.mxu0 0.0
        %4135 = vmatprep.subr.mxu0 0.0
        %4136 = vmatpush1.msra.mxu0 0.0
        %4137 = vmatprep.subr.mxu0 0.0
        %4138 = vmatpush1.msra.mxu0 0.0
        %4139 = vmatprep.subr.mxu0 0.0
        %4140 = vmatpush1.msra.mxu0 0.0
        %4141 = vmatprep.subr.mxu0 0.0
        %4142 = vmatpush1.msra.mxu0 0.0
        %4143 = vmatprep.subr.mxu0 0.0
        %4144 = vmatpush1.msra.mxu0 0.0
        %4145 = vmatprep.subr.mxu0 0.0
        %4146 = vmatpush1.msra.mxu0 0.0
        %4147 = vmatprep.subr.mxu0 0.0
        %4148 = vmatpush1.msra.mxu0 0.0
        %4149 = vmatprep.subr.mxu0 0.0
        %4150 = vmatpush1.msra.mxu0 0.0
        %4151 = vmatprep.subr.mxu0 0.0
        %4152 = vmatpush1.msra.mxu0 0.0
        %4153 = vmatprep.subr.mxu0 0.0
        %4154 = vmatpush1.msra.mxu0 0.0
        %4155 = vmatprep.subr.mxu0 0.0
        %4156 = vmatpush1.msra.mxu0 0.0
        %4157 = vmatprep.subr.mxu0 0.0
        %4158 = vmatpush1.msra.mxu0 0.0
        %4159 = vmatprep.subr.mxu0 0.0
        %4160 = vmatpush1.msra.mxu0 0.0
        %4161 = vmatprep.subr.mxu0 0.0
        %4162 = vmatpush1.msra.mxu0 0.0
        %4163 = vmatprep.subr.mxu0 0.0
        %4164 = vmatpush1.msra.mxu0 0.0
        %4165 = vmatprep.subr.mxu0 0.0
        %4166 = vmatpush1.msra.mxu0 0.0
        %4167 = vmatprep.subr.mxu0 0.0
        %4168 = vmatpush1.msra.mxu0 0.0
        %4169 = vmatprep.subr.mxu0 0.0
        %4170 = vmatpush1.msra.mxu0 0.0
        %4171 = vmatprep.subr.mxu0 0.0
        %4172 = vmatpush1.msra.mxu0 0.0
        %4173 = vmatprep.mubr.f32.mxu0 0.0
        %4174 = vmatmul.mubr.f32.gmra.mrb[0].mxu0 %v4062
        %v4175 = vpop.f32.mrb[0].mxu0
        %v4176 = vadd.f32 0.0, %v4175
        %v4177 = vpop.f32.mrb[0].mxu0
        %4178 = vmatprep.mubr.f32.mxu0 0.0
        %4179 = vmatmul.mubr.f32.gmra.mrb[0].mxu0 %v4065
        %v4180 = vpop.f32.mrb[0].mxu0
        %v4181 = vadd.f32 0.0, %v4180
        %v4182 = vpop.f32.mrb[0].mxu0
        %4183 = vmatprep.mubr.f32.mxu0 0.0
        %4184 = vmatmul.mubr.f32.gmra.mrb[0].mxu0 %v4068
        %v4185 = vpop.f32.mrb[0].mxu0
        %v4186 = vadd.f32 0.0, %v4185
        %v4187 = vpop.f32.mrb[0].mxu0
        %4188 = vmatprep.mubr.f32.mxu0 0.0
        %4189 = vmatmul.mubr.f32.gmra.mrb[0].mxu0 %v4071
        %v4190 = vpop.f32.mrb[0].mxu0
        %v4191 = vadd.f32 0.0, %v4190
        %v4192 = vpop.f32.mrb[0].mxu0
        %4193 = vmatprep.mubr.f32.mxu0 0.0
        %4194 = vmatmul.mubr.f32.gmra.mrb[0].mxu0 %v4074
        %v4195 = vpop.f32.mrb[0].mxu0
        %v4196 = vadd.f32 0.0, %v4195
        %v4197 = vpop.f32.mrb[0].mxu0
        %4198 = vmatprep.mubr.f32.mxu0 0.0
        %4199 = vmatmul.mubr.f32.gmra.mrb[0].mxu0 %v4077
        %v4200 = vpop.f32.mrb[0].mxu0
        %v4201 = vadd.f32 0.0, %v4200
        %v4202 = vpop.f32.mrb[0].mxu0
        %4203 = vmatprep.mubr.f32.mxu0 0.0
        %4204 = vmatmul.mubr.f32.gmra.mrb[0].mxu0 %v4080
        %v4205 = vpop.f32.mrb[0].mxu0
        %v4206 = vadd.f32 0.0, %v4205
        %v4207 = vpop.f32.mrb[0].mxu0
        %4208 = vmatprep.mubr.f32.mxu0 0.0
        %4209 = vmatmul.mubr.f32.gmra.mrb[0].mxu0 %v4083
        %v4210 = vpop.f32.mrb[0].mxu0
        %v4211 = vadd.f32 0.0, %v4210
        %v4212 = vpop.f32.mrb[0].mxu0
        %4213 = vmatprep.mubr.f32.mxu0 0.0
        %4214 = vmatmul.mubr.f32.gmra.mrb[0].mxu0 %v4086
        %v4215 = vpop.f32.mrb[0].mxu0
        %v4216 = vadd.f32 0.0, %v4215
        %v4217 = vpop.f32.mrb[0].mxu0
        %4218 = vmatprep.mubr.f32.mxu0 0.0
        %4219 = vmatmul.mubr.f32.gmra.mrb[0].mxu0 %v4089
        %v4220 = vpop.f32.mrb[0].mxu0
        %v4221 = vadd.f32 0.0, %v4220
        %v4222 = vpop.f32.mrb[0].mxu0
        %4223 = vmatprep.mubr.f32.mxu0 0.0
        %4224 = vmatmul.mubr.f32.gmra.mrb[0].mxu0 %v4092
        %v4225 = vpop.f32.mrb[0].mxu0
        %v4226 = vadd.f32 0.0, %v4225
        %v4227 = vpop.f32.mrb[0].mxu0
        %4228 = vmatprep.mubr.f32.mxu0 0.0
        %4229 = vmatmul.mubr.f32.gmra.mrb[0].mxu0 %v4095
        %v4230 = vpop.f32.mrb[0].mxu0
        %v4231 = vadd.f32 0.0, %v4230
        %v4232 = vpop.f32.mrb[0].mxu0
        %4233 = vmatprep.mubr.f32.mxu0 0.0
        %4234 = vmatmul.mubr.f32.gmra.mrb[0].mxu0 %v4098
        %v4235 = vpop.f32.mrb[0].mxu0
        %v4236 = vadd.f32 0.0, %v4235
        %v4237 = vpop.f32.mrb[0].mxu0
        %4238 = vmatprep.mubr.f32.mxu0 0.0
        %4239 = vmatmul.mubr.f32.gmra.mrb[0].mxu0 %v4101
        %v4240 = vpop.f32.mrb[0].mxu0
        %v4241 = vadd.f32 0.0, %v4240
        %v4242 = vpop.f32.mrb[0].mxu0
        %4243 = vmatprep.mubr.f32.mxu0 0.0
        %4244 = vmatmul.mubr.f32.gmra.mrb[0].mxu0 %v4104
        %v4245 = vpop.f32.mrb[0].mxu0
        %v4246 = vadd.f32 0.0, %v4245
        %v4247 = vpop.f32.mrb[0].mxu0
        %4248 = vmatprep.mubr.f32.mxu0 0.0
        %4249 = vmatmul.mubr.f32.gmra.mrb[0].mxu0 %v4107
        %v4250 = vpop.f32.mrb[0].mxu0
        %v4251 = vadd.f32 0.0, %v4250
        %v4252 = vpop.f32.mrb[0].mxu0
        %4253 = vdwg.mxu0
        %v4254 = vadd.f32 %v3718, %v4176
        %v4255 = vadd.f32 %v3719, %v4181
        %v4256 = vadd.f32 %v3720, %v4186
        %v4257 = vadd.f32 %v3721, %v4191
        %v4258 = vadd.f32 %v3722, %v4196
        %v4259 = vadd.f32 %v3723, %v4201
        %v4260 = vadd.f32 %v3724, %v4206
        %v4261 = vadd.f32 %v3725, %v4211
        %v4262 = vadd.f32 %v3726, %v4216
        %v4263 = vadd.f32 %v3727, %v4221
        %v4264 = vadd.f32 %v3728, %v4226
        %v4265 = vadd.f32 %v3729, %v4231
        %v4266 = vadd.f32 %v3730, %v4236
        %v4267 = vadd.f32 %v3731, %v4241
        %v4268 = vadd.f32 %v3732, %v4246
        %v4269 = vadd.f32 %v3733, %v4251
        %s4270 = scalar_lea.vmem %s446, 208
        %v4271 = vld [vmem:[%s4270] sm:$0xff]
        %v4272 = vld [vmem:[%s4270 + $0x8] sm:$0xff]
        %4273 = vrot.lane.b32.xlu0 %v4042, 112
        %v4274 = vpop.permute.xlu0 %4273
        %4275 = vrot.lane.b32.xlu0 %v4043, 112
        %v4276 = vpop.permute.xlu0 %4275
        %4277 = vrot.lane.b32.xlu0 %v4044, 112
        %v4278 = vpop.permute.xlu0 %4277
        %4279 = vrot.lane.b32.xlu0 %v4045, 112
        %v4280 = vpop.permute.xlu0 %4279
        %4281 = vrot.lane.b32.xlu0 %v4046, 112
        %v4282 = vpop.permute.xlu0 %4281
        %4283 = vrot.lane.b32.xlu0 %v4047, 112
        %v4284 = vpop.permute.xlu0 %4283
        %4285 = vrot.lane.b32.xlu0 %v4048, 112
        %v4286 = vpop.permute.xlu0 %4285
        %4287 = vrot.lane.b32.xlu0 %v4049, 112
        %v4288 = vpop.permute.xlu0 %4287
        %4289 = vrot.lane.b32.xlu0 %v4050, 112
        %v4290 = vpop.permute.xlu0 %4289
        %4291 = vrot.lane.b32.xlu0 %v4051, 112
        %v4292 = vpop.permute.xlu0 %4291
        %4293 = vrot.lane.b32.xlu0 %v4052, 112
        %v4294 = vpop.permute.xlu0 %4293
        %4295 = vrot.lane.b32.xlu0 %v4053, 112
        %v4296 = vpop.permute.xlu0 %4295
        %4297 = vrot.lane.b32.xlu0 %v4054, 112
        %v4298 = vpop.permute.xlu0 %4297
        %4299 = vrot.lane.b32.xlu0 %v4055, 112
        %v4300 = vpop.permute.xlu0 %4299
        %4301 = vrot.lane.b32.xlu0 %v4056, 112
        %v4302 = vpop.permute.xlu0 %4301
        %4303 = vrot.lane.b32.xlu0 %v4057, 112
        %v4304 = vpop.permute.xlu0 %4303
        %v4305 = vsel %vm536, %v4274, 0
        %v4307 = vsel %vm536, %v4276, 0
        %v4309 = vsel %vm536, %v4278, 0
        %v4311 = vsel %vm536, %v4280, 0
        %v4313 = vsel %vm536, %v4282, 0
        %v4315 = vsel %vm536, %v4284, 0
        %v4317 = vsel %vm536, %v4286, 0
        %v4319 = vsel %vm536, %v4288, 0
        %v4321 = vsel %vm536, %v4290, 0
        %v4323 = vsel %vm536, %v4292, 0
        %v4325 = vsel %vm536, %v4294, 0
        %v4327 = vsel %vm536, %v4296, 0
        %v4329 = vsel %vm536, %v4298, 0
        %v4331 = vsel %vm536, %v4300, 0
        %v4333 = vsel %vm536, %v4302, 0
        %v4335 = vsel %vm536, %v4304, 0
        %4337 = vmatprep.subr.mxu0 0.0
        %4338 = vmatpush1.msra.mxu0 %v4271
        %4339 = vmatprep.subr.mxu0 0.0
        %4340 = vmatpush1.msra.mxu0 %v4272
        %4341 = vmatprep.subr.mxu0 0.0
        %4342 = vmatpush1.msra.mxu0 0.0
        %4343 = vmatprep.subr.mxu0 0.0
        %4344 = vmatpush1.msra.mxu0 0.0
        %4345 = vmatprep.subr.mxu0 0.0
        %4346 = vmatpush1.msra.mxu0 0.0
        %4347 = vmatprep.subr.mxu0 0.0
        %4348 = vmatpush1.msra.mxu0 0.0
        %4349 = vmatprep.subr.mxu0 0.0
        %4350 = vmatpush1.msra.mxu0 0.0
        %4351 = vmatprep.subr.mxu0 0.0
        %4352 = vmatpush1.msra.mxu0 0.0
        %4353 = vmatprep.subr.mxu0 0.0
        %4354 = vmatpush1.msra.mxu0 0.0
        %4355 = vmatprep.subr.mxu0 0.0
        %4356 = vmatpush1.msra.mxu0 0.0
        %4357 = vmatprep.subr.mxu0 0.0
        %4358 = vmatpush1.msra.mxu0 0.0
        %4359 = vmatprep.subr.mxu0 0.0
        %4360 = vmatpush1.msra.mxu0 0.0
        %4361 = vmatprep.subr.mxu0 0.0
        %4362 = vmatpush1.msra.mxu0 0.0
        %4363 = vmatprep.subr.mxu0 0.0
        %4364 = vmatpush1.msra.mxu0 0.0
        %4365 = vmatprep.subr.mxu0 0.0
        %4366 = vmatpush1.msra.mxu0 0.0
        %4367 = vmatprep.subr.mxu0 0.0
        %4368 = vmatpush1.msra.mxu0 0.0
        %4369 = vmatprep.subr.mxu0 0.0
        %4370 = vmatpush1.msra.mxu0 0.0
        %4371 = vmatprep.subr.mxu0 0.0
        %4372 = vmatpush1.msra.mxu0 0.0
        %4373 = vmatprep.subr.mxu0 0.0
        %4374 = vmatpush1.msra.mxu0 0.0
        %4375 = vmatprep.subr.mxu0 0.0
        %4376 = vmatpush1.msra.mxu0 0.0
        %4377 = vmatprep.subr.mxu0 0.0
        %4378 = vmatpush1.msra.mxu0 0.0
        %4379 = vmatprep.subr.mxu0 0.0
        %4380 = vmatpush1.msra.mxu0 0.0
        %4381 = vmatprep.subr.mxu0 0.0
        %4382 = vmatpush1.msra.mxu0 0.0
        %4383 = vmatprep.subr.mxu0 0.0
        %4384 = vmatpush1.msra.mxu0 0.0
        %4385 = vmatprep.subr.mxu0 0.0
        %4386 = vmatpush1.msra.mxu0 0.0
        %4387 = vmatprep.subr.mxu0 0.0
        %4388 = vmatpush1.msra.mxu0 0.0
        %4389 = vmatprep.subr.mxu0 0.0
        %4390 = vmatpush1.msra.mxu0 0.0
        %4391 = vmatprep.subr.mxu0 0.0
        %4392 = vmatpush1.msra.mxu0 0.0
        %4393 = vmatprep.subr.mxu0 0.0
        %4394 = vmatpush1.msra.mxu0 0.0
        %4395 = vmatprep.subr.mxu0 0.0
        %4396 = vmatpush1.msra.mxu0 0.0
        %4397 = vmatprep.subr.mxu0 0.0
        %4398 = vmatpush1.msra.mxu0 0.0
        %4399 = vmatprep.subr.mxu0 0.0
        %4400 = vmatpush1.msra.mxu0 0.0
        %4401 = vmatprep.mubr.f32.mxu0 0.0
        %4402 = vmatmul.mubr.f32.gmra.mrb[0].mxu0 %v4305
        %v4403 = vpop.f32.mrb[0].mxu0
        %v4404 = vadd.f32 0.0, %v4403
        %v4405 = vpop.f32.mrb[0].mxu0
        %4406 = vmatprep.mubr.f32.mxu0 0.0
        %4407 = vmatmul.mubr.f32.gmra.mrb[0].mxu0 %v4307
        %v4408 = vpop.f32.mrb[0].mxu0
        %v4409 = vadd.f32 0.0, %v4408
        %v4410 = vpop.f32.mrb[0].mxu0
        %4411 = vmatprep.mubr.f32.mxu0 0.0
        %4412 = vmatmul.mubr.f32.gmra.mrb[0].mxu0 %v4309
        %v4413 = vpop.f32.mrb[0].mxu0
        %v4414 = vadd.f32 0.0, %v4413
        %v4415 = vpop.f32.mrb[0].mxu0
        %4416 = vmatprep.mubr.f32.mxu0 0.0
        %4417 = vmatmul.mubr.f32.gmra.mrb[0].mxu0 %v4311
        %v4418 = vpop.f32.mrb[0].mxu0
        %v4419 = vadd.f32 0.0, %v4418
        %v4420 = vpop.f32.mrb[0].mxu0
        %4421 = vmatprep.mubr.f32.mxu0 0.0
        %4422 = vmatmul.mubr.f32.gmra.mrb[0].mxu0 %v4313
        %v4423 = vpop.f32.mrb[0].mxu0
        %v4424 = vadd.f32 0.0, %v4423
        %v4425 = vpop.f32.mrb[0].mxu0
        %4426 = vmatprep.mubr.f32.mxu0 0.0
        %4427 = vmatmul.mubr.f32.gmra.mrb[0].mxu0 %v4315
        %v4428 = vpop.f32.mrb[0].mxu0
        %v4429 = vadd.f32 0.0, %v4428
        %v4430 = vpop.f32.mrb[0].mxu0
        %4431 = vmatprep.mubr.f32.mxu0 0.0
        %4432 = vmatmul.mubr.f32.gmra.mrb[0].mxu0 %v4317
        %v4433 = vpop.f32.mrb[0].mxu0
        %v4434 = vadd.f32 0.0, %v4433
        %v4435 = vpop.f32.mrb[0].mxu0
        %4436 = vmatprep.mubr.f32.mxu0 0.0
        %4437 = vmatmul.mubr.f32.gmra.mrb[0].mxu0 %v4319
        %v4438 = vpop.f32.mrb[0].mxu0
        %v4439 = vadd.f32 0.0, %v4438
        %v4440 = vpop.f32.mrb[0].mxu0
        %4441 = vmatprep.mubr.f32.mxu0 0.0
        %4442 = vmatmul.mubr.f32.gmra.mrb[0].mxu0 %v4321
        %v4443 = vpop.f32.mrb[0].mxu0
        %v4444 = vadd.f32 0.0, %v4443
        %v4445 = vpop.f32.mrb[0].mxu0
        %4446 = vmatprep.mubr.f32.mxu0 0.0
        %4447 = vmatmul.mubr.f32.gmra.mrb[0].mxu0 %v4323
        %v4448 = vpop.f32.mrb[0].mxu0
        %v4449 = vadd.f32 0.0, %v4448
        %v4450 = vpop.f32.mrb[0].mxu0
        %4451 = vmatprep.mubr.f32.mxu0 0.0
        %4452 = vmatmul.mubr.f32.gmra.mrb[0].mxu0 %v4325
        %v4453 = vpop.f32.mrb[0].mxu0
        %v4454 = vadd.f32 0.0, %v4453
        %v4455 = vpop.f32.mrb[0].mxu0
        %4456 = vmatprep.mubr.f32.mxu0 0.0
        %4457 = vmatmul.mubr.f32.gmra.mrb[0].mxu0 %v4327
        %v4458 = vpop.f32.mrb[0].mxu0
        %v4459 = vadd.f32 0.0, %v4458
        %v4460 = vpop.f32.mrb[0].mxu0
        %4461 = vmatprep.mubr.f32.mxu0 0.0
        %4462 = vmatmul.mubr.f32.gmra.mrb[0].mxu0 %v4329
        %v4463 = vpop.f32.mrb[0].mxu0
        %v4464 = vadd.f32 0.0, %v4463
        %v4465 = vpop.f32.mrb[0].mxu0
        %4466 = vmatprep.mubr.f32.mxu0 0.0
        %4467 = vmatmul.mubr.f32.gmra.mrb[0].mxu0 %v4331
        %v4468 = vpop.f32.mrb[0].mxu0
        %v4469 = vadd.f32 0.0, %v4468
        %v4470 = vpop.f32.mrb[0].mxu0
        %4471 = vmatprep.mubr.f32.mxu0 0.0
        %4472 = vmatmul.mubr.f32.gmra.mrb[0].mxu0 %v4333
        %v4473 = vpop.f32.mrb[0].mxu0
        %v4474 = vadd.f32 0.0, %v4473
        %v4475 = vpop.f32.mrb[0].mxu0
        %4476 = vmatprep.mubr.f32.mxu0 0.0
        %4477 = vmatmul.mubr.f32.gmra.mrb[0].mxu0 %v4335
        %v4478 = vpop.f32.mrb[0].mxu0
        %v4479 = vadd.f32 0.0, %v4478
        %v4480 = vpop.f32.mrb[0].mxu0
        %4481 = vdwg.mxu0
        %v4482 = vadd.f32 %v3946, %v4404
        %v4483 = vadd.f32 %v3947, %v4409
        %v4484 = vadd.f32 %v3948, %v4414
        %v4485 = vadd.f32 %v3949, %v4419
        %v4486 = vadd.f32 %v3950, %v4424
        %v4487 = vadd.f32 %v3951, %v4429
        %v4488 = vadd.f32 %v3952, %v4434
        %v4489 = vadd.f32 %v3953, %v4439
        %v4490 = vadd.f32 %v3954, %v4444
        %v4491 = vadd.f32 %v3955, %v4449
        %v4492 = vadd.f32 %v3956, %v4454
        %v4493 = vadd.f32 %v3957, %v4459
        %v4494 = vadd.f32 %v3958, %v4464
        %v4495 = vadd.f32 %v3959, %v4469
        %v4496 = vadd.f32 %v3960, %v4474
        %v4497 = vadd.f32 %v3961, %v4479
        %v4498 = vld [vmem:[#allocation3 + $0x9] sm:$0xff]
        %v4499 = vld [vmem:[#allocation3 + $0x11] sm:$0xff]
        %v4500 = vld [vmem:[#allocation3 + $0x19] sm:$0xff]
        %v4501 = vld [vmem:[#allocation3 + $0x21] sm:$0xff]
        %v4502 = vld [vmem:[#allocation3 + $0x29] sm:$0xff]
        %v4503 = vld [vmem:[#allocation3 + $0x31] sm:$0xff]
        %v4504 = vld [vmem:[#allocation3 + $0x39] sm:$0xff]
        %v4505 = vld [vmem:[#allocation3 + $0x41] sm:$0xff]
        %v4506 = vld [vmem:[#allocation3 + $0x49] sm:$0xff]
        %v4507 = vld [vmem:[#allocation3 + $0x51] sm:$0xff]
        %v4508 = vld [vmem:[#allocation3 + $0x59] sm:$0xff]
        %v4509 = vld [vmem:[#allocation3 + $0x61] sm:$0xff]
        %v4510 = vld [vmem:[#allocation3 + $0x69] sm:$0xff]
        %v4511 = vld [vmem:[#allocation3 + $0x71] sm:$0xff]
        %v4512 = vld [vmem:[#allocation3 + $0x79] sm:$0xff]
        %v4513 = vld [vmem:[#allocation3 + $0x81] sm:$0xff]
        %4514 = vset.pattern.permute.xlu0 7
        %4515 = vperm.xlu0 %4514, %v511
        %v4516 = vpop.permute.xlu0 %4515
        %4518 = vset.pattern.permute.xlu0 7
        %4519 = vperm.xlu0 %4518, %v512
        %v4520 = vpop.permute.xlu0 %4519
        %4522 = vset.pattern.permute.xlu0 7
        %4523 = vperm.xlu0 %4522, %v513
        %v4524 = vpop.permute.xlu0 %4523
        %4526 = vset.pattern.permute.xlu0 7
        %4527 = vperm.xlu0 %4526, %v514
        %v4528 = vpop.permute.xlu0 %4527
        %4530 = vset.pattern.permute.xlu0 7
        %4531 = vperm.xlu0 %4530, %v515
        %v4532 = vpop.permute.xlu0 %4531
        %4534 = vset.pattern.permute.xlu0 7
        %4535 = vperm.xlu0 %4534, %v516
        %v4536 = vpop.permute.xlu0 %4535
        %4538 = vset.pattern.permute.xlu0 7
        %4539 = vperm.xlu0 %4538, %v517
        %v4540 = vpop.permute.xlu0 %4539
        %4542 = vset.pattern.permute.xlu0 7
        %4543 = vperm.xlu0 %4542, %v518
        %v4544 = vpop.permute.xlu0 %4543
        %4546 = vset.pattern.permute.xlu0 7
        %4547 = vperm.xlu0 %4546, %v519
        %v4548 = vpop.permute.xlu0 %4547
        %4550 = vset.pattern.permute.xlu0 7
        %4551 = vperm.xlu0 %4550, %v520
        %v4552 = vpop.permute.xlu0 %4551
        %4554 = vset.pattern.permute.xlu0 7
        %4555 = vperm.xlu0 %4554, %v521
        %v4556 = vpop.permute.xlu0 %4555
        %4558 = vset.pattern.permute.xlu0 7
        %4559 = vperm.xlu0 %4558, %v522
        %v4560 = vpop.permute.xlu0 %4559
        %4562 = vset.pattern.permute.xlu0 7
        %4563 = vperm.xlu0 %4562, %v523
        %v4564 = vpop.permute.xlu0 %4563
        %4566 = vset.pattern.permute.xlu0 7
        %4567 = vperm.xlu0 %4566, %v524
        %v4568 = vpop.permute.xlu0 %4567
        %4570 = vset.pattern.permute.xlu0 7
        %4571 = vperm.xlu0 %4570, %v525
        %v4572 = vpop.permute.xlu0 %4571
        %4574 = vset.pattern.permute.xlu0 7
        %4575 = vperm.xlu0 %4574, %v526
        %v4576 = vpop.permute.xlu0 %4575
        %v4578 = vmul.f32 %v4498, %v4516
        %v4579 = vmul.f32 %v4499, %v4520
        %v4580 = vmul.f32 %v4500, %v4524
        %v4581 = vmul.f32 %v4501, %v4528
        %v4582 = vmul.f32 %v4502, %v4532
        %v4583 = vmul.f32 %v4503, %v4536
        %v4584 = vmul.f32 %v4504, %v4540
        %v4585 = vmul.f32 %v4505, %v4544
        %v4586 = vmul.f32 %v4506, %v4548
        %v4587 = vmul.f32 %v4507, %v4552
        %v4588 = vmul.f32 %v4508, %v4556
        %v4589 = vmul.f32 %v4509, %v4560
        %v4590 = vmul.f32 %v4510, %v4564
        %v4591 = vmul.f32 %v4511, %v4568
        %v4592 = vmul.f32 %v4512, %v4572
        %v4593 = vmul.f32 %v4513, %v4576
        %s4594 = scalar_lea.vmem %s446, 224
        %v4595 = vld [vmem:[%s4594] sm:$0xff]
        %v4596 = vld [vmem:[%s4594 + $0x8] sm:$0xff]
        %v4598 = vsel %vm536, %v4578, 0
        %v4601 = vsel %vm536, %v4579, 0
        %v4604 = vsel %vm536, %v4580, 0
        %v4607 = vsel %vm536, %v4581, 0
        %v4610 = vsel %vm536, %v4582, 0
        %v4613 = vsel %vm536, %v4583, 0
        %v4616 = vsel %vm536, %v4584, 0
        %v4619 = vsel %vm536, %v4585, 0
        %v4622 = vsel %vm536, %v4586, 0
        %v4625 = vsel %vm536, %v4587, 0
        %v4628 = vsel %vm536, %v4588, 0
        %v4631 = vsel %vm536, %v4589, 0
        %v4634 = vsel %vm536, %v4590, 0
        %v4637 = vsel %vm536, %v4591, 0
        %v4640 = vsel %vm536, %v4592, 0
        %v4643 = vsel %vm536, %v4593, 0
        %4645 = vmatprep.subr.mxu0 0.0
        %4646 = vmatpush1.msra.mxu0 %v4595
        %4647 = vmatprep.subr.mxu0 0.0
        %4648 = vmatpush1.msra.mxu0 %v4596
        %4649 = vmatprep.subr.mxu0 0.0
        %4650 = vmatpush1.msra.mxu0 0.0
        %4651 = vmatprep.subr.mxu0 0.0
        %4652 = vmatpush1.msra.mxu0 0.0
        %4653 = vmatprep.subr.mxu0 0.0
        %4654 = vmatpush1.msra.mxu0 0.0
        %4655 = vmatprep.subr.mxu0 0.0
        %4656 = vmatpush1.msra.mxu0 0.0
        %4657 = vmatprep.subr.mxu0 0.0
        %4658 = vmatpush1.msra.mxu0 0.0
        %4659 = vmatprep.subr.mxu0 0.0
        %4660 = vmatpush1.msra.mxu0 0.0
        %4661 = vmatprep.subr.mxu0 0.0
        %4662 = vmatpush1.msra.mxu0 0.0
        %4663 = vmatprep.subr.mxu0 0.0
        %4664 = vmatpush1.msra.mxu0 0.0
        %4665 = vmatprep.subr.mxu0 0.0
        %4666 = vmatpush1.msra.mxu0 0.0
        %4667 = vmatprep.subr.mxu0 0.0
        %4668 = vmatpush1.msra.mxu0 0.0
        %4669 = vmatprep.subr.mxu0 0.0
        %4670 = vmatpush1.msra.mxu0 0.0
        %4671 = vmatprep.subr.mxu0 0.0
        %4672 = vmatpush1.msra.mxu0 0.0
        %4673 = vmatprep.subr.mxu0 0.0
        %4674 = vmatpush1.msra.mxu0 0.0
        %4675 = vmatprep.subr.mxu0 0.0
        %4676 = vmatpush1.msra.mxu0 0.0
        %4677 = vmatprep.subr.mxu0 0.0
        %4678 = vmatpush1.msra.mxu0 0.0
        %4679 = vmatprep.subr.mxu0 0.0
        %4680 = vmatpush1.msra.mxu0 0.0
        %4681 = vmatprep.subr.mxu0 0.0
        %4682 = vmatpush1.msra.mxu0 0.0
        %4683 = vmatprep.subr.mxu0 0.0
        %4684 = vmatpush1.msra.mxu0 0.0
        %4685 = vmatprep.subr.mxu0 0.0
        %4686 = vmatpush1.msra.mxu0 0.0
        %4687 = vmatprep.subr.mxu0 0.0
        %4688 = vmatpush1.msra.mxu0 0.0
        %4689 = vmatprep.subr.mxu0 0.0
        %4690 = vmatpush1.msra.mxu0 0.0
        %4691 = vmatprep.subr.mxu0 0.0
        %4692 = vmatpush1.msra.mxu0 0.0
        %4693 = vmatprep.subr.mxu0 0.0
        %4694 = vmatpush1.msra.mxu0 0.0
        %4695 = vmatprep.subr.mxu0 0.0
        %4696 = vmatpush1.msra.mxu0 0.0
        %4697 = vmatprep.subr.mxu0 0.0
        %4698 = vmatpush1.msra.mxu0 0.0
        %4699 = vmatprep.subr.mxu0 0.0
        %4700 = vmatpush1.msra.mxu0 0.0
        %4701 = vmatprep.subr.mxu0 0.0
        %4702 = vmatpush1.msra.mxu0 0.0
        %4703 = vmatprep.subr.mxu0 0.0
        %4704 = vmatpush1.msra.mxu0 0.0
        %4705 = vmatprep.subr.mxu0 0.0
        %4706 = vmatpush1.msra.mxu0 0.0
        %4707 = vmatprep.subr.mxu0 0.0
        %4708 = vmatpush1.msra.mxu0 0.0
        %4709 = vmatprep.mubr.f32.mxu0 0.0
        %4710 = vmatmul.mubr.f32.gmra.mrb[0].mxu0 %v4598
        %v4711 = vpop.f32.mrb[0].mxu0
        %v4712 = vadd.f32 0.0, %v4711
        %v4713 = vpop.f32.mrb[0].mxu0
        %4714 = vmatprep.mubr.f32.mxu0 0.0
        %4715 = vmatmul.mubr.f32.gmra.mrb[0].mxu0 %v4601
        %v4716 = vpop.f32.mrb[0].mxu0
        %v4717 = vadd.f32 0.0, %v4716
        %v4718 = vpop.f32.mrb[0].mxu0
        %4719 = vmatprep.mubr.f32.mxu0 0.0
        %4720 = vmatmul.mubr.f32.gmra.mrb[0].mxu0 %v4604
        %v4721 = vpop.f32.mrb[0].mxu0
        %v4722 = vadd.f32 0.0, %v4721
        %v4723 = vpop.f32.mrb[0].mxu0
        %4724 = vmatprep.mubr.f32.mxu0 0.0
        %4725 = vmatmul.mubr.f32.gmra.mrb[0].mxu0 %v4607
        %v4726 = vpop.f32.mrb[0].mxu0
        %v4727 = vadd.f32 0.0, %v4726
        %v4728 = vpop.f32.mrb[0].mxu0
        %4729 = vmatprep.mubr.f32.mxu0 0.0
        %4730 = vmatmul.mubr.f32.gmra.mrb[0].mxu0 %v4610
        %v4731 = vpop.f32.mrb[0].mxu0
        %v4732 = vadd.f32 0.0, %v4731
        %v4733 = vpop.f32.mrb[0].mxu0
        %4734 = vmatprep.mubr.f32.mxu0 0.0
        %4735 = vmatmul.mubr.f32.gmra.mrb[0].mxu0 %v4613
        %v4736 = vpop.f32.mrb[0].mxu0
        %v4737 = vadd.f32 0.0, %v4736
        %v4738 = vpop.f32.mrb[0].mxu0
        %4739 = vmatprep.mubr.f32.mxu0 0.0
        %4740 = vmatmul.mubr.f32.gmra.mrb[0].mxu0 %v4616
        %v4741 = vpop.f32.mrb[0].mxu0
        %v4742 = vadd.f32 0.0, %v4741
        %v4743 = vpop.f32.mrb[0].mxu0
        %4744 = vmatprep.mubr.f32.mxu0 0.0
        %4745 = vmatmul.mubr.f32.gmra.mrb[0].mxu0 %v4619
        %v4746 = vpop.f32.mrb[0].mxu0
        %v4747 = vadd.f32 0.0, %v4746
        %v4748 = vpop.f32.mrb[0].mxu0
        %4749 = vmatprep.mubr.f32.mxu0 0.0
        %4750 = vmatmul.mubr.f32.gmra.mrb[0].mxu0 %v4622
        %v4751 = vpop.f32.mrb[0].mxu0
        %v4752 = vadd.f32 0.0, %v4751
        %v4753 = vpop.f32.mrb[0].mxu0
        %4754 = vmatprep.mubr.f32.mxu0 0.0
        %4755 = vmatmul.mubr.f32.gmra.mrb[0].mxu0 %v4625
        %v4756 = vpop.f32.mrb[0].mxu0
        %v4757 = vadd.f32 0.0, %v4756
        %v4758 = vpop.f32.mrb[0].mxu0
        %4759 = vmatprep.mubr.f32.mxu0 0.0
        %4760 = vmatmul.mubr.f32.gmra.mrb[0].mxu0 %v4628
        %v4761 = vpop.f32.mrb[0].mxu0
        %v4762 = vadd.f32 0.0, %v4761
        %v4763 = vpop.f32.mrb[0].mxu0
        %4764 = vmatprep.mubr.f32.mxu0 0.0
        %4765 = vmatmul.mubr.f32.gmra.mrb[0].mxu0 %v4631
        %v4766 = vpop.f32.mrb[0].mxu0
        %v4767 = vadd.f32 0.0, %v4766
        %v4768 = vpop.f32.mrb[0].mxu0
        %4769 = vmatprep.mubr.f32.mxu0 0.0
        %4770 = vmatmul.mubr.f32.gmra.mrb[0].mxu0 %v4634
        %v4771 = vpop.f32.mrb[0].mxu0
        %v4772 = vadd.f32 0.0, %v4771
        %v4773 = vpop.f32.mrb[0].mxu0
        %4774 = vmatprep.mubr.f32.mxu0 0.0
        %4775 = vmatmul.mubr.f32.gmra.mrb[0].mxu0 %v4637
        %v4776 = vpop.f32.mrb[0].mxu0
        %v4777 = vadd.f32 0.0, %v4776
        %v4778 = vpop.f32.mrb[0].mxu0
        %4779 = vmatprep.mubr.f32.mxu0 0.0
        %4780 = vmatmul.mubr.f32.gmra.mrb[0].mxu0 %v4640
        %v4781 = vpop.f32.mrb[0].mxu0
        %v4782 = vadd.f32 0.0, %v4781
        %v4783 = vpop.f32.mrb[0].mxu0
        %4784 = vmatprep.mubr.f32.mxu0 0.0
        %4785 = vmatmul.mubr.f32.gmra.mrb[0].mxu0 %v4643
        %v4786 = vpop.f32.mrb[0].mxu0
        %v4787 = vadd.f32 0.0, %v4786
        %v4788 = vpop.f32.mrb[0].mxu0
        %4789 = vdwg.mxu0
        %v4790 = vadd.f32 %v4254, %v4712
        %v4791 = vadd.f32 %v4255, %v4717
        %v4792 = vadd.f32 %v4256, %v4722
        %v4793 = vadd.f32 %v4257, %v4727
        %v4794 = vadd.f32 %v4258, %v4732
        %v4795 = vadd.f32 %v4259, %v4737
        %v4796 = vadd.f32 %v4260, %v4742
        %v4797 = vadd.f32 %v4261, %v4747
        %v4798 = vadd.f32 %v4262, %v4752
        %v4799 = vadd.f32 %v4263, %v4757
        %v4800 = vadd.f32 %v4264, %v4762
        %v4801 = vadd.f32 %v4265, %v4767
        %v4802 = vadd.f32 %v4266, %v4772
        %v4803 = vadd.f32 %v4267, %v4777
        %v4804 = vadd.f32 %v4268, %v4782
        %v4805 = vadd.f32 %v4269, %v4787
        %s4806 = scalar_lea.vmem %s446, 240
        %v4807 = vld [vmem:[%s4806] sm:$0xff]
        %v4808 = vld [vmem:[%s4806 + $0x8] sm:$0xff]
        %4809 = vrot.lane.b32.xlu0 %v4578, 112
        %v4810 = vpop.permute.xlu0 %4809
        %4811 = vrot.lane.b32.xlu0 %v4579, 112
        %v4812 = vpop.permute.xlu0 %4811
        %4813 = vrot.lane.b32.xlu0 %v4580, 112
        %v4814 = vpop.permute.xlu0 %4813
        %4815 = vrot.lane.b32.xlu0 %v4581, 112
        %v4816 = vpop.permute.xlu0 %4815
        %4817 = vrot.lane.b32.xlu0 %v4582, 112
        %v4818 = vpop.permute.xlu0 %4817
        %4819 = vrot.lane.b32.xlu0 %v4583, 112
        %v4820 = vpop.permute.xlu0 %4819
        %4821 = vrot.lane.b32.xlu0 %v4584, 112
        %v4822 = vpop.permute.xlu0 %4821
        %4823 = vrot.lane.b32.xlu0 %v4585, 112
        %v4824 = vpop.permute.xlu0 %4823
        %4825 = vrot.lane.b32.xlu0 %v4586, 112
        %v4826 = vpop.permute.xlu0 %4825
        %4827 = vrot.lane.b32.xlu0 %v4587, 112
        %v4828 = vpop.permute.xlu0 %4827
        %4829 = vrot.lane.b32.xlu0 %v4588, 112
        %v4830 = vpop.permute.xlu0 %4829
        %4831 = vrot.lane.b32.xlu0 %v4589, 112
        %v4832 = vpop.permute.xlu0 %4831
        %4833 = vrot.lane.b32.xlu0 %v4590, 112
        %v4834 = vpop.permute.xlu0 %4833
        %4835 = vrot.lane.b32.xlu0 %v4591, 112
        %v4836 = vpop.permute.xlu0 %4835
        %4837 = vrot.lane.b32.xlu0 %v4592, 112
        %v4838 = vpop.permute.xlu0 %4837
        %4839 = vrot.lane.b32.xlu0 %v4593, 112
        %v4840 = vpop.permute.xlu0 %4839
        %v4841 = vsel %vm536, %v4810, 0
        %v4843 = vsel %vm536, %v4812, 0
        %v4845 = vsel %vm536, %v4814, 0
        %v4847 = vsel %vm536, %v4816, 0
        %v4849 = vsel %vm536, %v4818, 0
        %v4851 = vsel %vm536, %v4820, 0
        %v4853 = vsel %vm536, %v4822, 0
        %v4855 = vsel %vm536, %v4824, 0
        %v4857 = vsel %vm536, %v4826, 0
        %v4859 = vsel %vm536, %v4828, 0
        %v4861 = vsel %vm536, %v4830, 0
        %v4863 = vsel %vm536, %v4832, 0
        %v4865 = vsel %vm536, %v4834, 0
        %v4867 = vsel %vm536, %v4836, 0
        %v4869 = vsel %vm536, %v4838, 0
        %v4871 = vsel %vm536, %v4840, 0
        %4873 = vmatprep.subr.mxu0 0.0
        %4874 = vmatpush1.msra.mxu0 %v4807
        %4875 = vmatprep.subr.mxu0 0.0
        %4876 = vmatpush1.msra.mxu0 %v4808
        %4877 = vmatprep.subr.mxu0 0.0
        %4878 = vmatpush1.msra.mxu0 0.0
        %4879 = vmatprep.subr.mxu0 0.0
        %4880 = vmatpush1.msra.mxu0 0.0
        %4881 = vmatprep.subr.mxu0 0.0
        %4882 = vmatpush1.msra.mxu0 0.0
        %4883 = vmatprep.subr.mxu0 0.0
        %4884 = vmatpush1.msra.mxu0 0.0
        %4885 = vmatprep.subr.mxu0 0.0
        %4886 = vmatpush1.msra.mxu0 0.0
        %4887 = vmatprep.subr.mxu0 0.0
        %4888 = vmatpush1.msra.mxu0 0.0
        %4889 = vmatprep.subr.mxu0 0.0
        %4890 = vmatpush1.msra.mxu0 0.0
        %4891 = vmatprep.subr.mxu0 0.0
        %4892 = vmatpush1.msra.mxu0 0.0
        %4893 = vmatprep.subr.mxu0 0.0
        %4894 = vmatpush1.msra.mxu0 0.0
        %4895 = vmatprep.subr.mxu0 0.0
        %4896 = vmatpush1.msra.mxu0 0.0
        %4897 = vmatprep.subr.mxu0 0.0
        %4898 = vmatpush1.msra.mxu0 0.0
        %4899 = vmatprep.subr.mxu0 0.0
        %4900 = vmatpush1.msra.mxu0 0.0
        %4901 = vmatprep.subr.mxu0 0.0
        %4902 = vmatpush1.msra.mxu0 0.0
        %4903 = vmatprep.subr.mxu0 0.0
        %4904 = vmatpush1.msra.mxu0 0.0
        %4905 = vmatprep.subr.mxu0 0.0
        %4906 = vmatpush1.msra.mxu0 0.0
        %4907 = vmatprep.subr.mxu0 0.0
        %4908 = vmatpush1.msra.mxu0 0.0
        %4909 = vmatprep.subr.mxu0 0.0
        %4910 = vmatpush1.msra.mxu0 0.0
        %4911 = vmatprep.subr.mxu0 0.0
        %4912 = vmatpush1.msra.mxu0 0.0
        %4913 = vmatprep.subr.mxu0 0.0
        %4914 = vmatpush1.msra.mxu0 0.0
        %4915 = vmatprep.subr.mxu0 0.0
        %4916 = vmatpush1.msra.mxu0 0.0
        %4917 = vmatprep.subr.mxu0 0.0
        %4918 = vmatpush1.msra.mxu0 0.0
        %4919 = vmatprep.subr.mxu0 0.0
        %4920 = vmatpush1.msra.mxu0 0.0
        %4921 = vmatprep.subr.mxu0 0.0
        %4922 = vmatpush1.msra.mxu0 0.0
        %4923 = vmatprep.subr.mxu0 0.0
        %4924 = vmatpush1.msra.mxu0 0.0
        %4925 = vmatprep.subr.mxu0 0.0
        %4926 = vmatpush1.msra.mxu0 0.0
        %4927 = vmatprep.subr.mxu0 0.0
        %4928 = vmatpush1.msra.mxu0 0.0
        %4929 = vmatprep.subr.mxu0 0.0
        %4930 = vmatpush1.msra.mxu0 0.0
        %4931 = vmatprep.subr.mxu0 0.0
        %4932 = vmatpush1.msra.mxu0 0.0
        %4933 = vmatprep.subr.mxu0 0.0
        %4934 = vmatpush1.msra.mxu0 0.0
        %4935 = vmatprep.subr.mxu0 0.0
        %4936 = vmatpush1.msra.mxu0 0.0
        %4937 = vmatprep.mubr.f32.mxu0 0.0
        %4938 = vmatmul.mubr.f32.gmra.mrb[0].mxu0 %v4841
        %v4939 = vpop.f32.mrb[0].mxu0
        %v4940 = vadd.f32 0.0, %v4939
        %v4941 = vpop.f32.mrb[0].mxu0
        %4942 = vmatprep.mubr.f32.mxu0 0.0
        %4943 = vmatmul.mubr.f32.gmra.mrb[0].mxu0 %v4843
        %v4944 = vpop.f32.mrb[0].mxu0
        %v4945 = vadd.f32 0.0, %v4944
        %v4946 = vpop.f32.mrb[0].mxu0
        %4947 = vmatprep.mubr.f32.mxu0 0.0
        %4948 = vmatmul.mubr.f32.gmra.mrb[0].mxu0 %v4845
        %v4949 = vpop.f32.mrb[0].mxu0
        %v4950 = vadd.f32 0.0, %v4949
        %v4951 = vpop.f32.mrb[0].mxu0
        %4952 = vmatprep.mubr.f32.mxu0 0.0
        %4953 = vmatmul.mubr.f32.gmra.mrb[0].mxu0 %v4847
        %v4954 = vpop.f32.mrb[0].mxu0
        %v4955 = vadd.f32 0.0, %v4954
        %v4956 = vpop.f32.mrb[0].mxu0
        %4957 = vmatprep.mubr.f32.mxu0 0.0
        %4958 = vmatmul.mubr.f32.gmra.mrb[0].mxu0 %v4849
        %v4959 = vpop.f32.mrb[0].mxu0
        %v4960 = vadd.f32 0.0, %v4959
        %v4961 = vpop.f32.mrb[0].mxu0
        %4962 = vmatprep.mubr.f32.mxu0 0.0
        %4963 = vmatmul.mubr.f32.gmra.mrb[0].mxu0 %v4851
        %v4964 = vpop.f32.mrb[0].mxu0
        %v4965 = vadd.f32 0.0, %v4964
        %v4966 = vpop.f32.mrb[0].mxu0
        %4967 = vmatprep.mubr.f32.mxu0 0.0
        %4968 = vmatmul.mubr.f32.gmra.mrb[0].mxu0 %v4853
        %v4969 = vpop.f32.mrb[0].mxu0
        %v4970 = vadd.f32 0.0, %v4969
        %v4971 = vpop.f32.mrb[0].mxu0
        %4972 = vmatprep.mubr.f32.mxu0 0.0
        %4973 = vmatmul.mubr.f32.gmra.mrb[0].mxu0 %v4855
        %v4974 = vpop.f32.mrb[0].mxu0
        %v4975 = vadd.f32 0.0, %v4974
        %v4976 = vpop.f32.mrb[0].mxu0
        %4977 = vmatprep.mubr.f32.mxu0 0.0
        %4978 = vmatmul.mubr.f32.gmra.mrb[0].mxu0 %v4857
        %v4979 = vpop.f32.mrb[0].mxu0
        %v4980 = vadd.f32 0.0, %v4979
        %v4981 = vpop.f32.mrb[0].mxu0
        %4982 = vmatprep.mubr.f32.mxu0 0.0
        %4983 = vmatmul.mubr.f32.gmra.mrb[0].mxu0 %v4859
        %v4984 = vpop.f32.mrb[0].mxu0
        %v4985 = vadd.f32 0.0, %v4984
        %v4986 = vpop.f32.mrb[0].mxu0
        %4987 = vmatprep.mubr.f32.mxu0 0.0
        %4988 = vmatmul.mubr.f32.gmra.mrb[0].mxu0 %v4861
        %v4989 = vpop.f32.mrb[0].mxu0
        %v4990 = vadd.f32 0.0, %v4989
        %v4991 = vpop.f32.mrb[0].mxu0
        %4992 = vmatprep.mubr.f32.mxu0 0.0
        %4993 = vmatmul.mubr.f32.gmra.mrb[0].mxu0 %v4863
        %v4994 = vpop.f32.mrb[0].mxu0
        %v4995 = vadd.f32 0.0, %v4994
        %v4996 = vpop.f32.mrb[0].mxu0
        %4997 = vmatprep.mubr.f32.mxu0 0.0
        %4998 = vmatmul.mubr.f32.gmra.mrb[0].mxu0 %v4865
        %v4999 = vpop.f32.mrb[0].mxu0
        %v5000 = vadd.f32 0.0, %v4999
        %v5001 = vpop.f32.mrb[0].mxu0
        %5002 = vmatprep.mubr.f32.mxu0 0.0
        %5003 = vmatmul.mubr.f32.gmra.mrb[0].mxu0 %v4867
        %v5004 = vpop.f32.mrb[0].mxu0
        %v5005 = vadd.f32 0.0, %v5004
        %v5006 = vpop.f32.mrb[0].mxu0
        %5007 = vmatprep.mubr.f32.mxu0 0.0
        %5008 = vmatmul.mubr.f32.gmra.mrb[0].mxu0 %v4869
        %v5009 = vpop.f32.mrb[0].mxu0
        %v5010 = vadd.f32 0.0, %v5009
        %v5011 = vpop.f32.mrb[0].mxu0
        %5012 = vmatprep.mubr.f32.mxu0 0.0
        %5013 = vmatmul.mubr.f32.gmra.mrb[0].mxu0 %v4871
        %v5014 = vpop.f32.mrb[0].mxu0
        %v5015 = vadd.f32 0.0, %v5014
        %v5016 = vpop.f32.mrb[0].mxu0
        %5017 = vdwg.mxu0
        %v5018 = vadd.f32 %v4482, %v4940
        %v5019 = vadd.f32 %v4483, %v4945
        %v5020 = vadd.f32 %v4484, %v4950
        %v5021 = vadd.f32 %v4485, %v4955
        %v5022 = vadd.f32 %v4486, %v4960
        %v5023 = vadd.f32 %v4487, %v4965
        %v5024 = vadd.f32 %v4488, %v4970
        %v5025 = vadd.f32 %v4489, %v4975
        %v5026 = vadd.f32 %v4490, %v4980
        %v5027 = vadd.f32 %v4491, %v4985
        %v5028 = vadd.f32 %v4492, %v4990
        %v5029 = vadd.f32 %v4493, %v4995
        %v5030 = vadd.f32 %v4494, %v5000
        %v5031 = vadd.f32 %v4495, %v5005
        %v5032 = vadd.f32 %v4496, %v5010
        %v5033 = vadd.f32 %v4497, %v5015
        %v5034 = vld [vmem:[#allocation3 + $0xa] sm:$0xff]
        %v5035 = vld [vmem:[#allocation3 + $0x12] sm:$0xff]
        %v5036 = vld [vmem:[#allocation3 + $0x1a] sm:$0xff]
        %v5037 = vld [vmem:[#allocation3 + $0x22] sm:$0xff]
        %v5038 = vld [vmem:[#allocation3 + $0x2a] sm:$0xff]
        %v5039 = vld [vmem:[#allocation3 + $0x32] sm:$0xff]
        %v5040 = vld [vmem:[#allocation3 + $0x3a] sm:$0xff]
        %v5041 = vld [vmem:[#allocation3 + $0x42] sm:$0xff]
        %v5042 = vld [vmem:[#allocation3 + $0x4a] sm:$0xff]
        %v5043 = vld [vmem:[#allocation3 + $0x52] sm:$0xff]
        %v5044 = vld [vmem:[#allocation3 + $0x5a] sm:$0xff]
        %v5045 = vld [vmem:[#allocation3 + $0x62] sm:$0xff]
        %v5046 = vld [vmem:[#allocation3 + $0x6a] sm:$0xff]
        %v5047 = vld [vmem:[#allocation3 + $0x72] sm:$0xff]
        %v5048 = vld [vmem:[#allocation3 + $0x7a] sm:$0xff]
        %v5049 = vld [vmem:[#allocation3 + $0x82] sm:$0xff]
        %5050 = vset.pattern.permute.xlu0 8
        %5051 = vperm.xlu0 %5050, %v511
        %v5052 = vpop.permute.xlu0 %5051
        %5054 = vset.pattern.permute.xlu0 8
        %5055 = vperm.xlu0 %5054, %v512
        %v5056 = vpop.permute.xlu0 %5055
        %5058 = vset.pattern.permute.xlu0 8
        %5059 = vperm.xlu0 %5058, %v513
        %v5060 = vpop.permute.xlu0 %5059
        %5062 = vset.pattern.permute.xlu0 8
        %5063 = vperm.xlu0 %5062, %v514
        %v5064 = vpop.permute.xlu0 %5063
        %5066 = vset.pattern.permute.xlu0 8
        %5067 = vperm.xlu0 %5066, %v515
        %v5068 = vpop.permute.xlu0 %5067
        %5070 = vset.pattern.permute.xlu0 8
        %5071 = vperm.xlu0 %5070, %v516
        %v5072 = vpop.permute.xlu0 %5071
        %5074 = vset.pattern.permute.xlu0 8
        %5075 = vperm.xlu0 %5074, %v517
        %v5076 = vpop.permute.xlu0 %5075
        %5078 = vset.pattern.permute.xlu0 8
        %5079 = vperm.xlu0 %5078, %v518
        %v5080 = vpop.permute.xlu0 %5079
        %5082 = vset.pattern.permute.xlu0 8
        %5083 = vperm.xlu0 %5082, %v519
        %v5084 = vpop.permute.xlu0 %5083
        %5086 = vset.pattern.permute.xlu0 8
        %5087 = vperm.xlu0 %5086, %v520
        %v5088 = vpop.permute.xlu0 %5087
        %5090 = vset.pattern.permute.xlu0 8
        %5091 = vperm.xlu0 %5090, %v521
        %v5092 = vpop.permute.xlu0 %5091
        %5094 = vset.pattern.permute.xlu0 8
        %5095 = vperm.xlu0 %5094, %v522
        %v5096 = vpop.permute.xlu0 %5095
        %5098 = vset.pattern.permute.xlu0 8
        %5099 = vperm.xlu0 %5098, %v523
        %v5100 = vpop.permute.xlu0 %5099
        %5102 = vset.pattern.permute.xlu0 8
        %5103 = vperm.xlu0 %5102, %v524
        %v5104 = vpop.permute.xlu0 %5103
        %5106 = vset.pattern.permute.xlu0 8
        %5107 = vperm.xlu0 %5106, %v525
        %v5108 = vpop.permute.xlu0 %5107
        %5110 = vset.pattern.permute.xlu0 8
        %5111 = vperm.xlu0 %5110, %v526
        %v5112 = vpop.permute.xlu0 %5111
        %v5114 = vmul.f32 %v5034, %v5052
        %v5115 = vmul.f32 %v5035, %v5056
        %v5116 = vmul.f32 %v5036, %v5060
        %v5117 = vmul.f32 %v5037, %v5064
        %v5118 = vmul.f32 %v5038, %v5068
        %v5119 = vmul.f32 %v5039, %v5072
        %v5120 = vmul.f32 %v5040, %v5076
        %v5121 = vmul.f32 %v5041, %v5080
        %v5122 = vmul.f32 %v5042, %v5084
        %v5123 = vmul.f32 %v5043, %v5088
        %v5124 = vmul.f32 %v5044, %v5092
        %v5125 = vmul.f32 %v5045, %v5096
        %v5126 = vmul.f32 %v5046, %v5100
        %v5127 = vmul.f32 %v5047, %v5104
        %v5128 = vmul.f32 %v5048, %v5108
        %v5129 = vmul.f32 %v5049, %v5112
        %s5130 = scalar_lea.vmem %s446, 256
        %v5131 = vld [vmem:[%s5130] sm:$0xff]
        %v5132 = vld [vmem:[%s5130 + $0x8] sm:$0xff]
        %v5134 = vsel %vm536, %v5114, 0
        %v5137 = vsel %vm536, %v5115, 0
        %v5140 = vsel %vm536, %v5116, 0
        %v5143 = vsel %vm536, %v5117, 0
        %v5146 = vsel %vm536, %v5118, 0
        %v5149 = vsel %vm536, %v5119, 0
        %v5152 = vsel %vm536, %v5120, 0
        %v5155 = vsel %vm536, %v5121, 0
        %v5158 = vsel %vm536, %v5122, 0
        %v5161 = vsel %vm536, %v5123, 0
        %v5164 = vsel %vm536, %v5124, 0
        %v5167 = vsel %vm536, %v5125, 0
        %v5170 = vsel %vm536, %v5126, 0
        %v5173 = vsel %vm536, %v5127, 0
        %v5176 = vsel %vm536, %v5128, 0
        %v5179 = vsel %vm536, %v5129, 0
        %5181 = vmatprep.subr.mxu0 0.0
        %5182 = vmatpush1.msra.mxu0 %v5131
        %5183 = vmatprep.subr.mxu0 0.0
        %5184 = vmatpush1.msra.mxu0 %v5132
        %5185 = vmatprep.subr.mxu0 0.0
        %5186 = vmatpush1.msra.mxu0 0.0
        %5187 = vmatprep.subr.mxu0 0.0
        %5188 = vmatpush1.msra.mxu0 0.0
        %5189 = vmatprep.subr.mxu0 0.0
        %5190 = vmatpush1.msra.mxu0 0.0
        %5191 = vmatprep.subr.mxu0 0.0
        %5192 = vmatpush1.msra.mxu0 0.0
        %5193 = vmatprep.subr.mxu0 0.0
        %5194 = vmatpush1.msra.mxu0 0.0
        %5195 = vmatprep.subr.mxu0 0.0
        %5196 = vmatpush1.msra.mxu0 0.0
        %5197 = vmatprep.subr.mxu0 0.0
        %5198 = vmatpush1.msra.mxu0 0.0
        %5199 = vmatprep.subr.mxu0 0.0
        %5200 = vmatpush1.msra.mxu0 0.0
        %5201 = vmatprep.subr.mxu0 0.0
        %5202 = vmatpush1.msra.mxu0 0.0
        %5203 = vmatprep.subr.mxu0 0.0
        %5204 = vmatpush1.msra.mxu0 0.0
        %5205 = vmatprep.subr.mxu0 0.0
        %5206 = vmatpush1.msra.mxu0 0.0
        %5207 = vmatprep.subr.mxu0 0.0
        %5208 = vmatpush1.msra.mxu0 0.0
        %5209 = vmatprep.subr.mxu0 0.0
        %5210 = vmatpush1.msra.mxu0 0.0
        %5211 = vmatprep.subr.mxu0 0.0
        %5212 = vmatpush1.msra.mxu0 0.0
        %5213 = vmatprep.subr.mxu0 0.0
        %5214 = vmatpush1.msra.mxu0 0.0
        %5215 = vmatprep.subr.mxu0 0.0
        %5216 = vmatpush1.msra.mxu0 0.0
        %5217 = vmatprep.subr.mxu0 0.0
        %5218 = vmatpush1.msra.mxu0 0.0
        %5219 = vmatprep.subr.mxu0 0.0
        %5220 = vmatpush1.msra.mxu0 0.0
        %5221 = vmatprep.subr.mxu0 0.0
        %5222 = vmatpush1.msra.mxu0 0.0
        %5223 = vmatprep.subr.mxu0 0.0
        %5224 = vmatpush1.msra.mxu0 0.0
        %5225 = vmatprep.subr.mxu0 0.0
        %5226 = vmatpush1.msra.mxu0 0.0
        %5227 = vmatprep.subr.mxu0 0.0
        %5228 = vmatpush1.msra.mxu0 0.0
        %5229 = vmatprep.subr.mxu0 0.0
        %5230 = vmatpush1.msra.mxu0 0.0
        %5231 = vmatprep.subr.mxu0 0.0
        %5232 = vmatpush1.msra.mxu0 0.0
        %5233 = vmatprep.subr.mxu0 0.0
        %5234 = vmatpush1.msra.mxu0 0.0
        %5235 = vmatprep.subr.mxu0 0.0
        %5236 = vmatpush1.msra.mxu0 0.0
        %5237 = vmatprep.subr.mxu0 0.0
        %5238 = vmatpush1.msra.mxu0 0.0
        %5239 = vmatprep.subr.mxu0 0.0
        %5240 = vmatpush1.msra.mxu0 0.0
        %5241 = vmatprep.subr.mxu0 0.0
        %5242 = vmatpush1.msra.mxu0 0.0
        %5243 = vmatprep.subr.mxu0 0.0
        %5244 = vmatpush1.msra.mxu0 0.0
        %5245 = vmatprep.mubr.f32.mxu0 0.0
        %5246 = vmatmul.mubr.f32.gmra.mrb[0].mxu0 %v5134
        %v5247 = vpop.f32.mrb[0].mxu0
        %v5248 = vadd.f32 0.0, %v5247
        %v5249 = vpop.f32.mrb[0].mxu0
        %5250 = vmatprep.mubr.f32.mxu0 0.0
        %5251 = vmatmul.mubr.f32.gmra.mrb[0].mxu0 %v5137
        %v5252 = vpop.f32.mrb[0].mxu0
        %v5253 = vadd.f32 0.0, %v5252
        %v5254 = vpop.f32.mrb[0].mxu0
        %5255 = vmatprep.mubr.f32.mxu0 0.0
        %5256 = vmatmul.mubr.f32.gmra.mrb[0].mxu0 %v5140
        %v5257 = vpop.f32.mrb[0].mxu0
        %v5258 = vadd.f32 0.0, %v5257
        %v5259 = vpop.f32.mrb[0].mxu0
        %5260 = vmatprep.mubr.f32.mxu0 0.0
        %5261 = vmatmul.mubr.f32.gmra.mrb[0].mxu0 %v5143
        %v5262 = vpop.f32.mrb[0].mxu0
        %v5263 = vadd.f32 0.0, %v5262
        %v5264 = vpop.f32.mrb[0].mxu0
        %5265 = vmatprep.mubr.f32.mxu0 0.0
        %5266 = vmatmul.mubr.f32.gmra.mrb[0].mxu0 %v5146
        %v5267 = vpop.f32.mrb[0].mxu0
        %v5268 = vadd.f32 0.0, %v5267
        %v5269 = vpop.f32.mrb[0].mxu0
        %5270 = vmatprep.mubr.f32.mxu0 0.0
        %5271 = vmatmul.mubr.f32.gmra.mrb[0].mxu0 %v5149
        %v5272 = vpop.f32.mrb[0].mxu0
        %v5273 = vadd.f32 0.0, %v5272
        %v5274 = vpop.f32.mrb[0].mxu0
        %5275 = vmatprep.mubr.f32.mxu0 0.0
        %5276 = vmatmul.mubr.f32.gmra.mrb[0].mxu0 %v5152
        %v5277 = vpop.f32.mrb[0].mxu0
        %v5278 = vadd.f32 0.0, %v5277
        %v5279 = vpop.f32.mrb[0].mxu0
        %5280 = vmatprep.mubr.f32.mxu0 0.0
        %5281 = vmatmul.mubr.f32.gmra.mrb[0].mxu0 %v5155
        %v5282 = vpop.f32.mrb[0].mxu0
        %v5283 = vadd.f32 0.0, %v5282
        %v5284 = vpop.f32.mrb[0].mxu0
        %5285 = vmatprep.mubr.f32.mxu0 0.0
        %5286 = vmatmul.mubr.f32.gmra.mrb[0].mxu0 %v5158
        %v5287 = vpop.f32.mrb[0].mxu0
        %v5288 = vadd.f32 0.0, %v5287
        %v5289 = vpop.f32.mrb[0].mxu0
        %5290 = vmatprep.mubr.f32.mxu0 0.0
        %5291 = vmatmul.mubr.f32.gmra.mrb[0].mxu0 %v5161
        %v5292 = vpop.f32.mrb[0].mxu0
        %v5293 = vadd.f32 0.0, %v5292
        %v5294 = vpop.f32.mrb[0].mxu0
        %5295 = vmatprep.mubr.f32.mxu0 0.0
        %5296 = vmatmul.mubr.f32.gmra.mrb[0].mxu0 %v5164
        %v5297 = vpop.f32.mrb[0].mxu0
        %v5298 = vadd.f32 0.0, %v5297
        %v5299 = vpop.f32.mrb[0].mxu0
        %5300 = vmatprep.mubr.f32.mxu0 0.0
        %5301 = vmatmul.mubr.f32.gmra.mrb[0].mxu0 %v5167
        %v5302 = vpop.f32.mrb[0].mxu0
        %v5303 = vadd.f32 0.0, %v5302
        %v5304 = vpop.f32.mrb[0].mxu0
        %5305 = vmatprep.mubr.f32.mxu0 0.0
        %5306 = vmatmul.mubr.f32.gmra.mrb[0].mxu0 %v5170
        %v5307 = vpop.f32.mrb[0].mxu0
        %v5308 = vadd.f32 0.0, %v5307
        %v5309 = vpop.f32.mrb[0].mxu0
        %5310 = vmatprep.mubr.f32.mxu0 0.0
        %5311 = vmatmul.mubr.f32.gmra.mrb[0].mxu0 %v5173
        %v5312 = vpop.f32.mrb[0].mxu0
        %v5313 = vadd.f32 0.0, %v5312
        %v5314 = vpop.f32.mrb[0].mxu0
        %5315 = vmatprep.mubr.f32.mxu0 0.0
        %5316 = vmatmul.mubr.f32.gmra.mrb[0].mxu0 %v5176
        %v5317 = vpop.f32.mrb[0].mxu0
        %v5318 = vadd.f32 0.0, %v5317
        %v5319 = vpop.f32.mrb[0].mxu0
        %5320 = vmatprep.mubr.f32.mxu0 0.0
        %5321 = vmatmul.mubr.f32.gmra.mrb[0].mxu0 %v5179
        %v5322 = vpop.f32.mrb[0].mxu0
        %v5323 = vadd.f32 0.0, %v5322
        %v5324 = vpop.f32.mrb[0].mxu0
        %5325 = vdwg.mxu0
        %v5326 = vadd.f32 %v4790, %v5248
        %v5327 = vadd.f32 %v4791, %v5253
        %v5328 = vadd.f32 %v4792, %v5258
        %v5329 = vadd.f32 %v4793, %v5263
        %v5330 = vadd.f32 %v4794, %v5268
        %v5331 = vadd.f32 %v4795, %v5273
        %v5332 = vadd.f32 %v4796, %v5278
        %v5333 = vadd.f32 %v4797, %v5283
        %v5334 = vadd.f32 %v4798, %v5288
        %v5335 = vadd.f32 %v4799, %v5293
        %v5336 = vadd.f32 %v4800, %v5298
        %v5337 = vadd.f32 %v4801, %v5303
        %v5338 = vadd.f32 %v4802, %v5308
        %v5339 = vadd.f32 %v4803, %v5313
        %v5340 = vadd.f32 %v4804, %v5318
        %v5341 = vadd.f32 %v4805, %v5323
        %s5342 = scalar_lea.vmem %s446, 272
        %v5343 = vld [vmem:[%s5342] sm:$0xff]
        %v5344 = vld [vmem:[%s5342 + $0x8] sm:$0xff]
        %5345 = vrot.lane.b32.xlu0 %v5114, 112
        %v5346 = vpop.permute.xlu0 %5345
        %5347 = vrot.lane.b32.xlu0 %v5115, 112
        %v5348 = vpop.permute.xlu0 %5347
        %5349 = vrot.lane.b32.xlu0 %v5116, 112
        %v5350 = vpop.permute.xlu0 %5349
        %5351 = vrot.lane.b32.xlu0 %v5117, 112
        %v5352 = vpop.permute.xlu0 %5351
        %5353 = vrot.lane.b32.xlu0 %v5118, 112
        %v5354 = vpop.permute.xlu0 %5353
        %5355 = vrot.lane.b32.xlu0 %v5119, 112
        %v5356 = vpop.permute.xlu0 %5355
        %5357 = vrot.lane.b32.xlu0 %v5120, 112
        %v5358 = vpop.permute.xlu0 %5357
        %5359 = vrot.lane.b32.xlu0 %v5121, 112
        %v5360 = vpop.permute.xlu0 %5359
        %5361 = vrot.lane.b32.xlu0 %v5122, 112
        %v5362 = vpop.permute.xlu0 %5361
        %5363 = vrot.lane.b32.xlu0 %v5123, 112
        %v5364 = vpop.permute.xlu0 %5363
        %5365 = vrot.lane.b32.xlu0 %v5124, 112
        %v5366 = vpop.permute.xlu0 %5365
        %5367 = vrot.lane.b32.xlu0 %v5125, 112
        %v5368 = vpop.permute.xlu0 %5367
        %5369 = vrot.lane.b32.xlu0 %v5126, 112
        %v5370 = vpop.permute.xlu0 %5369
        %5371 = vrot.lane.b32.xlu0 %v5127, 112
        %v5372 = vpop.permute.xlu0 %5371
        %5373 = vrot.lane.b32.xlu0 %v5128, 112
        %v5374 = vpop.permute.xlu0 %5373
        %5375 = vrot.lane.b32.xlu0 %v5129, 112
        %v5376 = vpop.permute.xlu0 %5375
        %v5377 = vsel %vm536, %v5346, 0
        %v5379 = vsel %vm536, %v5348, 0
        %v5381 = vsel %vm536, %v5350, 0
        %v5383 = vsel %vm536, %v5352, 0
        %v5385 = vsel %vm536, %v5354, 0
        %v5387 = vsel %vm536, %v5356, 0
        %v5389 = vsel %vm536, %v5358, 0
        %v5391 = vsel %vm536, %v5360, 0
        %v5393 = vsel %vm536, %v5362, 0
        %v5395 = vsel %vm536, %v5364, 0
        %v5397 = vsel %vm536, %v5366, 0
        %v5399 = vsel %vm536, %v5368, 0
        %v5401 = vsel %vm536, %v5370, 0
        %v5403 = vsel %vm536, %v5372, 0
        %v5405 = vsel %vm536, %v5374, 0
        %v5407 = vsel %vm536, %v5376, 0
        %5409 = vmatprep.subr.mxu0 0.0
        %5410 = vmatpush1.msra.mxu0 %v5343
        %5411 = vmatprep.subr.mxu0 0.0
        %5412 = vmatpush1.msra.mxu0 %v5344
        %5413 = vmatprep.subr.mxu0 0.0
        %5414 = vmatpush1.msra.mxu0 0.0
        %5415 = vmatprep.subr.mxu0 0.0
        %5416 = vmatpush1.msra.mxu0 0.0
        %5417 = vmatprep.subr.mxu0 0.0
        %5418 = vmatpush1.msra.mxu0 0.0
        %5419 = vmatprep.subr.mxu0 0.0
        %5420 = vmatpush1.msra.mxu0 0.0
        %5421 = vmatprep.subr.mxu0 0.0
        %5422 = vmatpush1.msra.mxu0 0.0
        %5423 = vmatprep.subr.mxu0 0.0
        %5424 = vmatpush1.msra.mxu0 0.0
        %5425 = vmatprep.subr.mxu0 0.0
        %5426 = vmatpush1.msra.mxu0 0.0
        %5427 = vmatprep.subr.mxu0 0.0
        %5428 = vmatpush1.msra.mxu0 0.0
        %5429 = vmatprep.subr.mxu0 0.0
        %5430 = vmatpush1.msra.mxu0 0.0
        %5431 = vmatprep.subr.mxu0 0.0
        %5432 = vmatpush1.msra.mxu0 0.0
        %5433 = vmatprep.subr.mxu0 0.0
        %5434 = vmatpush1.msra.mxu0 0.0
        %5435 = vmatprep.subr.mxu0 0.0
        %5436 = vmatpush1.msra.mxu0 0.0
        %5437 = vmatprep.subr.mxu0 0.0
        %5438 = vmatpush1.msra.mxu0 0.0
        %5439 = vmatprep.subr.mxu0 0.0
        %5440 = vmatpush1.msra.mxu0 0.0
        %5441 = vmatprep.subr.mxu0 0.0
        %5442 = vmatpush1.msra.mxu0 0.0
        %5443 = vmatprep.subr.mxu0 0.0
        %5444 = vmatpush1.msra.mxu0 0.0
        %5445 = vmatprep.subr.mxu0 0.0
        %5446 = vmatpush1.msra.mxu0 0.0
        %5447 = vmatprep.subr.mxu0 0.0
        %5448 = vmatpush1.msra.mxu0 0.0
        %5449 = vmatprep.subr.mxu0 0.0
        %5450 = vmatpush1.msra.mxu0 0.0
        %5451 = vmatprep.subr.mxu0 0.0
        %5452 = vmatpush1.msra.mxu0 0.0
        %5453 = vmatprep.subr.mxu0 0.0
        %5454 = vmatpush1.msra.mxu0 0.0
        %5455 = vmatprep.subr.mxu0 0.0
        %5456 = vmatpush1.msra.mxu0 0.0
        %5457 = vmatprep.subr.mxu0 0.0
        %5458 = vmatpush1.msra.mxu0 0.0
        %5459 = vmatprep.subr.mxu0 0.0
        %5460 = vmatpush1.msra.mxu0 0.0
        %5461 = vmatprep.subr.mxu0 0.0
        %5462 = vmatpush1.msra.mxu0 0.0
        %5463 = vmatprep.subr.mxu0 0.0
        %5464 = vmatpush1.msra.mxu0 0.0
        %5465 = vmatprep.subr.mxu0 0.0
        %5466 = vmatpush1.msra.mxu0 0.0
        %5467 = vmatprep.subr.mxu0 0.0
        %5468 = vmatpush1.msra.mxu0 0.0
        %5469 = vmatprep.subr.mxu0 0.0
        %5470 = vmatpush1.msra.mxu0 0.0
        %5471 = vmatprep.subr.mxu0 0.0
        %5472 = vmatpush1.msra.mxu0 0.0
        %5473 = vmatprep.mubr.f32.mxu0 0.0
        %5474 = vmatmul.mubr.f32.gmra.mrb[0].mxu0 %v5377
        %v5475 = vpop.f32.mrb[0].mxu0
        %v5476 = vadd.f32 0.0, %v5475
        %v5477 = vpop.f32.mrb[0].mxu0
        %5478 = vmatprep.mubr.f32.mxu0 0.0
        %5479 = vmatmul.mubr.f32.gmra.mrb[0].mxu0 %v5379
        %v5480 = vpop.f32.mrb[0].mxu0
        %v5481 = vadd.f32 0.0, %v5480
        %v5482 = vpop.f32.mrb[0].mxu0
        %5483 = vmatprep.mubr.f32.mxu0 0.0
        %5484 = vmatmul.mubr.f32.gmra.mrb[0].mxu0 %v5381
        %v5485 = vpop.f32.mrb[0].mxu0
        %v5486 = vadd.f32 0.0, %v5485
        %v5487 = vpop.f32.mrb[0].mxu0
        %5488 = vmatprep.mubr.f32.mxu0 0.0
        %5489 = vmatmul.mubr.f32.gmra.mrb[0].mxu0 %v5383
        %v5490 = vpop.f32.mrb[0].mxu0
        %v5491 = vadd.f32 0.0, %v5490
        %v5492 = vpop.f32.mrb[0].mxu0
        %5493 = vmatprep.mubr.f32.mxu0 0.0
        %5494 = vmatmul.mubr.f32.gmra.mrb[0].mxu0 %v5385
        %v5495 = vpop.f32.mrb[0].mxu0
        %v5496 = vadd.f32 0.0, %v5495
        %v5497 = vpop.f32.mrb[0].mxu0
        %5498 = vmatprep.mubr.f32.mxu0 0.0
        %5499 = vmatmul.mubr.f32.gmra.mrb[0].mxu0 %v5387
        %v5500 = vpop.f32.mrb[0].mxu0
        %v5501 = vadd.f32 0.0, %v5500
        %v5502 = vpop.f32.mrb[0].mxu0
        %5503 = vmatprep.mubr.f32.mxu0 0.0
        %5504 = vmatmul.mubr.f32.gmra.mrb[0].mxu0 %v5389
        %v5505 = vpop.f32.mrb[0].mxu0
        %v5506 = vadd.f32 0.0, %v5505
        %v5507 = vpop.f32.mrb[0].mxu0
        %5508 = vmatprep.mubr.f32.mxu0 0.0
        %5509 = vmatmul.mubr.f32.gmra.mrb[0].mxu0 %v5391
        %v5510 = vpop.f32.mrb[0].mxu0
        %v5511 = vadd.f32 0.0, %v5510
        %v5512 = vpop.f32.mrb[0].mxu0
        %5513 = vmatprep.mubr.f32.mxu0 0.0
        %5514 = vmatmul.mubr.f32.gmra.mrb[0].mxu0 %v5393
        %v5515 = vpop.f32.mrb[0].mxu0
        %v5516 = vadd.f32 0.0, %v5515
        %v5517 = vpop.f32.mrb[0].mxu0
        %5518 = vmatprep.mubr.f32.mxu0 0.0
        %5519 = vmatmul.mubr.f32.gmra.mrb[0].mxu0 %v5395
        %v5520 = vpop.f32.mrb[0].mxu0
        %v5521 = vadd.f32 0.0, %v5520
        %v5522 = vpop.f32.mrb[0].mxu0
        %5523 = vmatprep.mubr.f32.mxu0 0.0
        %5524 = vmatmul.mubr.f32.gmra.mrb[0].mxu0 %v5397
        %v5525 = vpop.f32.mrb[0].mxu0
        %v5526 = vadd.f32 0.0, %v5525
        %v5527 = vpop.f32.mrb[0].mxu0
        %5528 = vmatprep.mubr.f32.mxu0 0.0
        %5529 = vmatmul.mubr.f32.gmra.mrb[0].mxu0 %v5399
        %v5530 = vpop.f32.mrb[0].mxu0
        %v5531 = vadd.f32 0.0, %v5530
        %v5532 = vpop.f32.mrb[0].mxu0
        %5533 = vmatprep.mubr.f32.mxu0 0.0
        %5534 = vmatmul.mubr.f32.gmra.mrb[0].mxu0 %v5401
        %v5535 = vpop.f32.mrb[0].mxu0
        %v5536 = vadd.f32 0.0, %v5535
        %v5537 = vpop.f32.mrb[0].mxu0
        %5538 = vmatprep.mubr.f32.mxu0 0.0
        %5539 = vmatmul.mubr.f32.gmra.mrb[0].mxu0 %v5403
        %v5540 = vpop.f32.mrb[0].mxu0
        %v5541 = vadd.f32 0.0, %v5540
        %v5542 = vpop.f32.mrb[0].mxu0
        %5543 = vmatprep.mubr.f32.mxu0 0.0
        %5544 = vmatmul.mubr.f32.gmra.mrb[0].mxu0 %v5405
        %v5545 = vpop.f32.mrb[0].mxu0
        %v5546 = vadd.f32 0.0, %v5545
        %v5547 = vpop.f32.mrb[0].mxu0
        %5548 = vmatprep.mubr.f32.mxu0 0.0
        %5549 = vmatmul.mubr.f32.gmra.mrb[0].mxu0 %v5407
        %v5550 = vpop.f32.mrb[0].mxu0
        %v5551 = vadd.f32 0.0, %v5550
        %v5552 = vpop.f32.mrb[0].mxu0
        %5553 = vdwg.mxu0
        %v5554 = vadd.f32 %v5018, %v5476
        %v5555 = vadd.f32 %v5019, %v5481
        %v5556 = vadd.f32 %v5020, %v5486
        %v5557 = vadd.f32 %v5021, %v5491
        %v5558 = vadd.f32 %v5022, %v5496
        %v5559 = vadd.f32 %v5023, %v5501
        %v5560 = vadd.f32 %v5024, %v5506
        %v5561 = vadd.f32 %v5025, %v5511
        %v5562 = vadd.f32 %v5026, %v5516
        %v5563 = vadd.f32 %v5027, %v5521
        %v5564 = vadd.f32 %v5028, %v5526
        %v5565 = vadd.f32 %v5029, %v5531
        %v5566 = vadd.f32 %v5030, %v5536
        %v5567 = vadd.f32 %v5031, %v5541
        %v5568 = vadd.f32 %v5032, %v5546
        %v5569 = vadd.f32 %v5033, %v5551
        %5586 = vrot.lane.b32.xlu0 %v5554, 16
        %v5587 = vpop.permute.xlu0 %5586
        %5588 = vrot.lane.b32.xlu0 %v5555, 16
        %v5589 = vpop.permute.xlu0 %5588
        %5590 = vrot.lane.b32.xlu0 %v5556, 16
        %v5591 = vpop.permute.xlu0 %5590
        %5592 = vrot.lane.b32.xlu0 %v5557, 16
        %v5593 = vpop.permute.xlu0 %5592
        %5594 = vrot.lane.b32.xlu0 %v5558, 16
        %v5595 = vpop.permute.xlu0 %5594
        %5596 = vrot.lane.b32.xlu0 %v5559, 16
        %v5597 = vpop.permute.xlu0 %5596
        %5598 = vrot.lane.b32.xlu0 %v5560, 16
        %v5599 = vpop.permute.xlu0 %5598
        %5600 = vrot.lane.b32.xlu0 %v5561, 16
        %v5601 = vpop.permute.xlu0 %5600
        %5602 = vrot.lane.b32.xlu0 %v5562, 16
        %v5603 = vpop.permute.xlu0 %5602
        %5604 = vrot.lane.b32.xlu0 %v5563, 16
        %v5605 = vpop.permute.xlu0 %5604
        %5606 = vrot.lane.b32.xlu0 %v5564, 16
        %v5607 = vpop.permute.xlu0 %5606
        %5608 = vrot.lane.b32.xlu0 %v5565, 16
        %v5609 = vpop.permute.xlu0 %5608
        %5610 = vrot.lane.b32.xlu0 %v5566, 16
        %v5611 = vpop.permute.xlu0 %5610
        %5612 = vrot.lane.b32.xlu0 %v5567, 16
        %v5613 = vpop.permute.xlu0 %5612
        %5614 = vrot.lane.b32.xlu0 %v5568, 16
        %v5615 = vpop.permute.xlu0 %5614
        %5616 = vrot.lane.b32.xlu0 %v5569, 16
        %v5617 = vpop.permute.xlu0 %5616
        %v5634 = vsel %vm536, %v5326, %v5587
        %v5635 = vsel %vm536, %v5327, %v5589
        %v5636 = vsel %vm536, %v5328, %v5591
        %v5637 = vsel %vm536, %v5329, %v5593
        %v5638 = vsel %vm536, %v5330, %v5595
        %v5639 = vsel %vm536, %v5331, %v5597
        %v5640 = vsel %vm536, %v5332, %v5599
        %v5641 = vsel %vm536, %v5333, %v5601
        %v5642 = vsel %vm536, %v5334, %v5603
        %v5643 = vsel %vm536, %v5335, %v5605
        %v5644 = vsel %vm536, %v5336, %v5607
        %v5645 = vsel %vm536, %v5337, %v5609
        %v5646 = vsel %vm536, %v5338, %v5611
        %v5647 = vsel %vm536, %v5339, %v5613
        %v5648 = vsel %vm536, %v5340, %v5615
        %v5649 = vsel %vm536, %v5341, %v5617
        %v5650 = vld [vmem:[%s449] sm:$0x1]
        %v5652 = vlaneseq
        %v5653 = vshrl.u32 %v5652, 7
        %v5654 = vsub.s32 0, %v5653
        %v5655 = vrot.slane %v5650, %v5654
        %v5657 = vadd.f32 %v5634, %v5655
        %v5658 = vadd.f32 %v5635, %v5655
        %v5659 = vadd.f32 %v5636, %v5655
        %v5660 = vadd.f32 %v5637, %v5655
        %v5661 = vadd.f32 %v5638, %v5655
        %v5662 = vadd.f32 %v5639, %v5655
        %v5663 = vadd.f32 %v5640, %v5655
        %v5664 = vadd.f32 %v5641, %v5655
        %v5665 = vadd.f32 %v5642, %v5655
        %v5666 = vadd.f32 %v5643, %v5655
        %v5667 = vadd.f32 %v5644, %v5655
        %v5668 = vadd.f32 %v5645, %v5655
        %v5669 = vadd.f32 %v5646, %v5655
        %v5670 = vadd.f32 %v5647, %v5655
        %v5671 = vadd.f32 %v5648, %v5655
        %v5672 = vadd.f32 %v5649, %v5655
        %vm5673 = vcmp.ge.f32.partialorder %v5657, 0.0
        %vm5674 = vcmp.ge.f32.partialorder %v5658, 0.0
        %vm5675 = vcmp.ge.f32.partialorder %v5659, 0.0
        %vm5676 = vcmp.ge.f32.partialorder %v5660, 0.0
        %vm5677 = vcmp.ge.f32.partialorder %v5661, 0.0
        %vm5678 = vcmp.ge.f32.partialorder %v5662, 0.0
        %vm5679 = vcmp.ge.f32.partialorder %v5663, 0.0
        %vm5680 = vcmp.ge.f32.partialorder %v5664, 0.0
        %vm5681 = vcmp.ge.f32.partialorder %v5665, 0.0
        %vm5682 = vcmp.ge.f32.partialorder %v5666, 0.0
        %vm5683 = vcmp.ge.f32.partialorder %v5667, 0.0
        %vm5684 = vcmp.ge.f32.partialorder %v5668, 0.0
        %vm5685 = vcmp.ge.f32.partialorder %v5669, 0.0
        %vm5686 = vcmp.ge.f32.partialorder %v5670, 0.0
        %vm5687 = vcmp.ge.f32.partialorder %v5671, 0.0
        %vm5688 = vcmp.ge.f32.partialorder %v5672, 0.0
        %v5689 = vmul.f32 %v5657, 0.2
        %v5690 = vmul.f32 %v5658, 0.2
        %v5691 = vmul.f32 %v5659, 0.2
        %v5692 = vmul.f32 %v5660, 0.2
        %v5693 = vmul.f32 %v5661, 0.2
        %v5694 = vmul.f32 %v5662, 0.2
        %v5695 = vmul.f32 %v5663, 0.2
        %v5696 = vmul.f32 %v5664, 0.2
        %v5697 = vmul.f32 %v5665, 0.2
        %v5698 = vmul.f32 %v5666, 0.2
        %v5699 = vmul.f32 %v5667, 0.2
        %v5700 = vmul.f32 %v5668, 0.2
        %v5701 = vmul.f32 %v5669, 0.2
        %v5702 = vmul.f32 %v5670, 0.2
        %v5703 = vmul.f32 %v5671, 0.2
        %v5704 = vmul.f32 %v5672, 0.2
        %v5705 = vsel %vm5673, %v5657, %v5689
        %v5706 = vsel %vm5674, %v5658, %v5690
        %v5707 = vsel %vm5675, %v5659, %v5691
        %v5708 = vsel %vm5676, %v5660, %v5692
        %v5709 = vsel %vm5677, %v5661, %v5693
        %v5710 = vsel %vm5678, %v5662, %v5694
        %v5711 = vsel %vm5679, %v5663, %v5695
        %v5712 = vsel %vm5680, %v5664, %v5696
        %v5713 = vsel %vm5681, %v5665, %v5697
        %v5714 = vsel %vm5682, %v5666, %v5698
        %v5715 = vsel %vm5683, %v5667, %v5699
        %v5716 = vsel %vm5684, %v5668, %v5700
        %v5717 = vsel %vm5685, %v5669, %v5701
        %v5718 = vsel %vm5686, %v5670, %v5702
        %v5719 = vsel %vm5687, %v5671, %v5703
        %v5720 = vsel %vm5688, %v5672, %v5704
        %v5721 = vld [vmem:[%s454] sm:$0xff]
        %v5722 = vld [vmem:[%s454 + $0x8] sm:$0xff]
        %v5723 = vld [vmem:[%s454 + $0x10] sm:$0xff]
        %v5724 = vld [vmem:[%s454 + $0x18] sm:$0xff]
        %v5726 = vsel %vm778, %v5705, 0
        %v5729 = vsel %vm778, %v5706, 0
        %v5732 = vsel %vm778, %v5707, 0
        %v5735 = vsel %vm778, %v5708, 0
        %v5738 = vsel %vm778, %v5709, 0
        %v5741 = vsel %vm778, %v5710, 0
        %v5744 = vsel %vm778, %v5711, 0
        %v5747 = vsel %vm778, %v5712, 0
        %v5750 = vsel %vm778, %v5713, 0
        %v5753 = vsel %vm778, %v5714, 0
        %v5756 = vsel %vm778, %v5715, 0
        %v5759 = vsel %vm778, %v5716, 0
        %v5762 = vsel %vm778, %v5717, 0
        %v5765 = vsel %vm778, %v5718, 0
        %v5768 = vsel %vm778, %v5719, 0
        %v5771 = vsel %vm778, %v5720, 0
        %5773 = vmatprep.subr.mxu0 0.0
        %5774 = vmatpush1.msra.mxu0 %v5721
        %5775 = vmatprep.subr.mxu0 0.0
        %5776 = vmatpush1.msra.mxu0 %v5722
        %5777 = vmatprep.subr.mxu0 0.0
        %5778 = vmatpush1.msra.mxu0 %v5723
        %5779 = vmatprep.subr.mxu0 0.0
        %5780 = vmatpush1.msra.mxu0 %v5724
        %5781 = vmatprep.subr.mxu0 0.0
        %5782 = vmatpush1.msra.mxu0 0.0
        %5783 = vmatprep.subr.mxu0 0.0
        %5784 = vmatpush1.msra.mxu0 0.0
        %5785 = vmatprep.subr.mxu0 0.0
        %5786 = vmatpush1.msra.mxu0 0.0
        %5787 = vmatprep.subr.mxu0 0.0
        %5788 = vmatpush1.msra.mxu0 0.0
        %5789 = vmatprep.subr.mxu0 0.0
        %5790 = vmatpush1.msra.mxu0 0.0
        %5791 = vmatprep.subr.mxu0 0.0
        %5792 = vmatpush1.msra.mxu0 0.0
        %5793 = vmatprep.subr.mxu0 0.0
        %5794 = vmatpush1.msra.mxu0 0.0
        %5795 = vmatprep.subr.mxu0 0.0
        %5796 = vmatpush1.msra.mxu0 0.0
        %5797 = vmatprep.subr.mxu0 0.0
        %5798 = vmatpush1.msra.mxu0 0.0
        %5799 = vmatprep.subr.mxu0 0.0
        %5800 = vmatpush1.msra.mxu0 0.0
        %5801 = vmatprep.subr.mxu0 0.0
        %5802 = vmatpush1.msra.mxu0 0.0
        %5803 = vmatprep.subr.mxu0 0.0
        %5804 = vmatpush1.msra.mxu0 0.0
        %5805 = vmatprep.subr.mxu0 0.0
        %5806 = vmatpush1.msra.mxu0 0.0
        %5807 = vmatprep.subr.mxu0 0.0
        %5808 = vmatpush1.msra.mxu0 0.0
        %5809 = vmatprep.subr.mxu0 0.0
        %5810 = vmatpush1.msra.mxu0 0.0
        %5811 = vmatprep.subr.mxu0 0.0
        %5812 = vmatpush1.msra.mxu0 0.0
        %5813 = vmatprep.subr.mxu0 0.0
        %5814 = vmatpush1.msra.mxu0 0.0
        %5815 = vmatprep.subr.mxu0 0.0
        %5816 = vmatpush1.msra.mxu0 0.0
        %5817 = vmatprep.subr.mxu0 0.0
        %5818 = vmatpush1.msra.mxu0 0.0
        %5819 = vmatprep.subr.mxu0 0.0
        %5820 = vmatpush1.msra.mxu0 0.0
        %5821 = vmatprep.subr.mxu0 0.0
        %5822 = vmatpush1.msra.mxu0 0.0
        %5823 = vmatprep.subr.mxu0 0.0
        %5824 = vmatpush1.msra.mxu0 0.0
        %5825 = vmatprep.subr.mxu0 0.0
        %5826 = vmatpush1.msra.mxu0 0.0
        %5827 = vmatprep.subr.mxu0 0.0
        %5828 = vmatpush1.msra.mxu0 0.0
        %5829 = vmatprep.subr.mxu0 0.0
        %5830 = vmatpush1.msra.mxu0 0.0
        %5831 = vmatprep.subr.mxu0 0.0
        %5832 = vmatpush1.msra.mxu0 0.0
        %5833 = vmatprep.subr.mxu0 0.0
        %5834 = vmatpush1.msra.mxu0 0.0
        %5835 = vmatprep.subr.mxu0 0.0
        %5836 = vmatpush1.msra.mxu0 0.0
        %5837 = vmatprep.mubr.f32.mxu0 0.0
        %5838 = vmatmul.mubr.f32.gmra.mrb[0].mxu0 %v5726
        %v5839 = vpop.f32.mrb[0].mxu0
        %v5840 = vadd.f32 0.0, %v5839
        %v5841 = vpop.f32.mrb[0].mxu0
        %5842 = vmatprep.mubr.f32.mxu0 0.0
        %5843 = vmatmul.mubr.f32.gmra.mrb[0].mxu0 %v5729
        %v5844 = vpop.f32.mrb[0].mxu0
        %v5845 = vadd.f32 0.0, %v5844
        %v5846 = vpop.f32.mrb[0].mxu0
        %5847 = vmatprep.mubr.f32.mxu0 0.0
        %5848 = vmatmul.mubr.f32.gmra.mrb[0].mxu0 %v5732
        %v5849 = vpop.f32.mrb[0].mxu0
        %v5850 = vadd.f32 0.0, %v5849
        %v5851 = vpop.f32.mrb[0].mxu0
        %5852 = vmatprep.mubr.f32.mxu0 0.0
        %5853 = vmatmul.mubr.f32.gmra.mrb[0].mxu0 %v5735
        %v5854 = vpop.f32.mrb[0].mxu0
        %v5855 = vadd.f32 0.0, %v5854
        %v5856 = vpop.f32.mrb[0].mxu0
        %5857 = vmatprep.mubr.f32.mxu0 0.0
        %5858 = vmatmul.mubr.f32.gmra.mrb[0].mxu0 %v5738
        %v5859 = vpop.f32.mrb[0].mxu0
        %v5860 = vadd.f32 0.0, %v5859
        %v5861 = vpop.f32.mrb[0].mxu0
        %5862 = vmatprep.mubr.f32.mxu0 0.0
        %5863 = vmatmul.mubr.f32.gmra.mrb[0].mxu0 %v5741
        %v5864 = vpop.f32.mrb[0].mxu0
        %v5865 = vadd.f32 0.0, %v5864
        %v5866 = vpop.f32.mrb[0].mxu0
        %5867 = vmatprep.mubr.f32.mxu0 0.0
        %5868 = vmatmul.mubr.f32.gmra.mrb[0].mxu0 %v5744
        %v5869 = vpop.f32.mrb[0].mxu0
        %v5870 = vadd.f32 0.0, %v5869
        %v5871 = vpop.f32.mrb[0].mxu0
        %5872 = vmatprep.mubr.f32.mxu0 0.0
        %5873 = vmatmul.mubr.f32.gmra.mrb[0].mxu0 %v5747
        %v5874 = vpop.f32.mrb[0].mxu0
        %v5875 = vadd.f32 0.0, %v5874
        %v5876 = vpop.f32.mrb[0].mxu0
        %5877 = vmatprep.mubr.f32.mxu0 0.0
        %5878 = vmatmul.mubr.f32.gmra.mrb[0].mxu0 %v5750
        %v5879 = vpop.f32.mrb[0].mxu0
        %v5880 = vadd.f32 0.0, %v5879
        %v5881 = vpop.f32.mrb[0].mxu0
        %5882 = vmatprep.mubr.f32.mxu0 0.0
        %5883 = vmatmul.mubr.f32.gmra.mrb[0].mxu0 %v5753
        %v5884 = vpop.f32.mrb[0].mxu0
        %v5885 = vadd.f32 0.0, %v5884
        %v5886 = vpop.f32.mrb[0].mxu0
        %5887 = vmatprep.mubr.f32.mxu0 0.0
        %5888 = vmatmul.mubr.f32.gmra.mrb[0].mxu0 %v5756
        %v5889 = vpop.f32.mrb[0].mxu0
        %v5890 = vadd.f32 0.0, %v5889
        %v5891 = vpop.f32.mrb[0].mxu0
        %5892 = vmatprep.mubr.f32.mxu0 0.0
        %5893 = vmatmul.mubr.f32.gmra.mrb[0].mxu0 %v5759
        %v5894 = vpop.f32.mrb[0].mxu0
        %v5895 = vadd.f32 0.0, %v5894
        %v5896 = vpop.f32.mrb[0].mxu0
        %5897 = vmatprep.mubr.f32.mxu0 0.0
        %5898 = vmatmul.mubr.f32.gmra.mrb[0].mxu0 %v5762
        %v5899 = vpop.f32.mrb[0].mxu0
        %v5900 = vadd.f32 0.0, %v5899
        %v5901 = vpop.f32.mrb[0].mxu0
        %5902 = vmatprep.mubr.f32.mxu0 0.0
        %5903 = vmatmul.mubr.f32.gmra.mrb[0].mxu0 %v5765
        %v5904 = vpop.f32.mrb[0].mxu0
        %v5905 = vadd.f32 0.0, %v5904
        %v5906 = vpop.f32.mrb[0].mxu0
        %5907 = vmatprep.mubr.f32.mxu0 0.0
        %5908 = vmatmul.mubr.f32.gmra.mrb[0].mxu0 %v5768
        %v5909 = vpop.f32.mrb[0].mxu0
        %v5910 = vadd.f32 0.0, %v5909
        %v5911 = vpop.f32.mrb[0].mxu0
        %5912 = vmatprep.mubr.f32.mxu0 0.0
        %5913 = vmatmul.mubr.f32.gmra.mrb[0].mxu0 %v5771
        %v5914 = vpop.f32.mrb[0].mxu0
        %v5915 = vadd.f32 0.0, %v5914
        %v5916 = vpop.f32.mrb[0].mxu0
        %5917 = vdwg.mxu0
        %v5918 = vadd.f32 %v495, %v5840
        %v5919 = vadd.f32 %v496, %v5845
        %v5920 = vadd.f32 %v497, %v5850
        %v5921 = vadd.f32 %v498, %v5855
        %v5922 = vadd.f32 %v499, %v5860
        %v5923 = vadd.f32 %v500, %v5865
        %v5924 = vadd.f32 %v501, %v5870
        %v5925 = vadd.f32 %v502, %v5875
        %v5926 = vadd.f32 %v503, %v5880
        %v5927 = vadd.f32 %v504, %v5885
        %v5928 = vadd.f32 %v505, %v5890
        %v5929 = vadd.f32 %v506, %v5895
        %v5930 = vadd.f32 %v507, %v5900
        %v5931 = vadd.f32 %v508, %v5905
        %v5932 = vadd.f32 %v509, %v5910
        %v5933 = vadd.f32 %v510, %v5915
        %5934 = vst.msk [vmem:[#allocation2] sm:$0xff] %vm536, %v5918
        %5935 = vst.msk [vmem:[#allocation2 + $0x8] sm:$0xff] %vm536, %v5919
        %5936 = vst.msk [vmem:[#allocation2 + $0x10] sm:$0xff] %vm536, %v5920
        %5937 = vst.msk [vmem:[#allocation2 + $0x18] sm:$0xff] %vm536, %v5921
        %5938 = vst.msk [vmem:[#allocation2 + $0x20] sm:$0xff] %vm536, %v5922
        %5939 = vst.msk [vmem:[#allocation2 + $0x28] sm:$0xff] %vm536, %v5923
        %5940 = vst.msk [vmem:[#allocation2 + $0x30] sm:$0xff] %vm536, %v5924
        %5941 = vst.msk [vmem:[#allocation2 + $0x38] sm:$0xff] %vm536, %v5925
        %5942 = vst.msk [vmem:[#allocation2 + $0x40] sm:$0xff] %vm536, %v5926
        %5943 = vst.msk [vmem:[#allocation2 + $0x48] sm:$0xff] %vm536, %v5927
        %5944 = vst.msk [vmem:[#allocation2 + $0x50] sm:$0xff] %vm536, %v5928
        %5945 = vst.msk [vmem:[#allocation2 + $0x58] sm:$0xff] %vm536, %v5929
        %5946 = vst.msk [vmem:[#allocation2 + $0x60] sm:$0xff] %vm536, %v5930
        %5947 = vst.msk [vmem:[#allocation2 + $0x68] sm:$0xff] %vm536, %v5931
        %5948 = vst.msk [vmem:[#allocation2 + $0x70] sm:$0xff] %vm536, %v5932
        %5949 = vst.msk [vmem:[#allocation2 + $0x78] sm:$0xff] %vm536, %v5933
        %p5950 = scmp.eq.s32.totalorder %s28, 1
        // Predicated region
        $region61: #{tpu_custom_call.1} parent=55 // pred_check
          %p5951 = pneg %p5950
        $region62: #{tpu_custom_call.1} parent=55 // pred_check_branch
          %5953 = sbr.rel (%p5951) target = $region64
        $region63: #{tpu_custom_call.1} parent=55 // pred_region
          %v5954 = vld [vmem:[#allocation2] sm:$0xff]
          %v5955 = vld [vmem:[#allocation2 + $0x8] sm:$0xff]
          %v5956 = vld [vmem:[#allocation2 + $0x10] sm:$0xff]
          %v5957 = vld [vmem:[#allocation2 + $0x18] sm:$0xff]
          %v5958 = vld [vmem:[#allocation2 + $0x20] sm:$0xff]
          %v5959 = vld [vmem:[#allocation2 + $0x28] sm:$0xff]
          %v5960 = vld [vmem:[#allocation2 + $0x30] sm:$0xff]
          %v5961 = vld [vmem:[#allocation2 + $0x38] sm:$0xff]
          %v5962 = vld [vmem:[#allocation2 + $0x40] sm:$0xff]
          %v5963 = vld [vmem:[#allocation2 + $0x48] sm:$0xff]
          %v5964 = vld [vmem:[#allocation2 + $0x50] sm:$0xff]
          %v5965 = vld [vmem:[#allocation2 + $0x58] sm:$0xff]
          %v5966 = vld [vmem:[#allocation2 + $0x60] sm:$0xff]
          %v5967 = vld [vmem:[#allocation2 + $0x68] sm:$0xff]
          %v5968 = vld [vmem:[#allocation2 + $0x70] sm:$0xff]
          %v5969 = vld [vmem:[#allocation2 + $0x78] sm:$0xff]
          %v5970 = vld [vmem:[%s7] sm:$0xff]
          %v5971 = vld [vmem:[%s7 + $0x8] sm:$0xff]
          %v5972 = vmul.f32 %v5954, %v5970
          %v5973 = vmul.f32 %v5955, %v5971
          %v5974 = vmul.f32 %v5956, %v5970
          %v5975 = vmul.f32 %v5957, %v5971
          %v5976 = vmul.f32 %v5958, %v5970
          %v5977 = vmul.f32 %v5959, %v5971
          %v5978 = vmul.f32 %v5960, %v5970
          %v5979 = vmul.f32 %v5961, %v5971
          %v5980 = vmul.f32 %v5962, %v5970
          %v5981 = vmul.f32 %v5963, %v5971
          %v5982 = vmul.f32 %v5964, %v5970
          %v5983 = vmul.f32 %v5965, %v5971
          %v5984 = vmul.f32 %v5966, %v5970
          %v5985 = vmul.f32 %v5967, %v5971
          %v5986 = vmul.f32 %v5968, %v5970
          %v5987 = vmul.f32 %v5969, %v5971
          %v5988 = vsel %vm536, %v5972, 0.0
          %v5989 = vsel %vm536, %v5973, 0.0
          %v5990 = vadd.f32 %v5988, %v5989
          %v5991 = vrot.slane %v5990, 4
          %v5992 = vadd.f32 %v5990, %v5991
          %v5993 = vrot.slane %v5992, 2
          %v5994 = vadd.f32 %v5992, %v5993
          %v5995 = vrot.slane %v5994, 1
          %v5996 = vadd.f32 %v5994, %v5995
          %v5997 = vsel %vm536, %v5974, 0.0
          %v5998 = vsel %vm536, %v5975, 0.0
          %v5999 = vadd.f32 %v5997, %v5998
          %v6000 = vrot.slane %v5999, 4
          %v6001 = vadd.f32 %v5999, %v6000
          %v6002 = vrot.slane %v6001, 2
          %v6003 = vadd.f32 %v6001, %v6002
          %v6004 = vrot.slane %v6003, 1
          %v6005 = vadd.f32 %v6003, %v6004
          %v6006 = vsel %vm536, %v5976, 0.0
          %v6007 = vsel %vm536, %v5977, 0.0
          %v6008 = vadd.f32 %v6006, %v6007
          %v6009 = vrot.slane %v6008, 4
          %v6010 = vadd.f32 %v6008, %v6009
          %v6011 = vrot.slane %v6010, 2
          %v6012 = vadd.f32 %v6010, %v6011
          %v6013 = vrot.slane %v6012, 1
          %v6014 = vadd.f32 %v6012, %v6013
          %v6015 = vsel %vm536, %v5978, 0.0
          %v6016 = vsel %vm536, %v5979, 0.0
          %v6017 = vadd.f32 %v6015, %v6016
          %v6018 = vrot.slane %v6017, 4
          %v6019 = vadd.f32 %v6017, %v6018
          %v6020 = vrot.slane %v6019, 2
          %v6021 = vadd.f32 %v6019, %v6020
          %v6022 = vrot.slane %v6021, 1
          %v6023 = vadd.f32 %v6021, %v6022
          %v6024 = vsel %vm536, %v5980, 0.0
          %v6025 = vsel %vm536, %v5981, 0.0
          %v6026 = vadd.f32 %v6024, %v6025
          %v6027 = vrot.slane %v6026, 4
          %v6028 = vadd.f32 %v6026, %v6027
          %v6029 = vrot.slane %v6028, 2
          %v6030 = vadd.f32 %v6028, %v6029
          %v6031 = vrot.slane %v6030, 1
          %v6032 = vadd.f32 %v6030, %v6031
          %v6033 = vsel %vm536, %v5982, 0.0
          %v6034 = vsel %vm536, %v5983, 0.0
          %v6035 = vadd.f32 %v6033, %v6034
          %v6036 = vrot.slane %v6035, 4
          %v6037 = vadd.f32 %v6035, %v6036
          %v6038 = vrot.slane %v6037, 2
          %v6039 = vadd.f32 %v6037, %v6038
          %v6040 = vrot.slane %v6039, 1
          %v6041 = vadd.f32 %v6039, %v6040
          %v6042 = vsel %vm536, %v5984, 0.0
          %v6043 = vsel %vm536, %v5985, 0.0
          %v6044 = vadd.f32 %v6042, %v6043
          %v6045 = vrot.slane %v6044, 4
          %v6046 = vadd.f32 %v6044, %v6045
          %v6047 = vrot.slane %v6046, 2
          %v6048 = vadd.f32 %v6046, %v6047
          %v6049 = vrot.slane %v6048, 1
          %v6050 = vadd.f32 %v6048, %v6049
          %v6051 = vsel %vm536, %v5986, 0.0
          %v6052 = vsel %vm536, %v5987, 0.0
          %v6053 = vadd.f32 %v6051, %v6052
          %v6054 = vrot.slane %v6053, 4
          %v6055 = vadd.f32 %v6053, %v6054
          %v6056 = vrot.slane %v6055, 2
          %v6057 = vadd.f32 %v6055, %v6056
          %v6058 = vrot.slane %v6057, 1
          %v6059 = vadd.f32 %v6057, %v6058
          %v6060 = vld [vmem:[%s8] sm:$0xff]
          %v6061 = vld [vmem:[%s8 + $0x8] sm:$0xff]
          %vm6070 = vcmask 1041409
          %v6071 = vsel %vm6070, %v6005, %v5996
          %vm6072 = vcmask 1042434
          %v6073 = vsel %vm6072, %v6014, %v6071
          %vm6074 = vcmask 1043459
          %v6075 = vsel %vm6074, %v6023, %v6073
          %vm6076 = vcmask 1044484
          %v6077 = vsel %vm6076, %v6032, %v6075
          %vm6078 = vcmask 1045509
          %v6079 = vsel %vm6078, %v6041, %v6077
          %vm6080 = vcmask 1046534
          %v6081 = vsel %vm6080, %v6050, %v6079
          %vm6082 = vcmask 1047559
          %v6083 = vsel %vm6082, %v6059, %v6081
          %v6084 = vsel %vm536, %v6083, 0
          %6086 = vmatprep.subr.mxu0 0.0
          %6087 = vmatpush1.msra.mxu0 %v6060
          %6088 = vmatprep.subr.mxu0 0.0
          %6089 = vmatpush1.msra.mxu0 %v6061
          %6090 = vmatprep.subr.mxu0 0.0
          %6091 = vmatpush1.msra.mxu0 0.0
          %6092 = vmatprep.subr.mxu0 0.0
          %6093 = vmatpush1.msra.mxu0 0.0
          %6094 = vmatprep.subr.mxu0 0.0
          %6095 = vmatpush1.msra.mxu0 0.0
          %6096 = vmatprep.subr.mxu0 0.0
          %6097 = vmatpush1.msra.mxu0 0.0
          %6098 = vmatprep.subr.mxu0 0.0
          %6099 = vmatpush1.msra.mxu0 0.0
          %6100 = vmatprep.subr.mxu0 0.0
          %6101 = vmatpush1.msra.mxu0 0.0
          %6102 = vmatprep.subr.mxu0 0.0
          %6103 = vmatpush1.msra.mxu0 0.0
          %6104 = vmatprep.subr.mxu0 0.0
          %6105 = vmatpush1.msra.mxu0 0.0
          %6106 = vmatprep.subr.mxu0 0.0
          %6107 = vmatpush1.msra.mxu0 0.0
          %6108 = vmatprep.subr.mxu0 0.0
          %6109 = vmatpush1.msra.mxu0 0.0
          %6110 = vmatprep.subr.mxu0 0.0
          %6111 = vmatpush1.msra.mxu0 0.0
          %6112 = vmatprep.subr.mxu0 0.0
          %6113 = vmatpush1.msra.mxu0 0.0
          %6114 = vmatprep.subr.mxu0 0.0
          %6115 = vmatpush1.msra.mxu0 0.0
          %6116 = vmatprep.subr.mxu0 0.0
          %6117 = vmatpush1.msra.mxu0 0.0
          %6118 = vmatprep.subr.mxu0 0.0
          %6119 = vmatpush1.msra.mxu0 0.0
          %6120 = vmatprep.subr.mxu0 0.0
          %6121 = vmatpush1.msra.mxu0 0.0
          %6122 = vmatprep.subr.mxu0 0.0
          %6123 = vmatpush1.msra.mxu0 0.0
          %6124 = vmatprep.subr.mxu0 0.0
          %6125 = vmatpush1.msra.mxu0 0.0
          %6126 = vmatprep.subr.mxu0 0.0
          %6127 = vmatpush1.msra.mxu0 0.0
          %6128 = vmatprep.subr.mxu0 0.0
          %6129 = vmatpush1.msra.mxu0 0.0
          %6130 = vmatprep.subr.mxu0 0.0
          %6131 = vmatpush1.msra.mxu0 0.0
          %6132 = vmatprep.subr.mxu0 0.0
          %6133 = vmatpush1.msra.mxu0 0.0
          %6134 = vmatprep.subr.mxu0 0.0
          %6135 = vmatpush1.msra.mxu0 0.0
          %6136 = vmatprep.subr.mxu0 0.0
          %6137 = vmatpush1.msra.mxu0 0.0
          %6138 = vmatprep.subr.mxu0 0.0
          %6139 = vmatpush1.msra.mxu0 0.0
          %6140 = vmatprep.subr.mxu0 0.0
          %6141 = vmatpush1.msra.mxu0 0.0
          %6142 = vmatprep.subr.mxu0 0.0
          %6143 = vmatpush1.msra.mxu0 0.0
          %6144 = vmatprep.subr.mxu0 0.0
          %6145 = vmatpush1.msra.mxu0 0.0
          %6146 = vmatprep.subr.mxu0 0.0
          %6147 = vmatpush1.msra.mxu0 0.0
          %6148 = vmatprep.subr.mxu0 0.0
          %6149 = vmatpush1.msra.mxu0 0.0
          %6150 = vmatprep.mubr.f32.mxu0 0.0
          %6151 = vmatmul.mubr.f32.gmra.mrb[0].mxu0 %v6084
          %v6152 = vpop.f32.mrb[0].mxu0
          %v6153 = vadd.f32 0.0, %v6152
          %v6154 = vpop.f32.mrb[0].mxu0
          %6155 = vdwg.mxu0
          %6156 = vst.msk [vmem:[%s421] sm:$0xff] %vm778, %v6153
        $region64: #{tpu_custom_call.1} parent=55 // pred_fallthru
          _
        %s6157 = sand.u32 %s267, 1
        %s6158 = scalar_lea.sflag [#allocation5], %s6157
        %s6159 = sand.u32 %s267, 1
        %s6160 = smul.addr %s6159, 8
        %s6161 = scalar_lea.vmem [#allocation4], %s6160
        // Predicated region
        $region65: #{tpu_custom_call.1} parent=55 // pred_check
          %p6162 = pneg %p277
        $region66: #{tpu_custom_call.1} parent=55 // pred_check_branch
          %6164 = sbr.rel (%p6162) target = $region68
        $region67: #{tpu_custom_call.1} parent=55 // pred_region
          %s6166 = ssub.s32 128, 128
          %6167 = vsyncadd %s6158, %s6166
          %s6168 = smul.addr %s27, 128
          %s6169 = scalar_lea.hbm %s9, %s6168
          %s6171 = sshll.u32 %s6161, 4
          %s6172 = int_to_ptr.vmem [resolvable:$true] %s6171
          %6174 = dma.vmem_to_hbm [thread:$0]  %s6172, 128, %s6169, %s6158
        $region68: #{tpu_custom_call.1} parent=55 // pred_fallthru
          _
      $region56: #{tpu_custom_call.1} parent=5 // pred_fallthru
        _
      %p6175 = scmp.le.s32.totalorder 2, %s18
      // Predicated region
      $region69: #{tpu_custom_call.1} parent=5 // pred_check
        %p6176 = pneg %p6175
      $region70: #{tpu_custom_call.1} parent=5 // pred_check_branch
        %6178 = sbr.rel (%p6176) target = $region72
      $region71: #{tpu_custom_call.1} parent=5 // pred_region
        %s6179 = ssub.s32 %s18, 2
        // Predicated region
        $region73: #{tpu_custom_call.1} parent=71 // pred_check
          %p6180 = pneg %p283
        $region74: #{tpu_custom_call.1} parent=71 // pred_check_branch
          %6182 = sbr.rel (%p6180) target = $region76
        $region75: #{tpu_custom_call.1} parent=71 // pred_region
          %s6183 = sand.u32 %s268, 1
          %s6184 = scalar_lea.sflag [#allocation5], %s6183
          %s6185 = sand.u32 %s268, 1
          %s6186 = smul.addr %s6185, 8
          %s6187 = scalar_lea.vmem [#allocation4], %s6186
          %6188 = dma.done %s6184, 128
        $region76: #{tpu_custom_call.1} parent=71 // pred_fallthru
          _
      $region72: #{tpu_custom_call.1} parent=5 // pred_fallthru
        _
    $region6: #{tpu_custom_call.1} parent=1 // loop_footer
      %s22 = sadd.s32 1, %s18
    $region7: #{tpu_custom_call.1} parent=1 // loop_footer_branch
      %17 = sbr.rel target = $region3
    $region8: #{tpu_custom_call.1} parent=1 // loop_exit
      _
    %6189 = vsyncpa [#allocation5], 1
    %s6190 = scalar_lea.sflag [#allocation5], 1
    %6191 = vsyncpa %s6190, 1

</llo_original>
